<compile_context>
chip_gen: v7x
topology: tpu7x:2x2x1
jax: 0.10.0
libtpu: 0.0.40
codegen_flags: <defaults>
</compile_context>

<pallas_src>
import functools
import math

import jax
import jax.numpy as jnp
from jax.experimental import pallas as pl
from jax.experimental.pallas import tpu as pltpu


# ---------------------------------------------------------------------------
# in-kernel helpers (traced inside the Pallas kernel body)
# ---------------------------------------------------------------------------
def _layernorm(x, gamma, beta, eps=1e-5):
    """x: (T, D) f32; gamma/beta: (1, D) f32."""
    mu = jnp.mean(x, axis=-1, keepdims=True)
    var = jnp.mean((x - mu) ** 2, axis=-1, keepdims=True)
    return (x - mu) * jax.lax.rsqrt(var + eps) * gamma + beta


def _mha(q, k, v, bias, wo, bo, num_heads):
    """Head-batched scaled dot-product attention + output projection.

    q: (T, D) f32, k/v: (S, D) f32, bias: additive mask broadcastable to (T, S).
    wo: (D, D) bf16, bo: (1, D) f32.  Heads form the single leading batch dim
    of two rank-3 contractions (MXU, bf16 operands, f32 accumulation).
    """
    T, D = q.shape
    S = k.shape[0]
    dk = D // num_heads
    scale = 1.0 / math.sqrt(dk)

    qh = jnp.transpose(q.reshape(T, num_heads, dk), (1, 0, 2)).astype(jnp.bfloat16)
    kh = jnp.transpose(k.reshape(S, num_heads, dk), (1, 0, 2)).astype(jnp.bfloat16)
    vh = jnp.transpose(v.reshape(S, num_heads, dk), (1, 0, 2)).astype(jnp.bfloat16)

    s = jnp.einsum("hqd,hkd->hqk", qh, kh, preferred_element_type=jnp.float32)
    s = s * scale + bias[None]                       # head-invariant additive mask
    s = s - jnp.max(s, axis=-1, keepdims=True)
    p = jnp.exp(s)
    # EUP approximate reciprocal; safe: no row is fully masked, denom >= 1.
    p = p * pl.reciprocal(jnp.sum(p, axis=-1, keepdims=True), approx=True)

    o = jnp.einsum("hqk,hkd->hqd", p.astype(jnp.bfloat16), vh,
                   preferred_element_type=jnp.float32)
    o = jnp.transpose(o, (1, 0, 2)).reshape(T, D)    # merge heads once
    return jnp.dot(o.astype(jnp.bfloat16), wo,
                   preferred_element_type=jnp.float32) + bo


# ---------------------------------------------------------------------------
# Pallas kernel: one batch row per grid step, full decoder layer
# ---------------------------------------------------------------------------
def decoder_layer_kernel(
    y_ref, mbias_ref, ctx_ref, sbias_ref,
    # self-attention + LN0
    wq0_ref, bq0_ref, wk0_ref, bk0_ref, wv0_ref, bv0_ref, wo0_ref, bo0_ref,
    g0_ref, be0_ref,
    # cross-attention + LN1
    wq1_ref, bq1_ref, wk1_ref, bk1_ref, wv1_ref, bv1_ref, wo1_ref, bo1_ref,
    g1_ref, be1_ref,
    # feed-forward + LN2
    w1_ref, bf1_ref, w2_ref, bf2_ref, g2_ref, be2_ref,
    out_ref,
    *, num_heads,
):
    y = y_ref[0]          # (T, D)      f32
    mbias = mbias_ref[0]  # (T, T)      additive mask bias
    ctx = ctx_ref[0]      # (S, D_src)  f32
    sbias = sbias_ref[0]  # (1, S)      additive mask bias

    # --- self-attention sub-block (pre-norm, residual; dropout = identity) ---
    yt = _layernorm(y, g0_ref[...], be0_ref[...]).astype(jnp.bfloat16)
    q = jnp.dot(yt, wq0_ref[...], preferred_element_type=jnp.float32) + bq0_ref[...]
    k = jnp.dot(yt, wk0_ref[...], preferred_element_type=jnp.float32) + bk0_ref[...]
    v = jnp.dot(yt, wv0_ref[...], preferred_element_type=jnp.float32) + bv0_ref[...]
    y = y + _mha(q, k, v, mbias, wo0_ref[...], bo0_ref[...], num_heads)

    # --- cross-attention sub-block -------------------------------------------
    yt = _layernorm(y, g1_ref[...], be1_ref[...]).astype(jnp.bfloat16)
    ctx_b = ctx.astype(jnp.bfloat16)
    q = jnp.dot(yt, wq1_ref[...], preferred_element_type=jnp.float32) + bq1_ref[...]
    k = jnp.dot(ctx_b, wk1_ref[...], preferred_element_type=jnp.float32) + bk1_ref[...]
    v = jnp.dot(ctx_b, wv1_ref[...], preferred_element_type=jnp.float32) + bv1_ref[...]
    y = y + _mha(q, k, v, sbias, wo1_ref[...], bo1_ref[...], num_heads)

    # --- position-wise FFN sub-block ------------------------------------------
    yt = _layernorm(y, g2_ref[...], be2_ref[...]).astype(jnp.bfloat16)
    h = jnp.maximum(
        jnp.dot(yt, w1_ref[...], preferred_element_type=jnp.float32) + bf1_ref[...],
        0.0)
    ff = jnp.dot(h.astype(jnp.bfloat16), w2_ref[...],
                 preferred_element_type=jnp.float32) + bf2_ref[...]

    out_ref[0] = (y + ff).astype(out_ref.dtype)      # single full-block store


# ---------------------------------------------------------------------------
# wrapper
# ---------------------------------------------------------------------------
def decoder_layer(y, mask, context, src_mask, params, num_heads):
    (wq0, bq0, wk0, bk0, wv0, bv0, wo0, bo0, g0, be0,
     wq1, bq1, wk1, bk1, wv1, bv1, wo1, bo1, g1, be1,
     w1, bf1, w2, bf2, g2, be2) = params

    B, T, D = y.shape

    # ---- wrapper-side prep (plain JAX, tiny relative to the kernel) ----------
    # additive mask biases (head-invariant): 0 where attend, -1e9 where masked
    neg = jnp.float32(-1e9)
    mbias = jnp.where(mask > 0, jnp.float32(0.0), neg).astype(jnp.float32)       # (B,T,T)
    sbias = jnp.where(src_mask > 0, jnp.float32(0.0), neg).astype(jnp.float32)   # (B,1,S)

    # bf16 matmul operands (MXU-native on all generations, halves weight VMEM /
    # DMA); biases and LayerNorm gamma/beta stay f32 (added post-accumulation).
    bf = jnp.bfloat16
    weights = [wq0.astype(bf), bq0, wk0.astype(bf), bk0, wv0.astype(bf), bv0,
               wo0.astype(bf), bo0, g0, be0,
               wq1.astype(bf), bq1, wk1.astype(bf), bk1, wv1.astype(bf), bv1,
               wo1.astype(bf), bo1, g1, be1,
               w1.astype(bf), bf1, w2.astype(bf), bf2, g2, be2]

    data = [y.astype(jnp.float32), mbias, context.astype(jnp.float32), sbias]

    # one batch row per grid step: >= 2 steps for DMA/compute pipelining on
    # single-TC chips, and the "parallel" axis shards rows across both v7x TCs.
    def row_spec(arr):
        nz = arr.ndim - 1
        return pl.BlockSpec((1,) + arr.shape[1:], lambda i, _nz=nz: (i,) + (0,) * _nz)

    def const_spec(arr):   # grid-invariant block -> fetched once, never re-DMAed
        nd = arr.ndim
        return pl.BlockSpec(arr.shape, lambda i, _nd=nd: (0,) * _nd)

    in_specs = [row_spec(a) for a in data] + [const_spec(w) for w in weights]
    out_spec = pl.BlockSpec((1, T, D), lambda i: (i, 0, 0))

    kernel = functools.partial(decoder_layer_kernel, num_heads=num_heads)
    out = pl.pallas_call(
        kernel,
        grid=(B,),
        in_specs=in_specs,
        out_specs=out_spec,
        out_shape=jax.ShapeDtypeStruct((B, T, D), jnp.float32),
        compiler_params=pltpu.CompilerParams(
            dimension_semantics=("parallel",),
            vmem_limit_bytes=48 * 1024 * 1024,   # above the 16/32 MiB scoped default,
                                                 # below physical on v5e/v6e/v7x
        ),
    )(*data, *weights)
    return out


# ---------------------------------------------------------------------------
# pure-JAX reference (faithful to the PyTorch forward, f32 throughout)
# ---------------------------------------------------------------------------
def reference(y, mask, context, src_mask, params, num_heads):
    (wq0, bq0, wk0, bk0, wv0, bv0, wo0, bo0, g0, be0,
     wq1, bq1, wk1, bk1, wv1, bv1, wo1, bo1, g1, be1,
     w1, bf1, w2, bf2, g2, be2) = params

    def ln(x, g, b, eps=1e-5):
        mu = x.mean(-1, keepdims=True)
        var = ((x - mu) ** 2).mean(-1, keepdims=True)
        return (x - mu) / jnp.sqrt(var + eps) * g[0] + b[0]

    def mha(q_in, kv_in, m, wq, bq, wk, bk, wv, bv, wo, bo):
        q = q_in @ wq + bq[0]
        k = kv_in @ wk + bk[0]
        v = kv_in @ wv + bv[0]
        B, T, D = q.shape
        S = k.shape[1]
        dk = D // num_heads
        qh = q.reshape(B, T, num_heads, dk).transpose(0, 2, 1, 3)
        kh = k.reshape(B, S, num_heads, dk).transpose(0, 2, 1, 3)
        vh = v.reshape(B, S, num_heads, dk).transpose(0, 2, 1, 3)
        s = jnp.einsum("bhqd,bhkd->bhqk", qh, kh) / jnp.sqrt(jnp.float32(dk))
        s = jnp.where(m[:, None] > 0.0, s, -1e9)
        p = jax.nn.softmax(s, axis=-1)
        o = jnp.einsum("bhqk,bhkd->bhqd", p, vh).transpose(0, 2, 1, 3).reshape(B, T, D)
        return o @ wo + bo[0]

    yt = ln(y, g0, be0)
    y = y + mha(yt, yt, mask, wq0, bq0, wk0, bk0, wv0, bv0, wo0, bo0)
    yt = ln(y, g1, be1)
    y = y + mha(yt, context, src_mask, wq1, bq1, wk1, bk1, wv1, bv1, wo1, bo1)
    yt = ln(y, g2, be2)
    h = jax.nn.relu(yt @ w1 + bf1[0])
    return y + h @ w2 + bf2[0]


# ---------------------------------------------------------------------------
# main
# ---------------------------------------------------------------------------
if __name__ == "__main__":
    B = 2                 # batch
    T = 8                 # tgt_seq_len
    S = 10                # src_seq_len
    D = 32                # tgt_embed_vec_len
    D_SRC = 24            # src_embed_vec_len
    H = 64                # ffn_hidden_size
    NUM_HEADS = 4

    key = jax.random.PRNGKey(0)
    ks = iter(jax.random.split(key, 64))

    def w(shape, scale=0.02):
        return (scale * jax.random.normal(next(ks), shape)).astype(jnp.float32)

    # inputs
    y = w((B, T, D), 1.0)
    context = w((B, S, D_SRC), 1.0)
    # causal target mask (B, T, T): 1 = attend, 0 = masked
    causal = jnp.tril(jnp.ones((T, T), jnp.float32))
    mask = jnp.broadcast_to(causal, (B, T, T)).astype(jnp.float32)
    # source padding mask (B, 1, S): mask out last 2 source positions
    smask = jnp.concatenate(
        [jnp.ones((B, 1, S - 2), jnp.float32), jnp.zeros((B, 1, 2), jnp.float32)], axis=-1
    )

    # parameters (deterministic init); biases/gamma/beta kept as (1, dim) 2-D tiles
    params = [
        # self-attention: Wq/Wk/Wv: (D, D), Wo: (D, D)
        w((D, D)), w((1, D)), w((D, D)), w((1, D)), w((D, D)), w((1, D)),
        w((D, D)), w((1, D)),
        jnp.ones((1, D), jnp.float32), jnp.zeros((1, D), jnp.float32),      # LN0 gamma/beta
        # cross-attention: Wq: (D, D), Wk/Wv: (D_SRC, D), Wo: (D, D)
        w((D, D)), w((1, D)), w((D_SRC, D)), w((1, D)), w((D_SRC, D)), w((1, D)),
        w((D, D)), w((1, D)),
        jnp.ones((1, D), jnp.float32), jnp.zeros((1, D), jnp.float32),      # LN1 gamma/beta
        # FFN: (D, H), (1, H), (H, D), (1, D)
        w((D, H)), w((1, H)), w((H, D)), w((1, D)),
        jnp.ones((1, D), jnp.float32), jnp.zeros((1, D), jnp.float32),      # LN2 gamma/beta
    ]

    out = decoder_layer(y, mask, context, smask, params, NUM_HEADS)
    out = jax.block_until_ready(out)

    ref = reference(y, mask, context, smask, params, NUM_HEADS)
    assert out.shape == (B, T, D)
    # tolerance accounts for bf16 matmul operands (f32 accumulation) and the
    # EUP approximate reciprocal in the softmax normalization
    assert jnp.allclose(out, ref, rtol=2e-2, atol=2e-2), "mismatch vs reference"

    print("KERNEL_OK")
</pallas_src>

<mosaic_0001>
module attributes {stable_mosaic.version = 11 : i64} {
  func.func @decoder_layer_kernel(%arg0: i32, %arg1: memref<1x8x32xf32, #tpu.memory_space<vmem>>, %arg2: memref<1x8x8xf32, #tpu.memory_space<vmem>>, %arg3: memref<1x10x24xf32, #tpu.memory_space<vmem>>, %arg4: memref<1x1x10xf32, #tpu.memory_space<vmem>>, %arg5: memref<32x32xbf16, #tpu.memory_space<vmem>>, %arg6: memref<1x32xf32, #tpu.memory_space<vmem>>, %arg7: memref<32x32xbf16, #tpu.memory_space<vmem>>, %arg8: memref<1x32xf32, #tpu.memory_space<vmem>>, %arg9: memref<32x32xbf16, #tpu.memory_space<vmem>>, %arg10: memref<1x32xf32, #tpu.memory_space<vmem>>, %arg11: memref<32x32xbf16, #tpu.memory_space<vmem>>, %arg12: memref<1x32xf32, #tpu.memory_space<vmem>>, %arg13: memref<1x32xf32, #tpu.memory_space<vmem>>, %arg14: memref<1x32xf32, #tpu.memory_space<vmem>>, %arg15: memref<32x32xbf16, #tpu.memory_space<vmem>>, %arg16: memref<1x32xf32, #tpu.memory_space<vmem>>, %arg17: memref<24x32xbf16, #tpu.memory_space<vmem>>, %arg18: memref<1x32xf32, #tpu.memory_space<vmem>>, %arg19: memref<24x32xbf16, #tpu.memory_space<vmem>>, %arg20: memref<1x32xf32, #tpu.memory_space<vmem>>, %arg21: memref<32x32xbf16, #tpu.memory_space<vmem>>, %arg22: memref<1x32xf32, #tpu.memory_space<vmem>>, %arg23: memref<1x32xf32, #tpu.memory_space<vmem>>, %arg24: memref<1x32xf32, #tpu.memory_space<vmem>>, %arg25: memref<32x64xbf16, #tpu.memory_space<vmem>>, %arg26: memref<1x64xf32, #tpu.memory_space<vmem>>, %arg27: memref<64x32xbf16, #tpu.memory_space<vmem>>, %arg28: memref<1x32xf32, #tpu.memory_space<vmem>>, %arg29: memref<1x32xf32, #tpu.memory_space<vmem>>, %arg30: memref<1x32xf32, #tpu.memory_space<vmem>>, %arg31: memref<1x8x32xf32, #tpu.memory_space<vmem>>) attributes {dimension_semantics = [#tpu.dimension_semantics<parallel>], iteration_bounds = array<i64: 2>, scalar_prefetch = 0 : i64, scratch_operands = 0 : i64, tpu.core_type = #tpu.core_type<tc>, window_params = [{transform_indices = @transform_0, window_bounds = array<i64: 1, 8, 32>}, {transform_indices = @transform_1, window_bounds = array<i64: 1, 8, 8>}, {transform_indices = @transform_2, window_bounds = array<i64: 1, 10, 24>}, {transform_indices = @transform_3, window_bounds = array<i64: 1, 1, 10>}, {pipeline_mode = #tpu.pipeline_mode<synchronous>, transform_indices = @transform_4, window_bounds = array<i64: 32, 32>}, {pipeline_mode = #tpu.pipeline_mode<synchronous>, transform_indices = @transform_5, window_bounds = array<i64: 1, 32>}, {pipeline_mode = #tpu.pipeline_mode<synchronous>, transform_indices = @transform_6, window_bounds = array<i64: 32, 32>}, {pipeline_mode = #tpu.pipeline_mode<synchronous>, transform_indices = @transform_7, window_bounds = array<i64: 1, 32>}, {pipeline_mode = #tpu.pipeline_mode<synchronous>, transform_indices = @transform_8, window_bounds = array<i64: 32, 32>}, {pipeline_mode = #tpu.pipeline_mode<synchronous>, transform_indices = @transform_9, window_bounds = array<i64: 1, 32>}, {pipeline_mode = #tpu.pipeline_mode<synchronous>, transform_indices = @transform_10, window_bounds = array<i64: 32, 32>}, {pipeline_mode = #tpu.pipeline_mode<synchronous>, transform_indices = @transform_11, window_bounds = array<i64: 1, 32>}, {pipeline_mode = #tpu.pipeline_mode<synchronous>, transform_indices = @transform_12, window_bounds = array<i64: 1, 32>}, {pipeline_mode = #tpu.pipeline_mode<synchronous>, transform_indices = @transform_13, window_bounds = array<i64: 1, 32>}, {pipeline_mode = #tpu.pipeline_mode<synchronous>, transform_indices = @transform_14, window_bounds = array<i64: 32, 32>}, {pipeline_mode = #tpu.pipeline_mode<synchronous>, transform_indices = @transform_15, window_bounds = array<i64: 1, 32>}, {pipeline_mode = #tpu.pipeline_mode<synchronous>, transform_indices = @transform_16, window_bounds = array<i64: 24, 32>}, {pipeline_mode = #tpu.pipeline_mode<synchronous>, transform_indices = @transform_17, window_bounds = array<i64: 1, 32>}, {pipeline_mode = #tpu.pipeline_mode<synchronous>, transform_indices = @transform_18, window_bounds = array<i64: 24, 32>}, {pipeline_mode = #tpu.pipeline_mode<synchronous>, transform_indices = @transform_19, window_bounds = array<i64: 1, 32>}, {pipeline_mode = #tpu.pipeline_mode<synchronous>, transform_indices = @transform_20, window_bounds = array<i64: 32, 32>}, {pipeline_mode = #tpu.pipeline_mode<synchronous>, transform_indices = @transform_21, window_bounds = array<i64: 1, 32>}, {pipeline_mode = #tpu.pipeline_mode<synchronous>, transform_indices = @transform_22, window_bounds = array<i64: 1, 32>}, {pipeline_mode = #tpu.pipeline_mode<synchronous>, transform_indices = @transform_23, window_bounds = array<i64: 1, 32>}, {pipeline_mode = #tpu.pipeline_mode<synchronous>, transform_indices = @transform_24, window_bounds = array<i64: 32, 64>}, {pipeline_mode = #tpu.pipeline_mode<synchronous>, transform_indices = @transform_25, window_bounds = array<i64: 1, 64>}, {pipeline_mode = #tpu.pipeline_mode<synchronous>, transform_indices = @transform_26, window_bounds = array<i64: 64, 32>}, {pipeline_mode = #tpu.pipeline_mode<synchronous>, transform_indices = @transform_27, window_bounds = array<i64: 1, 32>}, {pipeline_mode = #tpu.pipeline_mode<synchronous>, transform_indices = @transform_28, window_bounds = array<i64: 1, 32>}, {pipeline_mode = #tpu.pipeline_mode<synchronous>, transform_indices = @transform_29, window_bounds = array<i64: 1, 32>}, {transform_indices = @transform_30, window_bounds = array<i64: 1, 8, 32>}]} {
    %c0 = arith.constant 0 : index
    %c0_0 = arith.constant 0 : index
    %c0_1 = arith.constant 0 : index
    %0 = vector.load %arg1[%c0, %c0_0, %c0_1] : memref<1x8x32xf32, #tpu.memory_space<vmem>>, vector<1x8x32xf32>
    %1 = vector.shape_cast %0 : vector<1x8x32xf32> to vector<8x32xf32>
    %c0_2 = arith.constant 0 : index
    %c0_3 = arith.constant 0 : index
    %c0_4 = arith.constant 0 : index
    %2 = vector.load %arg2[%c0_2, %c0_3, %c0_4] : memref<1x8x8xf32, #tpu.memory_space<vmem>>, vector<1x8x8xf32>
    %3 = vector.shape_cast %2 : vector<1x8x8xf32> to vector<8x8xf32>
    %c0_5 = arith.constant 0 : index
    %c0_6 = arith.constant 0 : index
    %c0_7 = arith.constant 0 : index
    %4 = vector.load %arg3[%c0_5, %c0_6, %c0_7] : memref<1x10x24xf32, #tpu.memory_space<vmem>>, vector<1x10x24xf32>
    %5 = vector.shape_cast %4 : vector<1x10x24xf32> to vector<10x24xf32>
    %c0_8 = arith.constant 0 : index
    %c0_9 = arith.constant 0 : index
    %c0_10 = arith.constant 0 : index
    %6 = vector.load %arg4[%c0_8, %c0_9, %c0_10] : memref<1x1x10xf32, #tpu.memory_space<vmem>>, vector<1x1x10xf32>
    %7 = vector.shape_cast %6 : vector<1x1x10xf32> to vector<1x10xf32>
    %c0_11 = arith.constant 0 : index
    %c0_12 = arith.constant 0 : index
    %8 = vector.load %arg13[%c0_11, %c0_12] : memref<1x32xf32, #tpu.memory_space<vmem>>, vector<1x32xf32>
    %c0_13 = arith.constant 0 : index
    %c0_14 = arith.constant 0 : index
    %9 = vector.load %arg14[%c0_13, %c0_14] : memref<1x32xf32, #tpu.memory_space<vmem>>, vector<1x32xf32>
    %cst = arith.constant dense<0.000000e+00> : vector<8xf32>
    %10 = vector.multi_reduction <add>, %1, %cst [1] : vector<8x32xf32> to vector<8xf32>
    %11 = vector.shape_cast %10 : vector<8xf32> to vector<8x1xf32>
    %cst_15 = arith.constant 3.200000e+01 : f32
    %12 = vector.broadcast %cst_15 : f32 to vector<8x1xf32>
    %13 = arith.divf %11, %12 : vector<8x1xf32>
    %14 = vector.broadcast %13 : vector<8x1xf32> to vector<8x32xf32>
    %15 = arith.subf %1, %14 : vector<8x32xf32>
    %16 = arith.mulf %15, %15 : vector<8x32xf32>
    %cst_16 = arith.constant dense<0.000000e+00> : vector<8xf32>
    %17 = vector.multi_reduction <add>, %16, %cst_16 [1] : vector<8x32xf32> to vector<8xf32>
    %18 = vector.shape_cast %17 : vector<8xf32> to vector<8x1xf32>
    %cst_17 = arith.constant 3.200000e+01 : f32
    %19 = vector.broadcast %cst_17 : f32 to vector<8x1xf32>
    %20 = arith.divf %18, %19 : vector<8x1xf32>
    %21 = vector.broadcast %13 : vector<8x1xf32> to vector<8x32xf32>
    %22 = arith.subf %1, %21 : vector<8x32xf32>
    %cst_18 = arith.constant 9.99999974E-6 : f32
    %23 = vector.broadcast %cst_18 : f32 to vector<8x1xf32>
    %24 = arith.addf %20, %23 : vector<8x1xf32>
    %25 = math.rsqrt %24 : vector<8x1xf32>
    %26 = vector.broadcast %25 : vector<8x1xf32> to vector<8x32xf32>
    %27 = arith.mulf %22, %26 : vector<8x32xf32>
    %28 = vector.broadcast %8 : vector<1x32xf32> to vector<8x32xf32>
    %29 = arith.mulf %27, %28 : vector<8x32xf32>
    %30 = vector.broadcast %9 : vector<1x32xf32> to vector<8x32xf32>
    %31 = arith.addf %29, %30 : vector<8x32xf32>
    %32 = arith.truncf %31 : vector<8x32xf32> to vector<8x32xbf16>
    %c0_19 = arith.constant 0 : index
    %c0_20 = arith.constant 0 : index
    %33 = vector.load %arg5[%c0_19, %c0_20] : memref<32x32xbf16, #tpu.memory_space<vmem>>, vector<32x32xbf16>
    %cst_21 = arith.constant dense<0.000000e+00> : vector<8x32xf32>
    %34 = tpu.matmul %32, %33, %cst_21 {dimension_numbers = #tpu.dot_dimension_numbers<[1], [0], [0], [1], [0, 0, 1, 1], [], []>} : vector<8x32xbf16>, vector<32x32xbf16>, vector<8x32xf32> -> vector<8x32xf32>
    %c0_22 = arith.constant 0 : index
    %c0_23 = arith.constant 0 : index
    %35 = vector.load %arg6[%c0_22, %c0_23] : memref<1x32xf32, #tpu.memory_space<vmem>>, vector<1x32xf32>
    %36 = vector.broadcast %35 : vector<1x32xf32> to vector<8x32xf32>
    %37 = arith.addf %34, %36 : vector<8x32xf32>
    %c0_24 = arith.constant 0 : index
    %c0_25 = arith.constant 0 : index
    %38 = vector.load %arg7[%c0_24, %c0_25] : memref<32x32xbf16, #tpu.memory_space<vmem>>, vector<32x32xbf16>
    %cst_26 = arith.constant dense<0.000000e+00> : vector<8x32xf32>
    %39 = tpu.matmul %32, %38, %cst_26 {dimension_numbers = #tpu.dot_dimension_numbers<[1], [0], [0], [1], [0, 0, 1, 1], [], []>} : vector<8x32xbf16>, vector<32x32xbf16>, vector<8x32xf32> -> vector<8x32xf32>
    %c0_27 = arith.constant 0 : index
    %c0_28 = arith.constant 0 : index
    %40 = vector.load %arg8[%c0_27, %c0_28] : memref<1x32xf32, #tpu.memory_space<vmem>>, vector<1x32xf32>
    %41 = vector.broadcast %40 : vector<1x32xf32> to vector<8x32xf32>
    %42 = arith.addf %39, %41 : vector<8x32xf32>
    %c0_29 = arith.constant 0 : index
    %c0_30 = arith.constant 0 : index
    %43 = vector.load %arg9[%c0_29, %c0_30] : memref<32x32xbf16, #tpu.memory_space<vmem>>, vector<32x32xbf16>
    %cst_31 = arith.constant dense<0.000000e+00> : vector<8x32xf32>
    %44 = tpu.matmul %32, %43, %cst_31 {dimension_numbers = #tpu.dot_dimension_numbers<[1], [0], [0], [1], [0, 0, 1, 1], [], []>} : vector<8x32xbf16>, vector<32x32xbf16>, vector<8x32xf32> -> vector<8x32xf32>
    %c0_32 = arith.constant 0 : index
    %c0_33 = arith.constant 0 : index
    %45 = vector.load %arg10[%c0_32, %c0_33] : memref<1x32xf32, #tpu.memory_space<vmem>>, vector<1x32xf32>
    %46 = vector.broadcast %45 : vector<1x32xf32> to vector<8x32xf32>
    %47 = arith.addf %44, %46 : vector<8x32xf32>
    %c0_34 = arith.constant 0 : index
    %c0_35 = arith.constant 0 : index
    %48 = vector.load %arg11[%c0_34, %c0_35] : memref<32x32xbf16, #tpu.memory_space<vmem>>, vector<32x32xbf16>
    %c0_36 = arith.constant 0 : index
    %c0_37 = arith.constant 0 : index
    %49 = vector.load %arg12[%c0_36, %c0_37] : memref<1x32xf32, #tpu.memory_space<vmem>>, vector<1x32xf32>
    %50 = vector.shape_cast %37 : vector<8x32xf32> to vector<8x4x8xf32>
    %51 = tpu.transpose %50, [1, 0, 2] : vector<8x4x8xf32> -> vector<4x8x8xf32>
    %52 = arith.truncf %51 : vector<4x8x8xf32> to vector<4x8x8xbf16>
    %53 = vector.shape_cast %42 : vector<8x32xf32> to vector<8x4x8xf32>
    %54 = tpu.transpose %53, [1, 0, 2] : vector<8x4x8xf32> -> vector<4x8x8xf32>
    %55 = arith.truncf %54 : vector<4x8x8xf32> to vector<4x8x8xbf16>
    %56 = vector.shape_cast %47 : vector<8x32xf32> to vector<8x4x8xf32>
    %57 = tpu.transpose %56, [1, 0, 2] : vector<8x4x8xf32> -> vector<4x8x8xf32>
    %58 = arith.truncf %57 : vector<4x8x8xf32> to vector<4x8x8xbf16>
    "tpu.trace_start"() <{level = 10 : i32, message = "hqd,hkd->hqk"}> : () -> ()
    %cst_38 = arith.constant dense<0.000000e+00> : vector<4x8x8xf32>
    %59 = tpu.matmul %52, %55, %cst_38 {dimension_numbers = #tpu.dot_dimension_numbers<[2], [2], [1], [1], [0, 0, 0, 1, 1, 1], [0], [0]>} : vector<4x8x8xbf16>, vector<4x8x8xbf16>, vector<4x8x8xf32> -> vector<4x8x8xf32>
    "tpu.trace_stop"() : () -> ()
    %cst_39 = arith.constant 0.353553385 : f32
    %60 = vector.broadcast %cst_39 : f32 to vector<4x8x8xf32>
    %61 = arith.mulf %59, %60 : vector<4x8x8xf32>
    %62 = vector.shape_cast %3 : vector<8x8xf32> to vector<1x8x8xf32>
    %63 = vector.broadcast %62 : vector<1x8x8xf32> to vector<4x8x8xf32>
    %64 = arith.addf %61, %63 : vector<4x8x8xf32>
    %cst_40 = arith.constant dense<0xFF800000> : vector<4x8xf32>
    %65 = vector.multi_reduction <maximumf>, %64, %cst_40 [2] : vector<4x8x8xf32> to vector<4x8xf32>
    %66 = vector.shape_cast %65 : vector<4x8xf32> to vector<4x8x1xf32>
    %67 = vector.broadcast %66 : vector<4x8x1xf32> to vector<4x8x8xf32>
    %68 = arith.subf %64, %67 : vector<4x8x8xf32>
    %69 = math.exp %68 : vector<4x8x8xf32>
    %cst_41 = arith.constant dense<0.000000e+00> : vector<4x8xf32>
    %70 = vector.multi_reduction <add>, %69, %cst_41 [2] : vector<4x8x8xf32> to vector<4x8xf32>
    %71 = vector.shape_cast %70 : vector<4x8xf32> to vector<4x8x1xf32>
    %72 = tpu.reciprocal %71 {approx = true} : vector<4x8x1xf32> -> vector<4x8x1xf32>
    %73 = vector.broadcast %72 : vector<4x8x1xf32> to vector<4x8x8xf32>
    %74 = arith.mulf %69, %73 : vector<4x8x8xf32>
    %75 = arith.truncf %74 : vector<4x8x8xf32> to vector<4x8x8xbf16>
    "tpu.trace_start"() <{level = 10 : i32, message = "hqk,hkd->hqd"}> : () -> ()
    %cst_42 = arith.constant dense<0.000000e+00> : vector<4x8x8xf32>
    %76 = tpu.matmul %75, %58, %cst_42 {dimension_numbers = #tpu.dot_dimension_numbers<[2], [1], [1], [2], [0, 0, 0, 1, 1, 2], [0], [0]>} : vector<4x8x8xbf16>, vector<4x8x8xbf16>, vector<4x8x8xf32> -> vector<4x8x8xf32>
    "tpu.trace_stop"() : () -> ()
    %77 = tpu.transpose %76, [1, 0, 2] : vector<4x8x8xf32> -> vector<8x4x8xf32>
    %78 = vector.shape_cast %77 : vector<8x4x8xf32> to vector<8x32xf32>
    %79 = arith.truncf %78 : vector<8x32xf32> to vector<8x32xbf16>
    %cst_43 = arith.constant dense<0.000000e+00> : vector<8x32xf32>
    %80 = tpu.matmul %79, %48, %cst_43 {dimension_numbers = #tpu.dot_dimension_numbers<[1], [0], [0], [1], [0, 0, 1, 1], [], []>} : vector<8x32xbf16>, vector<32x32xbf16>, vector<8x32xf32> -> vector<8x32xf32>
    %81 = vector.broadcast %49 : vector<1x32xf32> to vector<8x32xf32>
    %82 = arith.addf %80, %81 : vector<8x32xf32>
    %83 = arith.addf %1, %82 : vector<8x32xf32>
    %c0_44 = arith.constant 0 : index
    %c0_45 = arith.constant 0 : index
    %84 = vector.load %arg23[%c0_44, %c0_45] : memref<1x32xf32, #tpu.memory_space<vmem>>, vector<1x32xf32>
    %c0_46 = arith.constant 0 : index
    %c0_47 = arith.constant 0 : index
    %85 = vector.load %arg24[%c0_46, %c0_47] : memref<1x32xf32, #tpu.memory_space<vmem>>, vector<1x32xf32>
    %cst_48 = arith.constant dense<0.000000e+00> : vector<8xf32>
    %86 = vector.multi_reduction <add>, %83, %cst_48 [1] : vector<8x32xf32> to vector<8xf32>
    %87 = vector.shape_cast %86 : vector<8xf32> to vector<8x1xf32>
    %cst_49 = arith.constant 3.200000e+01 : f32
    %88 = vector.broadcast %cst_49 : f32 to vector<8x1xf32>
    %89 = arith.divf %87, %88 : vector<8x1xf32>
    %90 = vector.broadcast %89 : vector<8x1xf32> to vector<8x32xf32>
    %91 = arith.subf %83, %90 : vector<8x32xf32>
    %92 = arith.mulf %91, %91 : vector<8x32xf32>
    %cst_50 = arith.constant dense<0.000000e+00> : vector<8xf32>
    %93 = vector.multi_reduction <add>, %92, %cst_50 [1] : vector<8x32xf32> to vector<8xf32>
    %94 = vector.shape_cast %93 : vector<8xf32> to vector<8x1xf32>
    %cst_51 = arith.constant 3.200000e+01 : f32
    %95 = vector.broadcast %cst_51 : f32 to vector<8x1xf32>
    %96 = arith.divf %94, %95 : vector<8x1xf32>
    %97 = vector.broadcast %89 : vector<8x1xf32> to vector<8x32xf32>
    %98 = arith.subf %83, %97 : vector<8x32xf32>
    %cst_52 = arith.constant 9.99999974E-6 : f32
    %99 = vector.broadcast %cst_52 : f32 to vector<8x1xf32>
    %100 = arith.addf %96, %99 : vector<8x1xf32>
    %101 = math.rsqrt %100 : vector<8x1xf32>
    %102 = vector.broadcast %101 : vector<8x1xf32> to vector<8x32xf32>
    %103 = arith.mulf %98, %102 : vector<8x32xf32>
    %104 = vector.broadcast %84 : vector<1x32xf32> to vector<8x32xf32>
    %105 = arith.mulf %103, %104 : vector<8x32xf32>
    %106 = vector.broadcast %85 : vector<1x32xf32> to vector<8x32xf32>
    %107 = arith.addf %105, %106 : vector<8x32xf32>
    %108 = arith.truncf %107 : vector<8x32xf32> to vector<8x32xbf16>
    %109 = arith.truncf %5 : vector<10x24xf32> to vector<10x24xbf16>
    %c0_53 = arith.constant 0 : index
    %c0_54 = arith.constant 0 : index
    %110 = vector.load %arg15[%c0_53, %c0_54] : memref<32x32xbf16, #tpu.memory_space<vmem>>, vector<32x32xbf16>
    %cst_55 = arith.constant dense<0.000000e+00> : vector<8x32xf32>
    %111 = tpu.matmul %108, %110, %cst_55 {dimension_numbers = #tpu.dot_dimension_numbers<[1], [0], [0], [1], [0, 0, 1, 1], [], []>} : vector<8x32xbf16>, vector<32x32xbf16>, vector<8x32xf32> -> vector<8x32xf32>
    %c0_56 = arith.constant 0 : index
    %c0_57 = arith.constant 0 : index
    %112 = vector.load %arg16[%c0_56, %c0_57] : memref<1x32xf32, #tpu.memory_space<vmem>>, vector<1x32xf32>
    %113 = vector.broadcast %112 : vector<1x32xf32> to vector<8x32xf32>
    %114 = arith.addf %111, %113 : vector<8x32xf32>
    %c0_58 = arith.constant 0 : index
    %c0_59 = arith.constant 0 : index
    %115 = vector.load %arg17[%c0_58, %c0_59] : memref<24x32xbf16, #tpu.memory_space<vmem>>, vector<24x32xbf16>
    %cst_60 = arith.constant dense<0.000000e+00> : vector<10x32xf32>
    %116 = tpu.matmul %109, %115, %cst_60 {dimension_numbers = #tpu.dot_dimension_numbers<[1], [0], [0], [1], [0, 0, 1, 1], [], []>} : vector<10x24xbf16>, vector<24x32xbf16>, vector<10x32xf32> -> vector<10x32xf32>
    %c0_61 = arith.constant 0 : index
    %c0_62 = arith.constant 0 : index
    %117 = vector.load %arg18[%c0_61, %c0_62] : memref<1x32xf32, #tpu.memory_space<vmem>>, vector<1x32xf32>
    %118 = vector.broadcast %117 : vector<1x32xf32> to vector<10x32xf32>
    %119 = arith.addf %116, %118 : vector<10x32xf32>
    %c0_63 = arith.constant 0 : index
    %c0_64 = arith.constant 0 : index
    %120 = vector.load %arg19[%c0_63, %c0_64] : memref<24x32xbf16, #tpu.memory_space<vmem>>, vector<24x32xbf16>
    %cst_65 = arith.constant dense<0.000000e+00> : vector<10x32xf32>
    %121 = tpu.matmul %109, %120, %cst_65 {dimension_numbers = #tpu.dot_dimension_numbers<[1], [0], [0], [1], [0, 0, 1, 1], [], []>} : vector<10x24xbf16>, vector<24x32xbf16>, vector<10x32xf32> -> vector<10x32xf32>
    %c0_66 = arith.constant 0 : index
    %c0_67 = arith.constant 0 : index
    %122 = vector.load %arg20[%c0_66, %c0_67] : memref<1x32xf32, #tpu.memory_space<vmem>>, vector<1x32xf32>
    %123 = vector.broadcast %122 : vector<1x32xf32> to vector<10x32xf32>
    %124 = arith.addf %121, %123 : vector<10x32xf32>
    %c0_68 = arith.constant 0 : index
    %c0_69 = arith.constant 0 : index
    %125 = vector.load %arg21[%c0_68, %c0_69] : memref<32x32xbf16, #tpu.memory_space<vmem>>, vector<32x32xbf16>
    %c0_70 = arith.constant 0 : index
    %c0_71 = arith.constant 0 : index
    %126 = vector.load %arg22[%c0_70, %c0_71] : memref<1x32xf32, #tpu.memory_space<vmem>>, vector<1x32xf32>
    %127 = vector.shape_cast %114 : vector<8x32xf32> to vector<8x4x8xf32>
    %128 = tpu.transpose %127, [1, 0, 2] : vector<8x4x8xf32> -> vector<4x8x8xf32>
    %129 = arith.truncf %128 : vector<4x8x8xf32> to vector<4x8x8xbf16>
    %130 = vector.shape_cast %119 : vector<10x32xf32> to vector<10x4x8xf32>
    %131 = tpu.transpose %130, [1, 0, 2] : vector<10x4x8xf32> -> vector<4x10x8xf32>
    %132 = arith.truncf %131 : vector<4x10x8xf32> to vector<4x10x8xbf16>
    %133 = vector.shape_cast %124 : vector<10x32xf32> to vector<10x4x8xf32>
    %134 = tpu.transpose %133, [1, 0, 2] : vector<10x4x8xf32> -> vector<4x10x8xf32>
    %135 = arith.truncf %134 : vector<4x10x8xf32> to vector<4x10x8xbf16>
    "tpu.trace_start"() <{level = 10 : i32, message = "hqd,hkd->hqk"}> : () -> ()
    %cst_72 = arith.constant dense<0.000000e+00> : vector<4x8x10xf32>
    %136 = tpu.matmul %129, %132, %cst_72 {dimension_numbers = #tpu.dot_dimension_numbers<[2], [2], [1], [1], [0, 0, 0, 1, 1, 1], [0], [0]>} : vector<4x8x8xbf16>, vector<4x10x8xbf16>, vector<4x8x10xf32> -> vector<4x8x10xf32>
    "tpu.trace_stop"() : () -> ()
    %cst_73 = arith.constant 0.353553385 : f32
    %137 = vector.broadcast %cst_73 : f32 to vector<4x8x10xf32>
    %138 = arith.mulf %136, %137 : vector<4x8x10xf32>
    %139 = vector.shape_cast %7 : vector<1x10xf32> to vector<1x1x10xf32>
    %140 = vector.broadcast %139 : vector<1x1x10xf32> to vector<4x8x10xf32>
    %141 = arith.addf %138, %140 : vector<4x8x10xf32>
    %cst_74 = arith.constant dense<0xFF800000> : vector<4x8xf32>
    %142 = vector.multi_reduction <maximumf>, %141, %cst_74 [2] : vector<4x8x10xf32> to vector<4x8xf32>
    %143 = vector.shape_cast %142 : vector<4x8xf32> to vector<4x8x1xf32>
    %144 = vector.broadcast %143 : vector<4x8x1xf32> to vector<4x8x10xf32>
    %145 = arith.subf %141, %144 : vector<4x8x10xf32>
    %146 = math.exp %145 : vector<4x8x10xf32>
    %cst_75 = arith.constant dense<0.000000e+00> : vector<4x8xf32>
    %147 = vector.multi_reduction <add>, %146, %cst_75 [2] : vector<4x8x10xf32> to vector<4x8xf32>
    %148 = vector.shape_cast %147 : vector<4x8xf32> to vector<4x8x1xf32>
    %149 = tpu.reciprocal %148 {approx = true} : vector<4x8x1xf32> -> vector<4x8x1xf32>
    %150 = vector.broadcast %149 : vector<4x8x1xf32> to vector<4x8x10xf32>
    %151 = arith.mulf %146, %150 : vector<4x8x10xf32>
    %152 = arith.truncf %151 : vector<4x8x10xf32> to vector<4x8x10xbf16>
    "tpu.trace_start"() <{level = 10 : i32, message = "hqk,hkd->hqd"}> : () -> ()
    %cst_76 = arith.constant dense<0.000000e+00> : vector<4x8x8xf32>
    %153 = tpu.matmul %152, %135, %cst_76 {dimension_numbers = #tpu.dot_dimension_numbers<[2], [1], [1], [2], [0, 0, 0, 1, 1, 2], [0], [0]>} : vector<4x8x10xbf16>, vector<4x10x8xbf16>, vector<4x8x8xf32> -> vector<4x8x8xf32>
    "tpu.trace_stop"() : () -> ()
    %154 = tpu.transpose %153, [1, 0, 2] : vector<4x8x8xf32> -> vector<8x4x8xf32>
    %155 = vector.shape_cast %154 : vector<8x4x8xf32> to vector<8x32xf32>
    %156 = arith.truncf %155 : vector<8x32xf32> to vector<8x32xbf16>
    %cst_77 = arith.constant dense<0.000000e+00> : vector<8x32xf32>
    %157 = tpu.matmul %156, %125, %cst_77 {dimension_numbers = #tpu.dot_dimension_numbers<[1], [0], [0], [1], [0, 0, 1, 1], [], []>} : vector<8x32xbf16>, vector<32x32xbf16>, vector<8x32xf32> -> vector<8x32xf32>
    %158 = vector.broadcast %126 : vector<1x32xf32> to vector<8x32xf32>
    %159 = arith.addf %157, %158 : vector<8x32xf32>
    %160 = arith.addf %83, %159 : vector<8x32xf32>
    %c0_78 = arith.constant 0 : index
    %c0_79 = arith.constant 0 : index
    %161 = vector.load %arg29[%c0_78, %c0_79] : memref<1x32xf32, #tpu.memory_space<vmem>>, vector<1x32xf32>
    %c0_80 = arith.constant 0 : index
    %c0_81 = arith.constant 0 : index
    %162 = vector.load %arg30[%c0_80, %c0_81] : memref<1x32xf32, #tpu.memory_space<vmem>>, vector<1x32xf32>
    %cst_82 = arith.constant dense<0.000000e+00> : vector<8xf32>
    %163 = vector.multi_reduction <add>, %160, %cst_82 [1] : vector<8x32xf32> to vector<8xf32>
    %164 = vector.shape_cast %163 : vector<8xf32> to vector<8x1xf32>
    %cst_83 = arith.constant 3.200000e+01 : f32
    %165 = vector.broadcast %cst_83 : f32 to vector<8x1xf32>
    %166 = arith.divf %164, %165 : vector<8x1xf32>
    %167 = vector.broadcast %166 : vector<8x1xf32> to vector<8x32xf32>
    %168 = arith.subf %160, %167 : vector<8x32xf32>
    %169 = arith.mulf %168, %168 : vector<8x32xf32>
    %cst_84 = arith.constant dense<0.000000e+00> : vector<8xf32>
    %170 = vector.multi_reduction <add>, %169, %cst_84 [1] : vector<8x32xf32> to vector<8xf32>
    %171 = vector.shape_cast %170 : vector<8xf32> to vector<8x1xf32>
    %cst_85 = arith.constant 3.200000e+01 : f32
    %172 = vector.broadcast %cst_85 : f32 to vector<8x1xf32>
    %173 = arith.divf %171, %172 : vector<8x1xf32>
    %174 = vector.broadcast %166 : vector<8x1xf32> to vector<8x32xf32>
    %175 = arith.subf %160, %174 : vector<8x32xf32>
    %cst_86 = arith.constant 9.99999974E-6 : f32
    %176 = vector.broadcast %cst_86 : f32 to vector<8x1xf32>
    %177 = arith.addf %173, %176 : vector<8x1xf32>
    %178 = math.rsqrt %177 : vector<8x1xf32>
    %179 = vector.broadcast %178 : vector<8x1xf32> to vector<8x32xf32>
    %180 = arith.mulf %175, %179 : vector<8x32xf32>
    %181 = vector.broadcast %161 : vector<1x32xf32> to vector<8x32xf32>
    %182 = arith.mulf %180, %181 : vector<8x32xf32>
    %183 = vector.broadcast %162 : vector<1x32xf32> to vector<8x32xf32>
    %184 = arith.addf %182, %183 : vector<8x32xf32>
    %185 = arith.truncf %184 : vector<8x32xf32> to vector<8x32xbf16>
    %c0_87 = arith.constant 0 : index
    %c0_88 = arith.constant 0 : index
    %186 = vector.load %arg25[%c0_87, %c0_88] : memref<32x64xbf16, #tpu.memory_space<vmem>>, vector<32x64xbf16>
    %cst_89 = arith.constant dense<0.000000e+00> : vector<8x64xf32>
    %187 = tpu.matmul %185, %186, %cst_89 {dimension_numbers = #tpu.dot_dimension_numbers<[1], [0], [0], [1], [0, 0, 1, 1], [], []>} : vector<8x32xbf16>, vector<32x64xbf16>, vector<8x64xf32> -> vector<8x64xf32>
    %c0_90 = arith.constant 0 : index
    %c0_91 = arith.constant 0 : index
    %188 = vector.load %arg26[%c0_90, %c0_91] : memref<1x64xf32, #tpu.memory_space<vmem>>, vector<1x64xf32>
    %189 = vector.broadcast %188 : vector<1x64xf32> to vector<8x64xf32>
    %190 = arith.addf %187, %189 : vector<8x64xf32>
    %cst_92 = arith.constant 0.000000e+00 : f32
    %191 = vector.broadcast %cst_92 : f32 to vector<8x64xf32>
    %192 = arith.maximumf %190, %191 : vector<8x64xf32>
    %193 = arith.truncf %192 : vector<8x64xf32> to vector<8x64xbf16>
    %c0_93 = arith.constant 0 : index
    %c0_94 = arith.constant 0 : index
    %194 = vector.load %arg27[%c0_93, %c0_94] : memref<64x32xbf16, #tpu.memory_space<vmem>>, vector<64x32xbf16>
    %cst_95 = arith.constant dense<0.000000e+00> : vector<8x32xf32>
    %195 = tpu.matmul %193, %194, %cst_95 {dimension_numbers = #tpu.dot_dimension_numbers<[1], [0], [0], [1], [0, 0, 1, 1], [], []>} : vector<8x64xbf16>, vector<64x32xbf16>, vector<8x32xf32> -> vector<8x32xf32>
    %c0_96 = arith.constant 0 : index
    %c0_97 = arith.constant 0 : index
    %196 = vector.load %arg28[%c0_96, %c0_97] : memref<1x32xf32, #tpu.memory_space<vmem>>, vector<1x32xf32>
    %197 = vector.broadcast %196 : vector<1x32xf32> to vector<8x32xf32>
    %198 = arith.addf %195, %197 : vector<8x32xf32>
    %199 = arith.addf %160, %198 : vector<8x32xf32>
    %c0_98 = arith.constant 0 : index
    %c0_99 = arith.constant 0 : index
    %c0_100 = arith.constant 0 : index
    %200 = vector.load %arg31[%c0_98, %c0_99, %c0_100] : memref<1x8x32xf32, #tpu.memory_space<vmem>>, vector<1x8x32xf32>
    %201 = vector.shape_cast %200 : vector<1x8x32xf32> to vector<8x32xf32>
    %202 = vector.shape_cast %199 : vector<8x32xf32> to vector<1x8x32xf32>
    tpu.vector_store %arg31[%c0_98, %c0_99, %c0_100], %202 {strides = array<i32>} : memref<1x8x32xf32, #tpu.memory_space<vmem>>, vector<1x8x32xf32>,
    return
  }
  func.func @transform_0(%arg0: i32) -> (i32, i32, i32) {
    %c0_i32 = arith.constant 0 : i32
    %c0_i32_0 = arith.constant 0 : i32
    %c0_i32_1 = arith.constant 0 : i32
    return %arg0, %c0_i32, %c0_i32_0 : i32, i32, i32
  }
  func.func @transform_1(%arg0: i32) -> (i32, i32, i32) {
    %c0_i32 = arith.constant 0 : i32
    %c0_i32_0 = arith.constant 0 : i32
    %c0_i32_1 = arith.constant 0 : i32
    return %arg0, %c0_i32, %c0_i32_0 : i32, i32, i32
  }
  func.func @transform_2(%arg0: i32) -> (i32, i32, i32) {
    %c0_i32 = arith.constant 0 : i32
    %c0_i32_0 = arith.constant 0 : i32
    %c0_i32_1 = arith.constant 0 : i32
    return %arg0, %c0_i32, %c0_i32_0 : i32, i32, i32
  }
  func.func @transform_3(%arg0: i32) -> (i32, i32, i32) {
    %c0_i32 = arith.constant 0 : i32
    %c0_i32_0 = arith.constant 0 : i32
    %c0_i32_1 = arith.constant 0 : i32
    return %arg0, %c0_i32, %c0_i32_0 : i32, i32, i32
  }
  func.func @transform_4(%arg0: i32) -> (i32, i32) {
    %c0_i32 = arith.constant 0 : i32
    %c0_i32_0 = arith.constant 0 : i32
    %c0_i32_1 = arith.constant 0 : i32
    return %c0_i32, %c0_i32_0 : i32, i32
  }
  func.func @transform_5(%arg0: i32) -> (i32, i32) {
    %c0_i32 = arith.constant 0 : i32
    %c0_i32_0 = arith.constant 0 : i32
    %c0_i32_1 = arith.constant 0 : i32
    return %c0_i32, %c0_i32_0 : i32, i32
  }
  func.func @transform_6(%arg0: i32) -> (i32, i32) {
    %c0_i32 = arith.constant 0 : i32
    %c0_i32_0 = arith.constant 0 : i32
    %c0_i32_1 = arith.constant 0 : i32
    return %c0_i32, %c0_i32_0 : i32, i32
  }
  func.func @transform_7(%arg0: i32) -> (i32, i32) {
    %c0_i32 = arith.constant 0 : i32
    %c0_i32_0 = arith.constant 0 : i32
    %c0_i32_1 = arith.constant 0 : i32
    return %c0_i32, %c0_i32_0 : i32, i32
  }
  func.func @transform_8(%arg0: i32) -> (i32, i32) {
    %c0_i32 = arith.constant 0 : i32
    %c0_i32_0 = arith.constant 0 : i32
    %c0_i32_1 = arith.constant 0 : i32
    return %c0_i32, %c0_i32_0 : i32, i32
  }
  func.func @transform_9(%arg0: i32) -> (i32, i32) {
    %c0_i32 = arith.constant 0 : i32
    %c0_i32_0 = arith.constant 0 : i32
    %c0_i32_1 = arith.constant 0 : i32
    return %c0_i32, %c0_i32_0 : i32, i32
  }
  func.func @transform_10(%arg0: i32) -> (i32, i32) {
    %c0_i32 = arith.constant 0 : i32
    %c0_i32_0 = arith.constant 0 : i32
    %c0_i32_1 = arith.constant 0 : i32
    return %c0_i32, %c0_i32_0 : i32, i32
  }
  func.func @transform_11(%arg0: i32) -> (i32, i32) {
    %c0_i32 = arith.constant 0 : i32
    %c0_i32_0 = arith.constant 0 : i32
    %c0_i32_1 = arith.constant 0 : i32
    return %c0_i32, %c0_i32_0 : i32, i32
  }
  func.func @transform_12(%arg0: i32) -> (i32, i32) {
    %c0_i32 = arith.constant 0 : i32
    %c0_i32_0 = arith.constant 0 : i32
    %c0_i32_1 = arith.constant 0 : i32
    return %c0_i32, %c0_i32_0 : i32, i32
  }
  func.func @transform_13(%arg0: i32) -> (i32, i32) {
    %c0_i32 = arith.constant 0 : i32
    %c0_i32_0 = arith.constant 0 : i32
    %c0_i32_1 = arith.constant 0 : i32
    return %c0_i32, %c0_i32_0 : i32, i32
  }
  func.func @transform_14(%arg0: i32) -> (i32, i32) {
    %c0_i32 = arith.constant 0 : i32
    %c0_i32_0 = arith.constant 0 : i32
    %c0_i32_1 = arith.constant 0 : i32
    return %c0_i32, %c0_i32_0 : i32, i32
  }
  func.func @transform_15(%arg0: i32) -> (i32, i32) {
    %c0_i32 = arith.constant 0 : i32
    %c0_i32_0 = arith.constant 0 : i32
    %c0_i32_1 = arith.constant 0 : i32
    return %c0_i32, %c0_i32_0 : i32, i32
  }
  func.func @transform_16(%arg0: i32) -> (i32, i32) {
    %c0_i32 = arith.constant 0 : i32
    %c0_i32_0 = arith.constant 0 : i32
    %c0_i32_1 = arith.constant 0 : i32
    return %c0_i32, %c0_i32_0 : i32, i32
  }
  func.func @transform_17(%arg0: i32) -> (i32, i32) {
    %c0_i32 = arith.constant 0 : i32
    %c0_i32_0 = arith.constant 0 : i32
    %c0_i32_1 = arith.constant 0 : i32
    return %c0_i32, %c0_i32_0 : i32, i32
  }
  func.func @transform_18(%arg0: i32) -> (i32, i32) {
    %c0_i32 = arith.constant 0 : i32
    %c0_i32_0 = arith.constant 0 : i32
    %c0_i32_1 = arith.constant 0 : i32
    return %c0_i32, %c0_i32_0 : i32, i32
  }
  func.func @transform_19(%arg0: i32) -> (i32, i32) {
    %c0_i32 = arith.constant 0 : i32
    %c0_i32_0 = arith.constant 0 : i32
    %c0_i32_1 = arith.constant 0 : i32
    return %c0_i32, %c0_i32_0 : i32, i32
  }
  func.func @transform_20(%arg0: i32) -> (i32, i32) {
    %c0_i32 = arith.constant 0 : i32
    %c0_i32_0 = arith.constant 0 : i32
    %c0_i32_1 = arith.constant 0 : i32
    return %c0_i32, %c0_i32_0 : i32, i32
  }
  func.func @transform_21(%arg0: i32) -> (i32, i32) {
    %c0_i32 = arith.constant 0 : i32
    %c0_i32_0 = arith.constant 0 : i32
    %c0_i32_1 = arith.constant 0 : i32
    return %c0_i32, %c0_i32_0 : i32, i32
  }
  func.func @transform_22(%arg0: i32) -> (i32, i32) {
    %c0_i32 = arith.constant 0 : i32
    %c0_i32_0 = arith.constant 0 : i32
    %c0_i32_1 = arith.constant 0 : i32
    return %c0_i32, %c0_i32_0 : i32, i32
  }
  func.func @transform_23(%arg0: i32) -> (i32, i32) {
    %c0_i32 = arith.constant 0 : i32
    %c0_i32_0 = arith.constant 0 : i32
    %c0_i32_1 = arith.constant 0 : i32
    return %c0_i32, %c0_i32_0 : i32, i32
  }
  func.func @transform_24(%arg0: i32) -> (i32, i32) {
    %c0_i32 = arith.constant 0 : i32
    %c0_i32_0 = arith.constant 0 : i32
    %c0_i32_1 = arith.constant 0 : i32
    return %c0_i32, %c0_i32_0 : i32, i32
  }
  func.func @transform_25(%arg0: i32) -> (i32, i32) {
    %c0_i32 = arith.constant 0 : i32
    %c0_i32_0 = arith.constant 0 : i32
    %c0_i32_1 = arith.constant 0 : i32
    return %c0_i32, %c0_i32_0 : i32, i32
  }
  func.func @transform_26(%arg0: i32) -> (i32, i32) {
    %c0_i32 = arith.constant 0 : i32
    %c0_i32_0 = arith.constant 0 : i32
    %c0_i32_1 = arith.constant 0 : i32
    return %c0_i32, %c0_i32_0 : i32, i32
  }
  func.func @transform_27(%arg0: i32) -> (i32, i32) {
    %c0_i32 = arith.constant 0 : i32
    %c0_i32_0 = arith.constant 0 : i32
    %c0_i32_1 = arith.constant 0 : i32
    return %c0_i32, %c0_i32_0 : i32, i32
  }
  func.func @transform_28(%arg0: i32) -> (i32, i32) {
    %c0_i32 = arith.constant 0 : i32
    %c0_i32_0 = arith.constant 0 : i32
    %c0_i32_1 = arith.constant 0 : i32
    return %c0_i32, %c0_i32_0 : i32, i32
  }
  func.func @transform_29(%arg0: i32) -> (i32, i32) {
    %c0_i32 = arith.constant 0 : i32
    %c0_i32_0 = arith.constant 0 : i32
    %c0_i32_1 = arith.constant 0 : i32
    return %c0_i32, %c0_i32_0 : i32, i32
  }
  func.func @transform_30(%arg0: i32) -> (i32, i32, i32) {
    %c0_i32 = arith.constant 0 : i32
    %c0_i32_0 = arith.constant 0 : i32
    %c0_i32_1 = arith.constant 0 : i32
    return %arg0, %c0_i32, %c0_i32_0 : i32, i32, i32
  }
}

</mosaic_0001>

<llo_original>
// kernel: tpu_custom_call.1
$region0: #{tpu_custom_call.1}
  #allocation0 [shape = 'u32[]', space=smem, size = 0x4, offset = 0x4, fixed_abs, tag = 'smem constant byte address 0x4 - core index']
  #allocation1 [shape = 'u32[144,128]{1,0:T(1,128)}', space=vmem, size = 0x12000, scoped, tag = 'internal scratch']
  %s0 = inlined_call_operand.smem [shape: u32[31], index: -1, kind: input, shape index: {}]
  %s1 = sld [smem:[%s0]]
  %s2 = scalar_lea.smem %s0, 1
  %s3 = sld [smem:[%s2]]
  %s4 = scalar_lea.smem %s0, 2
  %s5 = sld [smem:[%s4]]
  %s6 = scalar_lea.smem %s0, 3
  %s7 = sld [smem:[%s6]]
  %s8 = scalar_lea.smem %s0, 4
  %s9 = sld [smem:[%s8]]
  %s10 = scalar_lea.smem %s0, 5
  %s11 = sld [smem:[%s10]]
  %s12 = scalar_lea.smem %s0, 6
  %s13 = sld [smem:[%s12]]
  %s14 = scalar_lea.smem %s0, 7
  %s15 = sld [smem:[%s14]]
  %s16 = scalar_lea.smem %s0, 8
  %s17 = sld [smem:[%s16]]
  %s18 = scalar_lea.smem %s0, 9
  %s19 = sld [smem:[%s18]]
  %s20 = scalar_lea.smem %s0, 10
  %s21 = sld [smem:[%s20]]
  %s22 = scalar_lea.smem %s0, 11
  %s23 = sld [smem:[%s22]]
  %s24 = scalar_lea.smem %s0, 12
  %s25 = sld [smem:[%s24]]
  %s26 = scalar_lea.smem %s0, 13
  %s27 = sld [smem:[%s26]]
  %s28 = scalar_lea.smem %s0, 14
  %s29 = sld [smem:[%s28]]
  %s30 = scalar_lea.smem %s0, 15
  %s31 = sld [smem:[%s30]]
  %s32 = scalar_lea.smem %s0, 16
  %s33 = sld [smem:[%s32]]
  %s34 = scalar_lea.smem %s0, 17
  %s35 = sld [smem:[%s34]]
  %s36 = scalar_lea.smem %s0, 18
  %s37 = sld [smem:[%s36]]
  %s38 = scalar_lea.smem %s0, 19
  %s39 = sld [smem:[%s38]]
  %s40 = scalar_lea.smem %s0, 20
  %s41 = sld [smem:[%s40]]
  %s42 = scalar_lea.smem %s0, 21
  %s43 = sld [smem:[%s42]]
  %s44 = scalar_lea.smem %s0, 22
  %s45 = sld [smem:[%s44]]
  %s46 = scalar_lea.smem %s0, 23
  %s47 = sld [smem:[%s46]]
  %s48 = scalar_lea.smem %s0, 24
  %s49 = sld [smem:[%s48]]
  %s50 = scalar_lea.smem %s0, 25
  %s51 = sld [smem:[%s50]]
  %s52 = scalar_lea.smem %s0, 26
  %s53 = sld [smem:[%s52]]
  %s54 = scalar_lea.smem %s0, 27
  %s55 = sld [smem:[%s54]]
  %s56 = scalar_lea.smem %s0, 28
  %s57 = sld [smem:[%s56]]
  %s58 = scalar_lea.smem %s0, 29
  %s59 = sld [smem:[%s58]]
  %s60 = scalar_lea.smem %s0, 30
  %s61 = sld [smem:[%s60]]
  %s62 = sld [smem:[#allocation0]]
  $region193: #{tpu_custom_call.1} parent=0
    _
  %s64 = ssub.s32 1, %s62
  %s65 = scalar_select 0, %s64, %s62
  $region1: #{tpu_custom_call.1} parent=0
    #allocation2 [shape = 'u8[1024]{0}', space=vmem, size = 0x400, scoped, tag = 'input window, operand 3']
    #allocation3 [shape = 's32[2]{0}', space=sflag, size = 0x8, scoped, tag = 'scoped memory for tpu_custom_call.1']
    #allocation4 [shape = 's32[2]{0}', space=sflag, size = 0x8, scoped, tag = 'scoped memory for tpu_custom_call.1']
    #allocation5 [shape = 'u8[512]{0}', space=vmem, size = 0x400, scoped, tag = 'input window, operand 5, single buffered']
    #allocation6 [shape = 's32[1]{0}', space=sflag, size = 0x4, scoped, tag = 'scoped memory for tpu_custom_call.1']
    #allocation7 [shape = 'u8[512]{0}', space=vmem, size = 0x400, scoped, tag = 'input window, operand 7, single buffered']
    #allocation8 [shape = 'u8[512]{0}', space=vmem, size = 0x400, scoped, tag = 'input window, operand 9, single buffered']
    #allocation9 [shape = 's32[1]{0}', space=sflag, size = 0x4, scoped, tag = 'scoped memory for tpu_custom_call.1']
    #allocation10 [shape = 'u8[512]{0}', space=vmem, size = 0x400, scoped, tag = 'input window, operand 11, single buffered']
    #allocation11 [shape = 'u8[512]{0}', space=vmem, size = 0x400, scoped, tag = 'input window, operand 12, single buffered']
    #allocation12 [shape = 's32[1]{0}', space=sflag, size = 0x4, scoped, tag = 'scoped memory for tpu_custom_call.1']
    #allocation13 [shape = 'u8[512]{0}', space=vmem, size = 0x400, scoped, tag = 'input window, operand 13, single buffered']
    #allocation14 [shape = 'u8[512]{0}', space=vmem, size = 0x400, scoped, tag = 'input window, operand 15, single buffered']
    #allocation15 [shape = 's32[1]{0}', space=sflag, size = 0x4, scoped, tag = 'scoped memory for tpu_custom_call.1']
    #allocation16 [shape = 'u8[6144]{0}', space=vmem, size = 0x1800, scoped, tag = 'input window, operand 16, single buffered']
    #allocation17 [shape = 'u8[6144]{0}', space=vmem, size = 0x1800, scoped, tag = 'input window, operand 18, single buffered']
    #allocation18 [shape = 's32[1]{0}', space=sflag, size = 0x4, scoped, tag = 'scoped memory for tpu_custom_call.1']
    #allocation19 [shape = 'u8[8192]{0}', space=vmem, size = 0x2000, scoped, tag = 'output window, operand 0']
    %66 = vsyncpa [#allocation3], 0
    %s67 = scalar_lea.sflag [#allocation3], 1
    %68 = vsyncpa %s67, 0
    %69 = vsyncpa [#allocation6], 0
    %70 = vsyncpa [#allocation9], 0
    %71 = vsyncpa [#allocation12], 0
    %72 = vsyncpa [#allocation15], 0
    %73 = vsyncpa [#allocation18], 0
    %74 = vsyncpa [#allocation4], 0
    %s75 = scalar_lea.sflag [#allocation4], 1
    %76 = vsyncpa %s75, 0
    loop: start=0, step=1, limit=4
    $region2: #{tpu_custom_call.1} parent=1 // loop_pre_header
      _
    $region3: #{tpu_custom_call.1} parent=1 // loop_header
      %s78 = sphi 0, %s82
      %p79 = scmp.ge.s32.totalorder %s78, 4
      %s88 = sphi 0, %s90
      %s91 = sphi 0, %s88
      %s92 = sphi 0, %s91
      %s108 = sphi 0, %s92
      %s114 = sphi 0, %s116
      %s117 = sphi 0, %s114
      %s118 = sphi 0, %s117
      %s134 = sphi 0, %s118
      %s140 = sphi 0, %s142
      %s143 = sphi 0, %s140
      %s144 = sphi 0, %s143
      %s160 = sphi 0, %s144
      %s166 = sphi 0, %s168
      %s169 = sphi 0, %s166
      %s170 = sphi 0, %s169
      %s186 = sphi 0, %s170
      %s190 = sphi 0, %s190
      %s192 = sphi 0, %s190
      %s193 = sphi 0, %s192
      %s207 = sphi 0, %s193
      %s211 = sphi 0, %s211
      %s213 = sphi 0, %s211
      %s214 = sphi 0, %s213
      %s228 = sphi 0, %s214
      %s232 = sphi 0, %s232
      %s234 = sphi 0, %s232
      %s235 = sphi 0, %s234
      %s249 = sphi 0, %s235
      %s253 = sphi 0, %s253
      %s255 = sphi 0, %s253
      %s256 = sphi 0, %s255
      %s270 = sphi 0, %s256
      %s274 = sphi 0, %s274
      %s276 = sphi 0, %s274
      %s277 = sphi 0, %s276
      %s291 = sphi 0, %s277
      %s295 = sphi 0, %s295
      %s297 = sphi 0, %s295
      %s298 = sphi 0, %s297
      %s312 = sphi 0, %s298
      %s316 = sphi 0, %s316
      %s318 = sphi 0, %s316
      %s319 = sphi 0, %s318
      %s333 = sphi 0, %s319
      %s337 = sphi 0, %s337
      %s339 = sphi 0, %s337
      %s340 = sphi 0, %s339
      %s354 = sphi 0, %s340
      %s358 = sphi 0, %s358
      %s360 = sphi 0, %s358
      %s361 = sphi 0, %s360
      %s375 = sphi 0, %s361
      %s379 = sphi 0, %s379
      %s381 = sphi 0, %s379
      %s382 = sphi 0, %s381
      %s396 = sphi 0, %s382
      %s400 = sphi 0, %s400
      %s402 = sphi 0, %s400
      %s403 = sphi 0, %s402
      %s417 = sphi 0, %s403
      %s421 = sphi 0, %s421
      %s423 = sphi 0, %s421
      %s424 = sphi 0, %s423
      %s438 = sphi 0, %s424
      %s442 = sphi 0, %s442
      %s444 = sphi 0, %s442
      %s445 = sphi 0, %s444
      %s459 = sphi 0, %s445
      %s463 = sphi 0, %s463
      %s465 = sphi 0, %s463
      %s466 = sphi 0, %s465
      %s480 = sphi 0, %s466
      %s484 = sphi 0, %s484
      %s486 = sphi 0, %s484
      %s487 = sphi 0, %s486
      %s501 = sphi 0, %s487
      %s505 = sphi 0, %s505
      %s507 = sphi 0, %s505
      %s508 = sphi 0, %s507
      %s522 = sphi 0, %s508
      %s526 = sphi 0, %s526
      %s528 = sphi 0, %s526
      %s529 = sphi 0, %s528
      %s543 = sphi 0, %s529
      %s547 = sphi 0, %s547
      %s549 = sphi 0, %s547
      %s550 = sphi 0, %s549
      %s564 = sphi 0, %s550
      %s568 = sphi 0, %s568
      %s570 = sphi 0, %s568
      %s571 = sphi 0, %s570
      %s585 = sphi 0, %s571
      %s589 = sphi 0, %s589
      %s591 = sphi 0, %s589
      %s592 = sphi 0, %s591
      %s606 = sphi 0, %s592
      %s610 = sphi 0, %s610
      %s612 = sphi 0, %s610
      %s613 = sphi 0, %s612
      %s627 = sphi 0, %s613
      %s631 = sphi 0, %s631
      %s633 = sphi 0, %s631
      %s634 = sphi 0, %s633
      %s648 = sphi 0, %s634
      %s652 = sphi 0, %s652
      %s654 = sphi 0, %s652
      %s655 = sphi 0, %s654
      %s669 = sphi 0, %s655
      %s673 = sphi 0, %s673
      %s675 = sphi 0, %s673
      %s676 = sphi 0, %s675
      %s690 = sphi 0, %s676
      %s694 = sphi 0, %s694
      %s696 = sphi 0, %s694
      %s697 = sphi 0, %s696
      %s711 = sphi 0, %s697
      %s715 = sphi 0, %s715
      %s717 = sphi 0, %s715
      %s718 = sphi 0, %s717
      %s732 = sphi 0, %s718
      %s738 = sphi 0, %s740
      %s741 = sphi 0, %s738
      %s742 = sphi 0, %s741
      %s758 = sphi 0, %s742
    $region4: #{tpu_custom_call.1} parent=1 // loop_header_branch
      %81 = sbr.rel (%p79) target = $region8
    $region5: #{tpu_custom_call.1} parent=1 // loop_body
      %s83 = ssub.s32 %s78, 1
      %s84 = ssub.s32 %s78, 2
      %s85 = sadd.s32 %s78, 1
      %s86 = ssub.s32 %s78, %s85
      %p87 = scmp.eq.s32.totalorder %s86, 0
      %s89 = sadd.s32 %s88, 1
      %s90 = scalar_select %p87, %s88, %s89
      %p93 = pneg %p87
      %p94 = scmp.eq.s32.totalorder %s78, 1
      %p95 = por %p93, %p94
      %p96 = scmp.ne.s32.totalorder %s88, %s91
      %p97 = scmp.eq.s32.totalorder %s78, 0
      %p98 = por %p96, %p97
      %p99 = scmp.ne.s32.totalorder %s88, %s91
      %p100 = scmp.eq.s32.totalorder %s83, 1
      %p101 = por %p99, %p100
      %p102 = scmp.ne.s32.totalorder %s91, %s92
      %p103 = scmp.eq.s32.totalorder %s83, 0
      %p104 = por %p102, %p103
      %p105 = scmp.ne.s32.totalorder %s91, %s92
      %p106 = scmp.eq.s32.totalorder %s84, 1
      %p107 = por %p105, %p106
      %p109 = scmp.ne.s32.totalorder %s92, %s108
      %p110 = scmp.eq.s32.totalorder %s84, 0
      %p111 = por %p109, %p110
      %s112 = ssub.s32 %s78, %s85
      %p113 = scmp.eq.s32.totalorder %s112, 0
      %s115 = sadd.s32 %s114, 1
      %s116 = scalar_select %p113, %s114, %s115
      %p119 = pneg %p113
      %p120 = scmp.eq.s32.totalorder %s78, 1
      %p121 = por %p119, %p120
      %p122 = scmp.ne.s32.totalorder %s114, %s117
      %p123 = scmp.eq.s32.totalorder %s78, 0
      %p124 = por %p122, %p123
      %p125 = scmp.ne.s32.totalorder %s114, %s117
      %p126 = scmp.eq.s32.totalorder %s83, 1
      %p127 = por %p125, %p126
      %p128 = scmp.ne.s32.totalorder %s117, %s118
      %p129 = scmp.eq.s32.totalorder %s83, 0
      %p130 = por %p128, %p129
      %p131 = scmp.ne.s32.totalorder %s117, %s118
      %p132 = scmp.eq.s32.totalorder %s84, 1
      %p133 = por %p131, %p132
      %p135 = scmp.ne.s32.totalorder %s118, %s134
      %p136 = scmp.eq.s32.totalorder %s84, 0
      %p137 = por %p135, %p136
      %s138 = ssub.s32 %s78, %s85
      %p139 = scmp.eq.s32.totalorder %s138, 0
      %s141 = sadd.s32 %s140, 1
      %s142 = scalar_select %p139, %s140, %s141
      %p145 = pneg %p139
      %p146 = scmp.eq.s32.totalorder %s78, 1
      %p147 = por %p145, %p146
      %p148 = scmp.ne.s32.totalorder %s140, %s143
      %p149 = scmp.eq.s32.totalorder %s78, 0
      %p150 = por %p148, %p149
      %p151 = scmp.ne.s32.totalorder %s140, %s143
      %p152 = scmp.eq.s32.totalorder %s83, 1
      %p153 = por %p151, %p152
      %p154 = scmp.ne.s32.totalorder %s143, %s144
      %p155 = scmp.eq.s32.totalorder %s83, 0
      %p156 = por %p154, %p155
      %p157 = scmp.ne.s32.totalorder %s143, %s144
      %p158 = scmp.eq.s32.totalorder %s84, 1
      %p159 = por %p157, %p158
      %p161 = scmp.ne.s32.totalorder %s144, %s160
      %p162 = scmp.eq.s32.totalorder %s84, 0
      %p163 = por %p161, %p162
      %s164 = ssub.s32 %s78, %s85
      %p165 = scmp.eq.s32.totalorder %s164, 0
      %s167 = sadd.s32 %s166, 1
      %s168 = scalar_select %p165, %s166, %s167
      %p171 = pneg %p165
      %p172 = scmp.eq.s32.totalorder %s78, 1
      %p173 = por %p171, %p172
      %p174 = scmp.ne.s32.totalorder %s166, %s169
      %p175 = scmp.eq.s32.totalorder %s78, 0
      %p176 = por %p174, %p175
      %p177 = scmp.ne.s32.totalorder %s166, %s169
      %p178 = scmp.eq.s32.totalorder %s83, 1
      %p179 = por %p177, %p178
      %p180 = scmp.ne.s32.totalorder %s169, %s170
      %p181 = scmp.eq.s32.totalorder %s83, 0
      %p182 = por %p180, %p181
      %p183 = scmp.ne.s32.totalorder %s169, %s170
      %p184 = scmp.eq.s32.totalorder %s84, 1
      %p185 = por %p183, %p184
      %p187 = scmp.ne.s32.totalorder %s170, %s186
      %p188 = scmp.eq.s32.totalorder %s84, 0
      %p189 = por %p187, %p188
      %s191 = sadd.s32 %s190, 1
      %p194 = scmp.eq.s32.totalorder %s78, 1
      %p195 = scmp.ne.s32.totalorder %s190, %s192
      %p196 = scmp.eq.s32.totalorder %s78, 0
      %p197 = por %p195, %p196
      %p198 = scmp.ne.s32.totalorder %s190, %s192
      %p199 = scmp.eq.s32.totalorder %s83, 1
      %p200 = por %p198, %p199
      %p201 = scmp.ne.s32.totalorder %s192, %s193
      %p202 = scmp.eq.s32.totalorder %s83, 0
      %p203 = por %p201, %p202
      %p204 = scmp.ne.s32.totalorder %s192, %s193
      %p205 = scmp.eq.s32.totalorder %s84, 1
      %p206 = por %p204, %p205
      %p208 = scmp.ne.s32.totalorder %s193, %s207
      %p209 = scmp.eq.s32.totalorder %s84, 0
      %p210 = por %p208, %p209
      %s212 = sadd.s32 %s211, 1
      %p215 = scmp.eq.s32.totalorder %s78, 1
      %p216 = scmp.ne.s32.totalorder %s211, %s213
      %p217 = scmp.eq.s32.totalorder %s78, 0
      %p218 = por %p216, %p217
      %p219 = scmp.ne.s32.totalorder %s211, %s213
      %p220 = scmp.eq.s32.totalorder %s83, 1
      %p221 = por %p219, %p220
      %p222 = scmp.ne.s32.totalorder %s213, %s214
      %p223 = scmp.eq.s32.totalorder %s83, 0
      %p224 = por %p222, %p223
      %p225 = scmp.ne.s32.totalorder %s213, %s214
      %p226 = scmp.eq.s32.totalorder %s84, 1
      %p227 = por %p225, %p226
      %p229 = scmp.ne.s32.totalorder %s214, %s228
      %p230 = scmp.eq.s32.totalorder %s84, 0
      %p231 = por %p229, %p230
      %s233 = sadd.s32 %s232, 1
      %p236 = scmp.eq.s32.totalorder %s78, 1
      %p237 = scmp.ne.s32.totalorder %s232, %s234
      %p238 = scmp.eq.s32.totalorder %s78, 0
      %p239 = por %p237, %p238
      %p240 = scmp.ne.s32.totalorder %s232, %s234
      %p241 = scmp.eq.s32.totalorder %s83, 1
      %p242 = por %p240, %p241
      %p243 = scmp.ne.s32.totalorder %s234, %s235
      %p244 = scmp.eq.s32.totalorder %s83, 0
      %p245 = por %p243, %p244
      %p246 = scmp.ne.s32.totalorder %s234, %s235
      %p247 = scmp.eq.s32.totalorder %s84, 1
      %p248 = por %p246, %p247
      %p250 = scmp.ne.s32.totalorder %s235, %s249
      %p251 = scmp.eq.s32.totalorder %s84, 0
      %p252 = por %p250, %p251
      %s254 = sadd.s32 %s253, 1
      %p257 = scmp.eq.s32.totalorder %s78, 1
      %p258 = scmp.ne.s32.totalorder %s253, %s255
      %p259 = scmp.eq.s32.totalorder %s78, 0
      %p260 = por %p258, %p259
      %p261 = scmp.ne.s32.totalorder %s253, %s255
      %p262 = scmp.eq.s32.totalorder %s83, 1
      %p263 = por %p261, %p262
      %p264 = scmp.ne.s32.totalorder %s255, %s256
      %p265 = scmp.eq.s32.totalorder %s83, 0
      %p266 = por %p264, %p265
      %p267 = scmp.ne.s32.totalorder %s255, %s256
      %p268 = scmp.eq.s32.totalorder %s84, 1
      %p269 = por %p267, %p268
      %p271 = scmp.ne.s32.totalorder %s256, %s270
      %p272 = scmp.eq.s32.totalorder %s84, 0
      %p273 = por %p271, %p272
      %s275 = sadd.s32 %s274, 1
      %p278 = scmp.eq.s32.totalorder %s78, 1
      %p279 = scmp.ne.s32.totalorder %s274, %s276
      %p280 = scmp.eq.s32.totalorder %s78, 0
      %p281 = por %p279, %p280
      %p282 = scmp.ne.s32.totalorder %s274, %s276
      %p283 = scmp.eq.s32.totalorder %s83, 1
      %p284 = por %p282, %p283
      %p285 = scmp.ne.s32.totalorder %s276, %s277
      %p286 = scmp.eq.s32.totalorder %s83, 0
      %p287 = por %p285, %p286
      %p288 = scmp.ne.s32.totalorder %s276, %s277
      %p289 = scmp.eq.s32.totalorder %s84, 1
      %p290 = por %p288, %p289
      %p292 = scmp.ne.s32.totalorder %s277, %s291
      %p293 = scmp.eq.s32.totalorder %s84, 0
      %p294 = por %p292, %p293
      %s296 = sadd.s32 %s295, 1
      %p299 = scmp.eq.s32.totalorder %s78, 1
      %p300 = scmp.ne.s32.totalorder %s295, %s297
      %p301 = scmp.eq.s32.totalorder %s78, 0
      %p302 = por %p300, %p301
      %p303 = scmp.ne.s32.totalorder %s295, %s297
      %p304 = scmp.eq.s32.totalorder %s83, 1
      %p305 = por %p303, %p304
      %p306 = scmp.ne.s32.totalorder %s297, %s298
      %p307 = scmp.eq.s32.totalorder %s83, 0
      %p308 = por %p306, %p307
      %p309 = scmp.ne.s32.totalorder %s297, %s298
      %p310 = scmp.eq.s32.totalorder %s84, 1
      %p311 = por %p309, %p310
      %p313 = scmp.ne.s32.totalorder %s298, %s312
      %p314 = scmp.eq.s32.totalorder %s84, 0
      %p315 = por %p313, %p314
      %s317 = sadd.s32 %s316, 1
      %p320 = scmp.eq.s32.totalorder %s78, 1
      %p321 = scmp.ne.s32.totalorder %s316, %s318
      %p322 = scmp.eq.s32.totalorder %s78, 0
      %p323 = por %p321, %p322
      %p324 = scmp.ne.s32.totalorder %s316, %s318
      %p325 = scmp.eq.s32.totalorder %s83, 1
      %p326 = por %p324, %p325
      %p327 = scmp.ne.s32.totalorder %s318, %s319
      %p328 = scmp.eq.s32.totalorder %s83, 0
      %p329 = por %p327, %p328
      %p330 = scmp.ne.s32.totalorder %s318, %s319
      %p331 = scmp.eq.s32.totalorder %s84, 1
      %p332 = por %p330, %p331
      %p334 = scmp.ne.s32.totalorder %s319, %s333
      %p335 = scmp.eq.s32.totalorder %s84, 0
      %p336 = por %p334, %p335
      %s338 = sadd.s32 %s337, 1
      %p341 = scmp.eq.s32.totalorder %s78, 1
      %p342 = scmp.ne.s32.totalorder %s337, %s339
      %p343 = scmp.eq.s32.totalorder %s78, 0
      %p344 = por %p342, %p343
      %p345 = scmp.ne.s32.totalorder %s337, %s339
      %p346 = scmp.eq.s32.totalorder %s83, 1
      %p347 = por %p345, %p346
      %p348 = scmp.ne.s32.totalorder %s339, %s340
      %p349 = scmp.eq.s32.totalorder %s83, 0
      %p350 = por %p348, %p349
      %p351 = scmp.ne.s32.totalorder %s339, %s340
      %p352 = scmp.eq.s32.totalorder %s84, 1
      %p353 = por %p351, %p352
      %p355 = scmp.ne.s32.totalorder %s340, %s354
      %p356 = scmp.eq.s32.totalorder %s84, 0
      %p357 = por %p355, %p356
      %s359 = sadd.s32 %s358, 1
      %p362 = scmp.eq.s32.totalorder %s78, 1
      %p363 = scmp.ne.s32.totalorder %s358, %s360
      %p364 = scmp.eq.s32.totalorder %s78, 0
      %p365 = por %p363, %p364
      %p366 = scmp.ne.s32.totalorder %s358, %s360
      %p367 = scmp.eq.s32.totalorder %s83, 1
      %p368 = por %p366, %p367
      %p369 = scmp.ne.s32.totalorder %s360, %s361
      %p370 = scmp.eq.s32.totalorder %s83, 0
      %p371 = por %p369, %p370
      %p372 = scmp.ne.s32.totalorder %s360, %s361
      %p373 = scmp.eq.s32.totalorder %s84, 1
      %p374 = por %p372, %p373
      %p376 = scmp.ne.s32.totalorder %s361, %s375
      %p377 = scmp.eq.s32.totalorder %s84, 0
      %p378 = por %p376, %p377
      %s380 = sadd.s32 %s379, 1
      %p383 = scmp.eq.s32.totalorder %s78, 1
      %p384 = scmp.ne.s32.totalorder %s379, %s381
      %p385 = scmp.eq.s32.totalorder %s78, 0
      %p386 = por %p384, %p385
      %p387 = scmp.ne.s32.totalorder %s379, %s381
      %p388 = scmp.eq.s32.totalorder %s83, 1
      %p389 = por %p387, %p388
      %p390 = scmp.ne.s32.totalorder %s381, %s382
      %p391 = scmp.eq.s32.totalorder %s83, 0
      %p392 = por %p390, %p391
      %p393 = scmp.ne.s32.totalorder %s381, %s382
      %p394 = scmp.eq.s32.totalorder %s84, 1
      %p395 = por %p393, %p394
      %p397 = scmp.ne.s32.totalorder %s382, %s396
      %p398 = scmp.eq.s32.totalorder %s84, 0
      %p399 = por %p397, %p398
      %s401 = sadd.s32 %s400, 1
      %p404 = scmp.eq.s32.totalorder %s78, 1
      %p405 = scmp.ne.s32.totalorder %s400, %s402
      %p406 = scmp.eq.s32.totalorder %s78, 0
      %p407 = por %p405, %p406
      %p408 = scmp.ne.s32.totalorder %s400, %s402
      %p409 = scmp.eq.s32.totalorder %s83, 1
      %p410 = por %p408, %p409
      %p411 = scmp.ne.s32.totalorder %s402, %s403
      %p412 = scmp.eq.s32.totalorder %s83, 0
      %p413 = por %p411, %p412
      %p414 = scmp.ne.s32.totalorder %s402, %s403
      %p415 = scmp.eq.s32.totalorder %s84, 1
      %p416 = por %p414, %p415
      %p418 = scmp.ne.s32.totalorder %s403, %s417
      %p419 = scmp.eq.s32.totalorder %s84, 0
      %p420 = por %p418, %p419
      %s422 = sadd.s32 %s421, 1
      %p425 = scmp.eq.s32.totalorder %s78, 1
      %p426 = scmp.ne.s32.totalorder %s421, %s423
      %p427 = scmp.eq.s32.totalorder %s78, 0
      %p428 = por %p426, %p427
      %p429 = scmp.ne.s32.totalorder %s421, %s423
      %p430 = scmp.eq.s32.totalorder %s83, 1
      %p431 = por %p429, %p430
      %p432 = scmp.ne.s32.totalorder %s423, %s424
      %p433 = scmp.eq.s32.totalorder %s83, 0
      %p434 = por %p432, %p433
      %p435 = scmp.ne.s32.totalorder %s423, %s424
      %p436 = scmp.eq.s32.totalorder %s84, 1
      %p437 = por %p435, %p436
      %p439 = scmp.ne.s32.totalorder %s424, %s438
      %p440 = scmp.eq.s32.totalorder %s84, 0
      %p441 = por %p439, %p440
      %s443 = sadd.s32 %s442, 1
      %p446 = scmp.eq.s32.totalorder %s78, 1
      %p447 = scmp.ne.s32.totalorder %s442, %s444
      %p448 = scmp.eq.s32.totalorder %s78, 0
      %p449 = por %p447, %p448
      %p450 = scmp.ne.s32.totalorder %s442, %s444
      %p451 = scmp.eq.s32.totalorder %s83, 1
      %p452 = por %p450, %p451
      %p453 = scmp.ne.s32.totalorder %s444, %s445
      %p454 = scmp.eq.s32.totalorder %s83, 0
      %p455 = por %p453, %p454
      %p456 = scmp.ne.s32.totalorder %s444, %s445
      %p457 = scmp.eq.s32.totalorder %s84, 1
      %p458 = por %p456, %p457
      %p460 = scmp.ne.s32.totalorder %s445, %s459
      %p461 = scmp.eq.s32.totalorder %s84, 0
      %p462 = por %p460, %p461
      %s464 = sadd.s32 %s463, 1
      %p467 = scmp.eq.s32.totalorder %s78, 1
      %p468 = scmp.ne.s32.totalorder %s463, %s465
      %p469 = scmp.eq.s32.totalorder %s78, 0
      %p470 = por %p468, %p469
      %p471 = scmp.ne.s32.totalorder %s463, %s465
      %p472 = scmp.eq.s32.totalorder %s83, 1
      %p473 = por %p471, %p472
      %p474 = scmp.ne.s32.totalorder %s465, %s466
      %p475 = scmp.eq.s32.totalorder %s83, 0
      %p476 = por %p474, %p475
      %p477 = scmp.ne.s32.totalorder %s465, %s466
      %p478 = scmp.eq.s32.totalorder %s84, 1
      %p479 = por %p477, %p478
      %p481 = scmp.ne.s32.totalorder %s466, %s480
      %p482 = scmp.eq.s32.totalorder %s84, 0
      %p483 = por %p481, %p482
      %s485 = sadd.s32 %s484, 1
      %p488 = scmp.eq.s32.totalorder %s78, 1
      %p489 = scmp.ne.s32.totalorder %s484, %s486
      %p490 = scmp.eq.s32.totalorder %s78, 0
      %p491 = por %p489, %p490
      %p492 = scmp.ne.s32.totalorder %s484, %s486
      %p493 = scmp.eq.s32.totalorder %s83, 1
      %p494 = por %p492, %p493
      %p495 = scmp.ne.s32.totalorder %s486, %s487
      %p496 = scmp.eq.s32.totalorder %s83, 0
      %p497 = por %p495, %p496
      %p498 = scmp.ne.s32.totalorder %s486, %s487
      %p499 = scmp.eq.s32.totalorder %s84, 1
      %p500 = por %p498, %p499
      %p502 = scmp.ne.s32.totalorder %s487, %s501
      %p503 = scmp.eq.s32.totalorder %s84, 0
      %p504 = por %p502, %p503
      %s506 = sadd.s32 %s505, 1
      %p509 = scmp.eq.s32.totalorder %s78, 1
      %p510 = scmp.ne.s32.totalorder %s505, %s507
      %p511 = scmp.eq.s32.totalorder %s78, 0
      %p512 = por %p510, %p511
      %p513 = scmp.ne.s32.totalorder %s505, %s507
      %p514 = scmp.eq.s32.totalorder %s83, 1
      %p515 = por %p513, %p514
      %p516 = scmp.ne.s32.totalorder %s507, %s508
      %p517 = scmp.eq.s32.totalorder %s83, 0
      %p518 = por %p516, %p517
      %p519 = scmp.ne.s32.totalorder %s507, %s508
      %p520 = scmp.eq.s32.totalorder %s84, 1
      %p521 = por %p519, %p520
      %p523 = scmp.ne.s32.totalorder %s508, %s522
      %p524 = scmp.eq.s32.totalorder %s84, 0
      %p525 = por %p523, %p524
      %s527 = sadd.s32 %s526, 1
      %p530 = scmp.eq.s32.totalorder %s78, 1
      %p531 = scmp.ne.s32.totalorder %s526, %s528
      %p532 = scmp.eq.s32.totalorder %s78, 0
      %p533 = por %p531, %p532
      %p534 = scmp.ne.s32.totalorder %s526, %s528
      %p535 = scmp.eq.s32.totalorder %s83, 1
      %p536 = por %p534, %p535
      %p537 = scmp.ne.s32.totalorder %s528, %s529
      %p538 = scmp.eq.s32.totalorder %s83, 0
      %p539 = por %p537, %p538
      %p540 = scmp.ne.s32.totalorder %s528, %s529
      %p541 = scmp.eq.s32.totalorder %s84, 1
      %p542 = por %p540, %p541
      %p544 = scmp.ne.s32.totalorder %s529, %s543
      %p545 = scmp.eq.s32.totalorder %s84, 0
      %p546 = por %p544, %p545
      %s548 = sadd.s32 %s547, 1
      %p551 = scmp.eq.s32.totalorder %s78, 1
      %p552 = scmp.ne.s32.totalorder %s547, %s549
      %p553 = scmp.eq.s32.totalorder %s78, 0
      %p554 = por %p552, %p553
      %p555 = scmp.ne.s32.totalorder %s547, %s549
      %p556 = scmp.eq.s32.totalorder %s83, 1
      %p557 = por %p555, %p556
      %p558 = scmp.ne.s32.totalorder %s549, %s550
      %p559 = scmp.eq.s32.totalorder %s83, 0
      %p560 = por %p558, %p559
      %p561 = scmp.ne.s32.totalorder %s549, %s550
      %p562 = scmp.eq.s32.totalorder %s84, 1
      %p563 = por %p561, %p562
      %p565 = scmp.ne.s32.totalorder %s550, %s564
      %p566 = scmp.eq.s32.totalorder %s84, 0
      %p567 = por %p565, %p566
      %s569 = sadd.s32 %s568, 1
      %p572 = scmp.eq.s32.totalorder %s78, 1
      %p573 = scmp.ne.s32.totalorder %s568, %s570
      %p574 = scmp.eq.s32.totalorder %s78, 0
      %p575 = por %p573, %p574
      %p576 = scmp.ne.s32.totalorder %s568, %s570
      %p577 = scmp.eq.s32.totalorder %s83, 1
      %p578 = por %p576, %p577
      %p579 = scmp.ne.s32.totalorder %s570, %s571
      %p580 = scmp.eq.s32.totalorder %s83, 0
      %p581 = por %p579, %p580
      %p582 = scmp.ne.s32.totalorder %s570, %s571
      %p583 = scmp.eq.s32.totalorder %s84, 1
      %p584 = por %p582, %p583
      %p586 = scmp.ne.s32.totalorder %s571, %s585
      %p587 = scmp.eq.s32.totalorder %s84, 0
      %p588 = por %p586, %p587
      %s590 = sadd.s32 %s589, 1
      %p593 = scmp.eq.s32.totalorder %s78, 1
      %p594 = scmp.ne.s32.totalorder %s589, %s591
      %p595 = scmp.eq.s32.totalorder %s78, 0
      %p596 = por %p594, %p595
      %p597 = scmp.ne.s32.totalorder %s589, %s591
      %p598 = scmp.eq.s32.totalorder %s83, 1
      %p599 = por %p597, %p598
      %p600 = scmp.ne.s32.totalorder %s591, %s592
      %p601 = scmp.eq.s32.totalorder %s83, 0
      %p602 = por %p600, %p601
      %p603 = scmp.ne.s32.totalorder %s591, %s592
      %p604 = scmp.eq.s32.totalorder %s84, 1
      %p605 = por %p603, %p604
      %p607 = scmp.ne.s32.totalorder %s592, %s606
      %p608 = scmp.eq.s32.totalorder %s84, 0
      %p609 = por %p607, %p608
      %s611 = sadd.s32 %s610, 1
      %p614 = scmp.eq.s32.totalorder %s78, 1
      %p615 = scmp.ne.s32.totalorder %s610, %s612
      %p616 = scmp.eq.s32.totalorder %s78, 0
      %p617 = por %p615, %p616
      %p618 = scmp.ne.s32.totalorder %s610, %s612
      %p619 = scmp.eq.s32.totalorder %s83, 1
      %p620 = por %p618, %p619
      %p621 = scmp.ne.s32.totalorder %s612, %s613
      %p622 = scmp.eq.s32.totalorder %s83, 0
      %p623 = por %p621, %p622
      %p624 = scmp.ne.s32.totalorder %s612, %s613
      %p625 = scmp.eq.s32.totalorder %s84, 1
      %p626 = por %p624, %p625
      %p628 = scmp.ne.s32.totalorder %s613, %s627
      %p629 = scmp.eq.s32.totalorder %s84, 0
      %p630 = por %p628, %p629
      %s632 = sadd.s32 %s631, 1
      %p635 = scmp.eq.s32.totalorder %s78, 1
      %p636 = scmp.ne.s32.totalorder %s631, %s633
      %p637 = scmp.eq.s32.totalorder %s78, 0
      %p638 = por %p636, %p637
      %p639 = scmp.ne.s32.totalorder %s631, %s633
      %p640 = scmp.eq.s32.totalorder %s83, 1
      %p641 = por %p639, %p640
      %p642 = scmp.ne.s32.totalorder %s633, %s634
      %p643 = scmp.eq.s32.totalorder %s83, 0
      %p644 = por %p642, %p643
      %p645 = scmp.ne.s32.totalorder %s633, %s634
      %p646 = scmp.eq.s32.totalorder %s84, 1
      %p647 = por %p645, %p646
      %p649 = scmp.ne.s32.totalorder %s634, %s648
      %p650 = scmp.eq.s32.totalorder %s84, 0
      %p651 = por %p649, %p650
      %s653 = sadd.s32 %s652, 1
      %p656 = scmp.eq.s32.totalorder %s78, 1
      %p657 = scmp.ne.s32.totalorder %s652, %s654
      %p658 = scmp.eq.s32.totalorder %s78, 0
      %p659 = por %p657, %p658
      %p660 = scmp.ne.s32.totalorder %s652, %s654
      %p661 = scmp.eq.s32.totalorder %s83, 1
      %p662 = por %p660, %p661
      %p663 = scmp.ne.s32.totalorder %s654, %s655
      %p664 = scmp.eq.s32.totalorder %s83, 0
      %p665 = por %p663, %p664
      %p666 = scmp.ne.s32.totalorder %s654, %s655
      %p667 = scmp.eq.s32.totalorder %s84, 1
      %p668 = por %p666, %p667
      %p670 = scmp.ne.s32.totalorder %s655, %s669
      %p671 = scmp.eq.s32.totalorder %s84, 0
      %p672 = por %p670, %p671
      %s674 = sadd.s32 %s673, 1
      %p677 = scmp.eq.s32.totalorder %s78, 1
      %p678 = scmp.ne.s32.totalorder %s673, %s675
      %p679 = scmp.eq.s32.totalorder %s78, 0
      %p680 = por %p678, %p679
      %p681 = scmp.ne.s32.totalorder %s673, %s675
      %p682 = scmp.eq.s32.totalorder %s83, 1
      %p683 = por %p681, %p682
      %p684 = scmp.ne.s32.totalorder %s675, %s676
      %p685 = scmp.eq.s32.totalorder %s83, 0
      %p686 = por %p684, %p685
      %p687 = scmp.ne.s32.totalorder %s675, %s676
      %p688 = scmp.eq.s32.totalorder %s84, 1
      %p689 = por %p687, %p688
      %p691 = scmp.ne.s32.totalorder %s676, %s690
      %p692 = scmp.eq.s32.totalorder %s84, 0
      %p693 = por %p691, %p692
      %s695 = sadd.s32 %s694, 1
      %p698 = scmp.eq.s32.totalorder %s78, 1
      %p699 = scmp.ne.s32.totalorder %s694, %s696
      %p700 = scmp.eq.s32.totalorder %s78, 0
      %p701 = por %p699, %p700
      %p702 = scmp.ne.s32.totalorder %s694, %s696
      %p703 = scmp.eq.s32.totalorder %s83, 1
      %p704 = por %p702, %p703
      %p705 = scmp.ne.s32.totalorder %s696, %s697
      %p706 = scmp.eq.s32.totalorder %s83, 0
      %p707 = por %p705, %p706
      %p708 = scmp.ne.s32.totalorder %s696, %s697
      %p709 = scmp.eq.s32.totalorder %s84, 1
      %p710 = por %p708, %p709
      %p712 = scmp.ne.s32.totalorder %s697, %s711
      %p713 = scmp.eq.s32.totalorder %s84, 0
      %p714 = por %p712, %p713
      %s716 = sadd.s32 %s715, 1
      %p719 = scmp.eq.s32.totalorder %s78, 1
      %p720 = scmp.ne.s32.totalorder %s715, %s717
      %p721 = scmp.eq.s32.totalorder %s78, 0
      %p722 = por %p720, %p721
      %p723 = scmp.ne.s32.totalorder %s715, %s717
      %p724 = scmp.eq.s32.totalorder %s83, 1
      %p725 = por %p723, %p724
      %p726 = scmp.ne.s32.totalorder %s717, %s718
      %p727 = scmp.eq.s32.totalorder %s83, 0
      %p728 = por %p726, %p727
      %p729 = scmp.ne.s32.totalorder %s717, %s718
      %p730 = scmp.eq.s32.totalorder %s84, 1
      %p731 = por %p729, %p730
      %p733 = scmp.ne.s32.totalorder %s718, %s732
      %p734 = scmp.eq.s32.totalorder %s84, 0
      %p735 = por %p733, %p734
      %s736 = ssub.s32 %s78, %s85
      %p737 = scmp.eq.s32.totalorder %s736, 0
      %s739 = sadd.s32 %s738, 1
      %s740 = scalar_select %p737, %s738, %s739
      %p743 = pneg %p737
      %p744 = scmp.eq.s32.totalorder %s78, 1
      %p745 = por %p743, %p744
      %p746 = scmp.ne.s32.totalorder %s738, %s741
      %p747 = scmp.eq.s32.totalorder %s78, 0
      %p748 = por %p746, %p747
      %p749 = scmp.ne.s32.totalorder %s738, %s741
      %p750 = scmp.eq.s32.totalorder %s83, 1
      %p751 = por %p749, %p750
      %p752 = scmp.ne.s32.totalorder %s741, %s742
      %p753 = scmp.eq.s32.totalorder %s83, 0
      %p754 = por %p752, %p753
      %p755 = scmp.ne.s32.totalorder %s741, %s742
      %p756 = scmp.eq.s32.totalorder %s84, 1
      %p757 = por %p755, %p756
      %p759 = scmp.ne.s32.totalorder %s742, %s758
      %p760 = scmp.eq.s32.totalorder %s84, 0
      %p761 = por %p759, %p760
      %p762 = scmp.le.s32.totalorder 1, %s78
      %p763 = scmp.lt.s32.totalorder %s78, 3
      %p764 = pnand %p762, %p763
      %p765 = pneg %p764
      // Predicated region
      $region9: #{tpu_custom_call.1} parent=5 // pred_check
        _
      $region10: #{tpu_custom_call.1} parent=5 // pred_check_branch
        %767 = sbr.rel (%p764) target = $region12
      $region11: #{tpu_custom_call.1} parent=5 // pred_region
        %s768 = ssub.s32 %s78, 1
        // Predicated region
        $region13: #{tpu_custom_call.1} parent=11 // pred_check
          %p769 = pneg %p203
        $region14: #{tpu_custom_call.1} parent=11 // pred_check_branch
          %771 = sbr.rel (%p769) target = $region16
        $region15: #{tpu_custom_call.1} parent=11 // pred_region
          _
        $region16: #{tpu_custom_call.1} parent=11 // pred_fallthru
          _
        // Predicated region
        $region17: #{tpu_custom_call.1} parent=11 // pred_check
          %p772 = pneg %p224
        $region18: #{tpu_custom_call.1} parent=11 // pred_check_branch
          %774 = sbr.rel (%p772) target = $region20
        $region19: #{tpu_custom_call.1} parent=11 // pred_region
          %s776 = ssub.s32 16, 16
          %777 = vsyncadd [#allocation6], %s776
          %s779 = sshll.u32 [#allocation5], 4
          %s780 = int_to_ptr.vmem [resolvable:$true] %s779
          %782 = dma.hbm_to_vmem [thread:$0]  %s11, 16, %s780, [#allocation6]
        $region20: #{tpu_custom_call.1} parent=11 // pred_fallthru
          _
        // Predicated region
        $region21: #{tpu_custom_call.1} parent=11 // pred_check
          %p783 = pneg %p245
        $region22: #{tpu_custom_call.1} parent=11 // pred_check_branch
          %785 = sbr.rel (%p783) target = $region24
        $region23: #{tpu_custom_call.1} parent=11 // pred_region
          _
        $region24: #{tpu_custom_call.1} parent=11 // pred_fallthru
          _
        // Predicated region
        $region25: #{tpu_custom_call.1} parent=11 // pred_check
          %p786 = pneg %p266
        $region26: #{tpu_custom_call.1} parent=11 // pred_check_branch
          %788 = sbr.rel (%p786) target = $region28
        $region27: #{tpu_custom_call.1} parent=11 // pred_region
          %s790 = ssub.s32 16, 16
          %791 = vsyncadd [#allocation6], %s790
          %s793 = sshll.u32 [#allocation7], 4
          %s794 = int_to_ptr.vmem [resolvable:$true] %s793
          %796 = dma.hbm_to_vmem [thread:$0]  %s15, 16, %s794, [#allocation6]
        $region28: #{tpu_custom_call.1} parent=11 // pred_fallthru
          _
        // Predicated region
        $region29: #{tpu_custom_call.1} parent=11 // pred_check
          %p797 = pneg %p287
        $region30: #{tpu_custom_call.1} parent=11 // pred_check_branch
          %799 = sbr.rel (%p797) target = $region32
        $region31: #{tpu_custom_call.1} parent=11 // pred_region
          _
        $region32: #{tpu_custom_call.1} parent=11 // pred_fallthru
          _
        // Predicated region
        $region33: #{tpu_custom_call.1} parent=11 // pred_check
          %p800 = pneg %p308
        $region34: #{tpu_custom_call.1} parent=11 // pred_check_branch
          %802 = sbr.rel (%p800) target = $region36
        $region35: #{tpu_custom_call.1} parent=11 // pred_region
          %s804 = ssub.s32 16, 16
          %805 = vsyncadd [#allocation9], %s804
          %s807 = sshll.u32 [#allocation8], 4
          %s808 = int_to_ptr.vmem [resolvable:$true] %s807
          %810 = dma.hbm_to_vmem [thread:$0]  %s19, 16, %s808, [#allocation9]
        $region36: #{tpu_custom_call.1} parent=11 // pred_fallthru
          _
        // Predicated region
        $region37: #{tpu_custom_call.1} parent=11 // pred_check
          %p811 = pneg %p329
        $region38: #{tpu_custom_call.1} parent=11 // pred_check_branch
          %813 = sbr.rel (%p811) target = $region40
        $region39: #{tpu_custom_call.1} parent=11 // pred_region
          _
        $region40: #{tpu_custom_call.1} parent=11 // pred_fallthru
          _
        // Predicated region
        $region41: #{tpu_custom_call.1} parent=11 // pred_check
          %p814 = pneg %p350
        $region42: #{tpu_custom_call.1} parent=11 // pred_check_branch
          %816 = sbr.rel (%p814) target = $region44
        $region43: #{tpu_custom_call.1} parent=11 // pred_region
          %s818 = ssub.s32 16, 16
          %819 = vsyncadd [#allocation9], %s818
          %s821 = sshll.u32 [#allocation10], 4
          %s822 = int_to_ptr.vmem [resolvable:$true] %s821
          %824 = dma.hbm_to_vmem [thread:$0]  %s23, 16, %s822, [#allocation9]
        $region44: #{tpu_custom_call.1} parent=11 // pred_fallthru
          _
        // Predicated region
        $region45: #{tpu_custom_call.1} parent=11 // pred_check
          %p825 = pneg %p371
        $region46: #{tpu_custom_call.1} parent=11 // pred_check_branch
          %827 = sbr.rel (%p825) target = $region48
        $region47: #{tpu_custom_call.1} parent=11 // pred_region
          %s829 = ssub.s32 16, 16
          %830 = vsyncadd [#allocation12], %s829
          %s832 = sshll.u32 [#allocation11], 4
          %s833 = int_to_ptr.vmem [resolvable:$true] %s832
          %835 = dma.hbm_to_vmem [thread:$0]  %s25, 16, %s833, [#allocation12]
        $region48: #{tpu_custom_call.1} parent=11 // pred_fallthru
          _
        // Predicated region
        $region49: #{tpu_custom_call.1} parent=11 // pred_check
          %p836 = pneg %p392
        $region50: #{tpu_custom_call.1} parent=11 // pred_check_branch
          %838 = sbr.rel (%p836) target = $region52
        $region51: #{tpu_custom_call.1} parent=11 // pred_region
          %s840 = ssub.s32 16, 16
          %841 = vsyncadd [#allocation12], %s840
          %s843 = sshll.u32 [#allocation13], 4
          %s844 = int_to_ptr.vmem [resolvable:$true] %s843
          %846 = dma.hbm_to_vmem [thread:$0]  %s27, 16, %s844, [#allocation12]
        $region52: #{tpu_custom_call.1} parent=11 // pred_fallthru
          _
        // Predicated region
        $region53: #{tpu_custom_call.1} parent=11 // pred_check
          %p847 = pneg %p413
        $region54: #{tpu_custom_call.1} parent=11 // pred_check_branch
          %849 = sbr.rel (%p847) target = $region56
        $region55: #{tpu_custom_call.1} parent=11 // pred_region
          _
        $region56: #{tpu_custom_call.1} parent=11 // pred_fallthru
          _
        // Predicated region
        $region57: #{tpu_custom_call.1} parent=11 // pred_check
          %p850 = pneg %p434
        $region58: #{tpu_custom_call.1} parent=11 // pred_check_branch
          %852 = sbr.rel (%p850) target = $region60
        $region59: #{tpu_custom_call.1} parent=11 // pred_region
          %s854 = ssub.s32 16, 16
          %855 = vsyncadd [#allocation15], %s854
          %s857 = sshll.u32 [#allocation14], 4
          %s858 = int_to_ptr.vmem [resolvable:$true] %s857
          %860 = dma.hbm_to_vmem [thread:$0]  %s31, 16, %s858, [#allocation15]
        $region60: #{tpu_custom_call.1} parent=11 // pred_fallthru
          _
        // Predicated region
        $region61: #{tpu_custom_call.1} parent=11 // pred_check
          %p861 = pneg %p455
        $region62: #{tpu_custom_call.1} parent=11 // pred_check_branch
          %863 = sbr.rel (%p861) target = $region64
        $region63: #{tpu_custom_call.1} parent=11 // pred_region
          %s865 = ssub.s32 192, 192
          %866 = vsyncadd [#allocation15], %s865
          %s867 = sshll.u32 [#allocation16], 4
          %s868 = int_to_ptr.vmem [resolvable:$true] %s867
          %873 = dma.hbm_to_vmem [thread:$0]  %s33, 192, %s868, [#allocation15], 64, 64, 4
        $region64: #{tpu_custom_call.1} parent=11 // pred_fallthru
          _
        // Predicated region
        $region65: #{tpu_custom_call.1} parent=11 // pred_check
          %p874 = pneg %p476
        $region66: #{tpu_custom_call.1} parent=11 // pred_check_branch
          %876 = sbr.rel (%p874) target = $region68
        $region67: #{tpu_custom_call.1} parent=11 // pred_region
          _
        $region68: #{tpu_custom_call.1} parent=11 // pred_fallthru
          _
        // Predicated region
        $region69: #{tpu_custom_call.1} parent=11 // pred_check
          %p877 = pneg %p497
        $region70: #{tpu_custom_call.1} parent=11 // pred_check_branch
          %879 = sbr.rel (%p877) target = $region72
        $region71: #{tpu_custom_call.1} parent=11 // pred_region
          %s881 = ssub.s32 192, 192
          %882 = vsyncadd [#allocation18], %s881
          %s883 = sshll.u32 [#allocation17], 4
          %s884 = int_to_ptr.vmem [resolvable:$true] %s883
          %889 = dma.hbm_to_vmem [thread:$0]  %s37, 192, %s884, [#allocation18], 64, 64, 4
        $region72: #{tpu_custom_call.1} parent=11 // pred_fallthru
          _
        // Predicated region
        $region73: #{tpu_custom_call.1} parent=11 // pred_check
          %p890 = pneg %p518
        $region74: #{tpu_custom_call.1} parent=11 // pred_check_branch
          %892 = sbr.rel (%p890) target = $region76
        $region75: #{tpu_custom_call.1} parent=11 // pred_region
          _
        $region76: #{tpu_custom_call.1} parent=11 // pred_fallthru
          _
        // Predicated region
        $region77: #{tpu_custom_call.1} parent=11 // pred_check
          %p893 = pneg %p539
        $region78: #{tpu_custom_call.1} parent=11 // pred_check_branch
          %895 = sbr.rel (%p893) target = $region80
        $region79: #{tpu_custom_call.1} parent=11 // pred_region
          _
        $region80: #{tpu_custom_call.1} parent=11 // pred_fallthru
          _
        // Predicated region
        $region81: #{tpu_custom_call.1} parent=11 // pred_check
          %p896 = pneg %p560
        $region82: #{tpu_custom_call.1} parent=11 // pred_check_branch
          %898 = sbr.rel (%p896) target = $region84
        $region83: #{tpu_custom_call.1} parent=11 // pred_region
          _
        $region84: #{tpu_custom_call.1} parent=11 // pred_fallthru
          _
        // Predicated region
        $region85: #{tpu_custom_call.1} parent=11 // pred_check
          %p899 = pneg %p581
        $region86: #{tpu_custom_call.1} parent=11 // pred_check_branch
          %901 = sbr.rel (%p899) target = $region88
        $region87: #{tpu_custom_call.1} parent=11 // pred_region
          _
        $region88: #{tpu_custom_call.1} parent=11 // pred_fallthru
          _
        // Predicated region
        $region89: #{tpu_custom_call.1} parent=11 // pred_check
          %p902 = pneg %p602
        $region90: #{tpu_custom_call.1} parent=11 // pred_check_branch
          %904 = sbr.rel (%p902) target = $region92
        $region91: #{tpu_custom_call.1} parent=11 // pred_region
          _
        $region92: #{tpu_custom_call.1} parent=11 // pred_fallthru
          _
        // Predicated region
        $region93: #{tpu_custom_call.1} parent=11 // pred_check
          %p905 = pneg %p623
        $region94: #{tpu_custom_call.1} parent=11 // pred_check_branch
          %907 = sbr.rel (%p905) target = $region96
        $region95: #{tpu_custom_call.1} parent=11 // pred_region
          _
        $region96: #{tpu_custom_call.1} parent=11 // pred_fallthru
          _
        // Predicated region
        $region97: #{tpu_custom_call.1} parent=11 // pred_check
          %p908 = pneg %p644
        $region98: #{tpu_custom_call.1} parent=11 // pred_check_branch
          %910 = sbr.rel (%p908) target = $region100
        $region99: #{tpu_custom_call.1} parent=11 // pred_region
          _
        $region100: #{tpu_custom_call.1} parent=11 // pred_fallthru
          _
        // Predicated region
        $region101: #{tpu_custom_call.1} parent=11 // pred_check
          %p911 = pneg %p665
        $region102: #{tpu_custom_call.1} parent=11 // pred_check_branch
          %913 = sbr.rel (%p911) target = $region104
        $region103: #{tpu_custom_call.1} parent=11 // pred_region
          _
        $region104: #{tpu_custom_call.1} parent=11 // pred_fallthru
          _
        // Predicated region
        $region105: #{tpu_custom_call.1} parent=11 // pred_check
          %p914 = pneg %p686
        $region106: #{tpu_custom_call.1} parent=11 // pred_check_branch
          %916 = sbr.rel (%p914) target = $region108
        $region107: #{tpu_custom_call.1} parent=11 // pred_region
          _
        $region108: #{tpu_custom_call.1} parent=11 // pred_fallthru
          _
        // Predicated region
        $region109: #{tpu_custom_call.1} parent=11 // pred_check
          %p917 = pneg %p707
        $region110: #{tpu_custom_call.1} parent=11 // pred_check_branch
          %919 = sbr.rel (%p917) target = $region112
        $region111: #{tpu_custom_call.1} parent=11 // pred_region
          _
        $region112: #{tpu_custom_call.1} parent=11 // pred_fallthru
          _
        // Predicated region
        $region113: #{tpu_custom_call.1} parent=11 // pred_check
          %p920 = pneg %p728
        $region114: #{tpu_custom_call.1} parent=11 // pred_check_branch
          %922 = sbr.rel (%p920) target = $region116
        $region115: #{tpu_custom_call.1} parent=11 // pred_region
          _
        $region116: #{tpu_custom_call.1} parent=11 // pred_fallthru
          _
      $region12: #{tpu_custom_call.1} parent=5 // pred_fallthru
        _
      %p923 = scmp.lt.s32.totalorder %s78, 2
      // Predicated region
      $region117: #{tpu_custom_call.1} parent=5 // pred_check
        %p924 = pneg %p923
      $region118: #{tpu_custom_call.1} parent=5 // pred_check_branch
        %926 = sbr.rel (%p924) target = $region120
      $region119: #{tpu_custom_call.1} parent=5 // pred_region
        // Predicated region
        $region121: #{tpu_custom_call.1} parent=119 // pred_check
          %p927 = pneg %p98
        $region122: #{tpu_custom_call.1} parent=119 // pred_check_branch
          %929 = sbr.rel (%p927) target = $region124
        $region123: #{tpu_custom_call.1} parent=119 // pred_region
          %p930 = scmp.lt.s32.totalorder %s78, 1
          %s931 = scalar_select %p930, %s78, 1
          %s932 = smul.addr %s931, 8
          %s933 = scalar_lea.vmem %s1, %s932
        $region124: #{tpu_custom_call.1} parent=119 // pred_fallthru
          _
        // Predicated region
        $region125: #{tpu_custom_call.1} parent=119 // pred_check
          %p934 = pneg %p124
        $region126: #{tpu_custom_call.1} parent=119 // pred_check_branch
          %936 = sbr.rel (%p934) target = $region128
        $region127: #{tpu_custom_call.1} parent=119 // pred_region
          %p937 = scmp.lt.s32.totalorder %s78, 1
          %s938 = scalar_select %p937, %s78, 1
          %s939 = smul.addr %s938, 8
          %s940 = scalar_lea.vmem %s3, %s939
        $region128: #{tpu_custom_call.1} parent=119 // pred_fallthru
          _
        // Predicated region
        $region129: #{tpu_custom_call.1} parent=119 // pred_check
          %p941 = pneg %p150
        $region130: #{tpu_custom_call.1} parent=119 // pred_check_branch
          %943 = sbr.rel (%p941) target = $region132
        $region131: #{tpu_custom_call.1} parent=119 // pred_region
          %p944 = scmp.lt.s32.totalorder %s78, 1
          %s945 = scalar_select %p944, %s78, 1
          %s946 = smul.addr %s945, 2
          %s947 = smul.addr %s946, 8
          %s948 = scalar_lea.vmem %s5, %s947
        $region132: #{tpu_custom_call.1} parent=119 // pred_fallthru
          _
        // Predicated region
        $region133: #{tpu_custom_call.1} parent=119 // pred_check
          %p949 = pneg %p176
        $region134: #{tpu_custom_call.1} parent=119 // pred_check_branch
          %951 = sbr.rel (%p949) target = $region136
        $region135: #{tpu_custom_call.1} parent=119 // pred_region
          %s952 = sand.u32 %s166, 1
          %s953 = scalar_lea.sflag [#allocation3], %s952
          %s954 = sand.u32 %s166, 1
          %s955 = scalar_lea.vmem [#allocation2], %s954
          %s957 = ssub.s32 16, 16
          %958 = vsyncadd %s953, %s957
          %s959 = smul.addr %s78, 16
          %s960 = scalar_lea.hbm %s7, %s959
          %s962 = sshll.u32 %s955, 4
          %s963 = int_to_ptr.vmem [resolvable:$true] %s962
          %965 = dma.hbm_to_vmem [thread:$0]  %s960, 16, %s963, %s953
        $region136: #{tpu_custom_call.1} parent=119 // pred_fallthru
          _
      $region120: #{tpu_custom_call.1} parent=5 // pred_fallthru
        _
      %p966 = scmp.le.s32.totalorder 1, %s78
      %p967 = scmp.lt.s32.totalorder %s78, 3
      %p968 = pnand %p966, %p967
      %p969 = pneg %p968
      // Predicated region
      $region137: #{tpu_custom_call.1} parent=5 // pred_check
        _
      $region138: #{tpu_custom_call.1} parent=5 // pred_check_branch
        %971 = sbr.rel (%p968) target = $region140
      $region139: #{tpu_custom_call.1} parent=5 // pred_region
        %s972 = ssub.s32 %s78, 1
        %s973 = sand.u32 %s169, 1
        %s974 = scalar_lea.sflag [#allocation3], %s973
        %s975 = sand.u32 %s169, 1
        %s976 = scalar_lea.vmem [#allocation2], %s975
        // Predicated region
        $region141: #{tpu_custom_call.1} parent=139 // pred_check
          %p977 = pneg %p182
        $region142: #{tpu_custom_call.1} parent=139 // pred_check_branch
          %979 = sbr.rel (%p977) target = $region144
        $region143: #{tpu_custom_call.1} parent=139 // pred_region
          %980 = dma.done %s974, 16
        $region144: #{tpu_custom_call.1} parent=139 // pred_fallthru
          _
        // Predicated region
        $region145: #{tpu_custom_call.1} parent=139 // pred_check
          %p981 = pneg %p224
        $region146: #{tpu_custom_call.1} parent=139 // pred_check_branch
          %983 = sbr.rel (%p981) target = $region148
        $region147: #{tpu_custom_call.1} parent=139 // pred_region
          %984 = dma.done [#allocation6], 16
        $region148: #{tpu_custom_call.1} parent=139 // pred_fallthru
          _
        // Predicated region
        $region149: #{tpu_custom_call.1} parent=139 // pred_check
          %p985 = pneg %p266
        $region150: #{tpu_custom_call.1} parent=139 // pred_check_branch
          %987 = sbr.rel (%p985) target = $region152
        $region151: #{tpu_custom_call.1} parent=139 // pred_region
          %988 = dma.done [#allocation6], 16
        $region152: #{tpu_custom_call.1} parent=139 // pred_fallthru
          _
        // Predicated region
        $region153: #{tpu_custom_call.1} parent=139 // pred_check
          %p989 = pneg %p308
        $region154: #{tpu_custom_call.1} parent=139 // pred_check_branch
          %991 = sbr.rel (%p989) target = $region156
        $region155: #{tpu_custom_call.1} parent=139 // pred_region
          %992 = dma.done [#allocation9], 16
        $region156: #{tpu_custom_call.1} parent=139 // pred_fallthru
          _
        // Predicated region
        $region157: #{tpu_custom_call.1} parent=139 // pred_check
          %p993 = pneg %p350
        $region158: #{tpu_custom_call.1} parent=139 // pred_check_branch
          %995 = sbr.rel (%p993) target = $region160
        $region159: #{tpu_custom_call.1} parent=139 // pred_region
          %996 = dma.done [#allocation9], 16
        $region160: #{tpu_custom_call.1} parent=139 // pred_fallthru
          _
        // Predicated region
        $region161: #{tpu_custom_call.1} parent=139 // pred_check
          %p997 = pneg %p371
        $region162: #{tpu_custom_call.1} parent=139 // pred_check_branch
          %999 = sbr.rel (%p997) target = $region164
        $region163: #{tpu_custom_call.1} parent=139 // pred_region
          %1000 = dma.done [#allocation12], 16
        $region164: #{tpu_custom_call.1} parent=139 // pred_fallthru
          _
        // Predicated region
        $region165: #{tpu_custom_call.1} parent=139 // pred_check
          %p1001 = pneg %p392
        $region166: #{tpu_custom_call.1} parent=139 // pred_check_branch
          %1003 = sbr.rel (%p1001) target = $region168
        $region167: #{tpu_custom_call.1} parent=139 // pred_region
          %1004 = dma.done [#allocation12], 16
        $region168: #{tpu_custom_call.1} parent=139 // pred_fallthru
          _
        // Predicated region
        $region169: #{tpu_custom_call.1} parent=139 // pred_check
          %p1005 = pneg %p434
        $region170: #{tpu_custom_call.1} parent=139 // pred_check_branch
          %1007 = sbr.rel (%p1005) target = $region172
        $region171: #{tpu_custom_call.1} parent=139 // pred_region
          %1008 = dma.done [#allocation15], 16
        $region172: #{tpu_custom_call.1} parent=139 // pred_fallthru
          _
        // Predicated region
        $region173: #{tpu_custom_call.1} parent=139 // pred_check
          %p1009 = pneg %p455
        $region174: #{tpu_custom_call.1} parent=139 // pred_check_branch
          %1011 = sbr.rel (%p1009) target = $region176
        $region175: #{tpu_custom_call.1} parent=139 // pred_region
          %1012 = dma.done [#allocation15], 192
        $region176: #{tpu_custom_call.1} parent=139 // pred_fallthru
          _
        // Predicated region
        $region177: #{tpu_custom_call.1} parent=139 // pred_check
          %p1013 = pneg %p497
        $region178: #{tpu_custom_call.1} parent=139 // pred_check_branch
          %1015 = sbr.rel (%p1013) target = $region180
        $region179: #{tpu_custom_call.1} parent=139 // pred_region
          %1016 = dma.done [#allocation18], 192
        $region180: #{tpu_custom_call.1} parent=139 // pred_fallthru
          _
        %p1017 = scmp.lt.s32.totalorder %s83, 1
        %s1018 = scalar_select %p1017, %s83, 1
        %s1019 = smul.addr %s1018, 8
        %s1020 = scalar_lea.vmem %s1, %s1019
        %p1021 = pneg %p104
        %p1022 = pneg %p101
        %p1023 = scmp.lt.s32.totalorder %s83, 1
        %s1024 = scalar_select %p1023, %s83, 1
        %s1025 = smul.addr %s1024, 8
        %s1026 = scalar_lea.vmem %s3, %s1025
        %p1027 = pneg %p130
        %p1028 = pneg %p127
        %p1029 = scmp.lt.s32.totalorder %s83, 1
        %s1030 = scalar_select %p1029, %s83, 1
        %s1031 = smul.addr %s1030, 2
        %s1032 = smul.addr %s1031, 8
        %s1033 = scalar_lea.vmem %s5, %s1032
        %p1034 = pneg %p156
        %p1035 = pneg %p153
        %s1036 = sand.u32 %s169, 1
        %s1037 = scalar_lea.sflag [#allocation3], %s1036
        %s1038 = sand.u32 %s169, 1
        %s1039 = scalar_lea.vmem [#allocation2], %s1038
        %p1040 = pneg %p182
        %p1041 = pneg %p179
        %p1042 = pneg %p203
        %p1043 = pneg %p200
        %p1044 = pneg %p224
        %p1045 = pneg %p221
        %p1046 = pneg %p245
        %p1047 = pneg %p242
        %p1048 = pneg %p266
        %p1049 = pneg %p263
        %p1050 = pneg %p287
        %p1051 = pneg %p284
        %p1052 = pneg %p308
        %p1053 = pneg %p305
        %p1054 = pneg %p329
        %p1055 = pneg %p326
        %p1056 = pneg %p350
        %p1057 = pneg %p347
        %p1058 = pneg %p371
        %p1059 = pneg %p368
        %p1060 = pneg %p392
        %p1061 = pneg %p389
        %p1062 = pneg %p413
        %p1063 = pneg %p410
        %p1064 = pneg %p434
        %p1065 = pneg %p431
        %p1066 = pneg %p455
        %p1067 = pneg %p452
        %p1068 = pneg %p476
        %p1069 = pneg %p473
        %p1070 = pneg %p497
        %p1071 = pneg %p494
        %p1072 = pneg %p518
        %p1073 = pneg %p515
        %p1074 = pneg %p539
        %p1075 = pneg %p536
        %p1076 = pneg %p560
        %p1077 = pneg %p557
        %p1078 = pneg %p581
        %p1079 = pneg %p578
        %p1080 = pneg %p602
        %p1081 = pneg %p599
        %p1082 = pneg %p623
        %p1083 = pneg %p620
        %p1084 = pneg %p644
        %p1085 = pneg %p641
        %p1086 = pneg %p665
        %p1087 = pneg %p662
        %p1088 = pneg %p686
        %p1089 = pneg %p683
        %p1090 = pneg %p707
        %p1091 = pneg %p704
        %p1092 = pneg %p728
        %p1093 = pneg %p725
        %p1094 = pneg %p754
        %p1095 = pneg %p751
        %s1096 = sand.u32 %s741, 1
        %s1097 = scalar_lea.sflag [#allocation4], %s1096
        %s1098 = sand.u32 %s741, 1
        %s1099 = smul.addr %s1098, 8
        %s1100 = scalar_lea.vmem [#allocation19], %s1099
        %p1101 = scmp.lt.s32.totalorder %s83, 1
        %s1102 = scalar_select %p1101, %s83, 1
        %s1103 = smul.addr %s1102, 8
        %s1104 = scalar_lea.vmem %s1, %s1103
        %p1105 = scmp.lt.s32.totalorder %s83, 1
        %s1106 = scalar_select %p1105, %s83, 1
        %s1107 = smul.addr %s1106, 8
        %s1108 = scalar_lea.vmem %s3, %s1107
        %p1109 = scmp.lt.s32.totalorder %s83, 1
        %s1110 = scalar_select %p1109, %s83, 1
        %s1111 = smul.addr %s1110, 2
        %s1112 = smul.addr %s1111, 8
        %s1113 = scalar_lea.vmem %s5, %s1112
        %v1115 = vld [vmem:[%s1104] sm:$0xff]
        %v1116 = vld [vmem:[%s1108] sm:$0xff]
        %v1117 = vld [vmem:[%s1113] sm:$0xff]
        %v1118 = vld [vmem:[%s1113 + $0x8] sm:$0x3]
        %v1119 = vld [vmem:[%s976] sm:$0x1]
        %v1120 = vld [vmem:[#allocation11] sm:$0x1]
        %v1121 = vld [vmem:[#allocation13] sm:$0x1]
        %vm1122 = vcmask 261120
        %v1123 = vsel %vm1122, %v1115, 0.0
        %1124 = vadd.xlane.f32.xlu0 %v1123
        %v1125 = vpop.xlane.xlu0 %1124
        %v1126 = vrcp.pop 32.0
        %v1127 = vmul.f32 %v1125, %v1126
        %v1128 = vsub.f32 %v1115, %v1127
        %v1129 = vmul.f32 %v1128, %v1128
        %v1130 = vsel %vm1122, %v1129, 0.0
        %1131 = vadd.xlane.f32.xlu0 %v1130
        %v1132 = vpop.xlane.xlu0 %1131
        %v1133 = vmul.f32 %v1132, %v1126
        %v1134 = vadd.f32 %v1133, 1e-05
        %v1135 = vrsqrt.pop %v1134
        %v1136 = vmul.f32 %v1128, %v1135
        %v1138 = vlaneseq
        %v1139 = vshrl.u32 %v1138, 7
        %v1140 = vsub.s32 0, %v1139
        %v1141 = vrot.slane %v1120, %v1140
        %v1143 = vmul.f32 %v1136, %v1141
        %v1145 = vlaneseq
        %v1146 = vshrl.u32 %v1145, 7
        %v1147 = vsub.s32 0, %v1146
        %v1148 = vrot.slane %v1121, %v1147
        %v1150 = vadd.f32 %v1143, %v1148
        %v1151 = vpack.c.bf16 %v1150, %v1150
        %v1152 = vld [vmem:[%s9] sm:$0xf]
        %v1153 = vld [vmem:[%s9 + $0x4] sm:$0xf]
        %v1154 = vld [vmem:[%s9 + $0x8] sm:$0xf]
        %v1155 = vld [vmem:[%s9 + $0xc] sm:$0xf]
        %v1156 = vld [vmem:[#allocation5] sm:$0x1]
        %v1158 = vlaneseq
        %v1159 = vshrl.u32 %v1158, 7
        %v1160 = vsub.s32 0, %v1159
        %v1161 = vrot.slane %v1156, %v1160
        %v1167 = vunpack.c.l.b16 %v1152
        %v1168 = vunpack.c.l.b16 %v1153
        %v1169 = vunpack.c.l.b16 %v1154
        %v1170 = vunpack.c.l.b16 %v1155
        %v1171 = vpack.c.b16 %v1168, %v1167
        %v1172 = vpack.c.b16 %v1170, %v1169
        %v1176 = vsel %vm1122, %v1151, 0
        %1178 = vmatprep.subr.bf16.mxu0 0
        %1179 = vmatpush1.bf16.msra.mxu0 %v1171
        %1180 = vmatprep.subr.bf16.mxu0 0
        %1181 = vmatpush1.bf16.msra.mxu0 %v1172
        %1182 = vmatprep.subr.bf16.mxu0 0
        %1183 = vmatpush1.bf16.msra.mxu0 0
        %1184 = vmatprep.subr.bf16.mxu0 0
        %1185 = vmatpush1.bf16.msra.mxu0 0
        %1186 = vmatprep.subr.bf16.mxu0 0
        %1187 = vmatpush1.bf16.msra.mxu0 0
        %1188 = vmatprep.subr.bf16.mxu0 0
        %1189 = vmatpush1.bf16.msra.mxu0 0
        %1190 = vmatprep.subr.bf16.mxu0 0
        %1191 = vmatpush1.bf16.msra.mxu0 0
        %1192 = vmatprep.subr.bf16.mxu0 0
        %1193 = vmatpush1.bf16.msra.mxu0 0
        %1194 = vmatprep.subr.bf16.mxu0 0
        %1195 = vmatpush1.bf16.msra.mxu0 0
        %1196 = vmatprep.subr.bf16.mxu0 0
        %1197 = vmatpush1.bf16.msra.mxu0 0
        %1198 = vmatprep.subr.bf16.mxu0 0
        %1199 = vmatpush1.bf16.msra.mxu0 0
        %1200 = vmatprep.subr.bf16.mxu0 0
        %1201 = vmatpush1.bf16.msra.mxu0 0
        %1202 = vmatprep.subr.bf16.mxu0 0
        %1203 = vmatpush1.bf16.msra.mxu0 0
        %1204 = vmatprep.subr.bf16.mxu0 0
        %1205 = vmatpush1.bf16.msra.mxu0 0
        %1206 = vmatprep.subr.bf16.mxu0 0
        %1207 = vmatpush1.bf16.msra.mxu0 0
        %1208 = vmatprep.subr.bf16.mxu0 0
        %1209 = vmatpush1.bf16.msra.mxu0 0
        %1210 = vmatprep.mubr.bf16.mxu0 0
        %1211 = vmatmul.mubr.bf16.gmra.mrb[0].mxu0 %v1176
        %v1212 = vpop.f32.mrb[0].mxu0
        %v1213 = vadd.f32 %v1161, %v1212
        %v1214 = vpop.f32.mrb[0].mxu0
        %v1215 = vpop.f32.mrb[0].mxu0
        %v1216 = vpop.f32.mrb[0].mxu0
        %1217 = vdwg.mxu0
        %v1218 = vld [vmem:[%s13] sm:$0xf]
        %v1219 = vld [vmem:[%s13 + $0x4] sm:$0xf]
        %v1220 = vld [vmem:[%s13 + $0x8] sm:$0xf]
        %v1221 = vld [vmem:[%s13 + $0xc] sm:$0xf]
        %v1222 = vld [vmem:[#allocation7] sm:$0x1]
        %v1224 = vlaneseq
        %v1225 = vshrl.u32 %v1224, 7
        %v1226 = vsub.s32 0, %v1225
        %v1227 = vrot.slane %v1222, %v1226
        %v1233 = vunpack.c.l.b16 %v1218
        %v1234 = vunpack.c.l.b16 %v1219
        %v1235 = vunpack.c.l.b16 %v1220
        %v1236 = vunpack.c.l.b16 %v1221
        %v1237 = vpack.c.b16 %v1234, %v1233
        %v1238 = vpack.c.b16 %v1236, %v1235
        %1241 = vmatprep.subr.bf16.mxu0 0
        %1242 = vmatpush1.bf16.msra.mxu0 %v1237
        %1243 = vmatprep.subr.bf16.mxu0 0
        %1244 = vmatpush1.bf16.msra.mxu0 %v1238
        %1245 = vmatprep.subr.bf16.mxu0 0
        %1246 = vmatpush1.bf16.msra.mxu0 0
        %1247 = vmatprep.subr.bf16.mxu0 0
        %1248 = vmatpush1.bf16.msra.mxu0 0
        %1249 = vmatprep.subr.bf16.mxu0 0
        %1250 = vmatpush1.bf16.msra.mxu0 0
        %1251 = vmatprep.subr.bf16.mxu0 0
        %1252 = vmatpush1.bf16.msra.mxu0 0
        %1253 = vmatprep.subr.bf16.mxu0 0
        %1254 = vmatpush1.bf16.msra.mxu0 0
        %1255 = vmatprep.subr.bf16.mxu0 0
        %1256 = vmatpush1.bf16.msra.mxu0 0
        %1257 = vmatprep.subr.bf16.mxu0 0
        %1258 = vmatpush1.bf16.msra.mxu0 0
        %1259 = vmatprep.subr.bf16.mxu0 0
        %1260 = vmatpush1.bf16.msra.mxu0 0
        %1261 = vmatprep.subr.bf16.mxu0 0
        %1262 = vmatpush1.bf16.msra.mxu0 0
        %1263 = vmatprep.subr.bf16.mxu0 0
        %1264 = vmatpush1.bf16.msra.mxu0 0
        %1265 = vmatprep.subr.bf16.mxu0 0
        %1266 = vmatpush1.bf16.msra.mxu0 0
        %1267 = vmatprep.subr.bf16.mxu0 0
        %1268 = vmatpush1.bf16.msra.mxu0 0
        %1269 = vmatprep.subr.bf16.mxu0 0
        %1270 = vmatpush1.bf16.msra.mxu0 0
        %1271 = vmatprep.subr.bf16.mxu0 0
        %1272 = vmatpush1.bf16.msra.mxu0 0
        %1273 = vmatprep.mubr.bf16.mxu0 0
        %1274 = vmatmul.mubr.bf16.gmra.mrb[0].mxu0 %v1176
        %v1275 = vpop.f32.mrb[0].mxu0
        %v1276 = vadd.f32 %v1227, %v1275
        %v1277 = vpop.f32.mrb[0].mxu0
        %v1278 = vpop.f32.mrb[0].mxu0
        %v1279 = vpop.f32.mrb[0].mxu0
        %1280 = vdwg.mxu0
        %v1281 = vld [vmem:[%s17] sm:$0xf]
        %v1282 = vld [vmem:[%s17 + $0x4] sm:$0xf]
        %v1283 = vld [vmem:[%s17 + $0x8] sm:$0xf]
        %v1284 = vld [vmem:[%s17 + $0xc] sm:$0xf]
        %v1285 = vld [vmem:[#allocation8] sm:$0x1]
        %v1287 = vlaneseq
        %v1288 = vshrl.u32 %v1287, 7
        %v1289 = vsub.s32 0, %v1288
        %v1290 = vrot.slane %v1285, %v1289
        %v1296 = vunpack.c.l.b16 %v1281
        %v1297 = vunpack.c.l.b16 %v1282
        %v1298 = vunpack.c.l.b16 %v1283
        %v1299 = vunpack.c.l.b16 %v1284
        %v1300 = vpack.c.b16 %v1297, %v1296
        %v1301 = vpack.c.b16 %v1299, %v1298
        %1304 = vmatprep.subr.bf16.mxu0 0
        %1305 = vmatpush1.bf16.msra.mxu0 %v1300
        %1306 = vmatprep.subr.bf16.mxu0 0
        %1307 = vmatpush1.bf16.msra.mxu0 %v1301
        %1308 = vmatprep.subr.bf16.mxu0 0
        %1309 = vmatpush1.bf16.msra.mxu0 0
        %1310 = vmatprep.subr.bf16.mxu0 0
        %1311 = vmatpush1.bf16.msra.mxu0 0
        %1312 = vmatprep.subr.bf16.mxu0 0
        %1313 = vmatpush1.bf16.msra.mxu0 0
        %1314 = vmatprep.subr.bf16.mxu0 0
        %1315 = vmatpush1.bf16.msra.mxu0 0
        %1316 = vmatprep.subr.bf16.mxu0 0
        %1317 = vmatpush1.bf16.msra.mxu0 0
        %1318 = vmatprep.subr.bf16.mxu0 0
        %1319 = vmatpush1.bf16.msra.mxu0 0
        %1320 = vmatprep.subr.bf16.mxu0 0
        %1321 = vmatpush1.bf16.msra.mxu0 0
        %1322 = vmatprep.subr.bf16.mxu0 0
        %1323 = vmatpush1.bf16.msra.mxu0 0
        %1324 = vmatprep.subr.bf16.mxu0 0
        %1325 = vmatpush1.bf16.msra.mxu0 0
        %1326 = vmatprep.subr.bf16.mxu0 0
        %1327 = vmatpush1.bf16.msra.mxu0 0
        %1328 = vmatprep.subr.bf16.mxu0 0
        %1329 = vmatpush1.bf16.msra.mxu0 0
        %1330 = vmatprep.subr.bf16.mxu0 0
        %1331 = vmatpush1.bf16.msra.mxu0 0
        %1332 = vmatprep.subr.bf16.mxu0 0
        %1333 = vmatpush1.bf16.msra.mxu0 0
        %1334 = vmatprep.subr.bf16.mxu0 0
        %1335 = vmatpush1.bf16.msra.mxu0 0
        %1336 = vmatprep.mubr.bf16.mxu0 0
        %1337 = vmatmul.mubr.bf16.gmra.mrb[0].mxu0 %v1176
        %v1338 = vpop.f32.mrb[0].mxu0
        %v1339 = vadd.f32 %v1290, %v1338
        %v1340 = vpop.f32.mrb[0].mxu0
        %v1341 = vpop.f32.mrb[0].mxu0
        %v1342 = vpop.f32.mrb[0].mxu0
        %1343 = vdwg.mxu0
        %v1344 = vld [vmem:[%s21] sm:$0xf]
        %v1345 = vld [vmem:[%s21 + $0x4] sm:$0xf]
        %v1346 = vld [vmem:[%s21 + $0x8] sm:$0xf]
        %v1347 = vld [vmem:[%s21 + $0xc] sm:$0xf]
        %v1348 = vld [vmem:[#allocation10] sm:$0x1]
        %1350 = vrot.lane.b32.xlu0 %v1213, 120
        %v1351 = vpop.permute.xlu0 %1350
        %1353 = vrot.lane.b32.xlu0 %v1213, 112
        %v1354 = vpop.permute.xlu0 %1353
        %1356 = vrot.lane.b32.xlu0 %v1213, 104
        %v1357 = vpop.permute.xlu0 %1356
        %v1359 = vcombine.low %v1213, %v1354
        %v1360 = vcombine.high %v1213, %v1354
        %v1362 = vunpack.c.l.s4 1983009808
        %v1363 = vunpack.c.0.s8 %v1362
        %v1364 = vlaneseq
        %v1365 = vshrl.u32 %v1364, 7
        %v1366 = vsub.s32 %v1363, %v1365
        %v1367 = vrot.slane %v1359, %v1366
        %v1369 = vunpack.c.l.s4 1983009808
        %v1370 = vunpack.c.0.s8 %v1369
        %v1371 = vlaneseq
        %v1372 = vshrl.u32 %v1371, 7
        %v1373 = vsub.s32 %v1370, %v1372
        %v1374 = vrot.slane %v1360, %v1373
        %v1375 = vcombine.low %v1351, %v1357
        %v1376 = vcombine.high %v1351, %v1357
        %v1378 = vunpack.c.l.s4 1983009808
        %v1379 = vunpack.c.0.s8 %v1378
        %v1380 = vlaneseq
        %v1381 = vshrl.u32 %v1380, 7
        %v1382 = vsub.s32 %v1379, %v1381
        %v1383 = vrot.slane %v1375, %v1382
        %v1385 = vunpack.c.l.s4 1983009808
        %v1386 = vunpack.c.0.s8 %v1385
        %v1387 = vlaneseq
        %v1388 = vshrl.u32 %v1387, 7
        %v1389 = vsub.s32 %v1386, %v1388
        %v1390 = vrot.slane %v1376, %v1389
        %v1391 = vcombine.low %v1367, %v1383
        %v1392 = vcombine.high %v1367, %v1383
        %v1394 = vunpack.c.l.s4 1934713408
        %v1395 = vunpack.c.0.s8 %v1394
        %v1396 = vlaneseq
        %v1397 = vshrl.u32 %v1396, 7
        %v1398 = vsub.s32 %v1395, %v1397
        %v1399 = vrot.slane %v1391, %v1398
        %v1401 = vunpack.c.l.s4 1934713408
        %v1402 = vunpack.c.0.s8 %v1401
        %v1403 = vlaneseq
        %v1404 = vshrl.u32 %v1403, 7
        %v1405 = vsub.s32 %v1402, %v1404
        %v1406 = vrot.slane %v1392, %v1405
        %v1407 = vcombine.low %v1374, %v1390
        %v1408 = vcombine.high %v1374, %v1390
        %v1410 = vunpack.c.l.s4 1934713408
        %v1411 = vunpack.c.0.s8 %v1410
        %v1412 = vlaneseq
        %v1413 = vshrl.u32 %v1412, 7
        %v1414 = vsub.s32 %v1411, %v1413
        %v1415 = vrot.slane %v1407, %v1414
        %v1417 = vunpack.c.l.s4 1934713408
        %v1418 = vunpack.c.0.s8 %v1417
        %v1419 = vlaneseq
        %v1420 = vshrl.u32 %v1419, 7
        %v1421 = vsub.s32 %v1418, %v1420
        %v1422 = vrot.slane %v1408, %v1421
        %v1423 = vcombine.high %v1399, 0.0
        %v1424 = vcombine.high %v1406, 0.0
        %v1425 = vcombine.high %v1415, 0.0
        %v1426 = vcombine.high %v1422, 0.0
        %v1427 = vcombine.low %v1399, %v1406
        %v1429 = vunpack.c.l.s4 1983009808
        %v1430 = vunpack.c.0.s8 %v1429
        %v1431 = vlaneseq
        %v1432 = vshrl.u32 %v1431, 7
        %v1433 = vsub.s32 %v1430, %v1432
        %v1434 = vrot.slane %v1427, %v1433
        %v1435 = vcombine.low %v1423, %v1424
        %v1437 = vunpack.c.l.s4 1983009808
        %v1438 = vunpack.c.0.s8 %v1437
        %v1439 = vlaneseq
        %v1440 = vshrl.u32 %v1439, 7
        %v1441 = vsub.s32 %v1438, %v1440
        %v1442 = vrot.slane %v1435, %v1441
        %v1443 = vcombine.low %v1415, %v1422
        %v1445 = vunpack.c.l.s4 1983009808
        %v1446 = vunpack.c.0.s8 %v1445
        %v1447 = vlaneseq
        %v1448 = vshrl.u32 %v1447, 7
        %v1449 = vsub.s32 %v1446, %v1448
        %v1450 = vrot.slane %v1443, %v1449
        %v1451 = vcombine.low %v1425, %v1426
        %v1453 = vunpack.c.l.s4 1983009808
        %v1454 = vunpack.c.0.s8 %v1453
        %v1455 = vlaneseq
        %v1456 = vshrl.u32 %v1455, 7
        %v1457 = vsub.s32 %v1454, %v1456
        %v1458 = vrot.slane %v1451, %v1457
        %v1459 = vcombine.low %v1434, %v1442
        %v1460 = vcombine.high %v1434, %v1442
        %v1462 = vunpack.c.l.s4 1934713408
        %v1463 = vunpack.c.0.s8 %v1462
        %v1464 = vlaneseq
        %v1465 = vshrl.u32 %v1464, 7
        %v1466 = vsub.s32 %v1463, %v1465
        %v1467 = vrot.slane %v1459, %v1466
        %v1469 = vunpack.c.l.s4 1934713408
        %v1470 = vunpack.c.0.s8 %v1469
        %v1471 = vlaneseq
        %v1472 = vshrl.u32 %v1471, 7
        %v1473 = vsub.s32 %v1470, %v1472
        %v1474 = vrot.slane %v1460, %v1473
        %v1475 = vcombine.low %v1450, %v1458
        %v1476 = vcombine.high %v1450, %v1458
        %v1478 = vunpack.c.l.s4 1934713408
        %v1479 = vunpack.c.0.s8 %v1478
        %v1480 = vlaneseq
        %v1481 = vshrl.u32 %v1480, 7
        %v1482 = vsub.s32 %v1479, %v1481
        %v1483 = vrot.slane %v1475, %v1482
        %v1485 = vunpack.c.l.s4 1934713408
        %v1486 = vunpack.c.0.s8 %v1485
        %v1487 = vlaneseq
        %v1488 = vshrl.u32 %v1487, 7
        %v1489 = vsub.s32 %v1486, %v1488
        %v1490 = vrot.slane %v1476, %v1489
        %v1491 = vcombine.low %v1467, %v1483
        %v1492 = vcombine.high %v1467, %v1483
        %v1493 = vcombine.low %v1474, %v1490
        %v1494 = vcombine.high %v1474, %v1490
        %v1495 = vpack.c.bf16 %v1491, %v1491
        %v1496 = vpack.c.bf16 %v1492, %v1492
        %v1497 = vpack.c.bf16 %v1493, %v1493
        %v1498 = vpack.c.bf16 %v1494, %v1494
        %1500 = vrot.lane.b32.xlu0 %v1276, 120
        %v1501 = vpop.permute.xlu0 %1500
        %1503 = vrot.lane.b32.xlu0 %v1276, 112
        %v1504 = vpop.permute.xlu0 %1503
        %1506 = vrot.lane.b32.xlu0 %v1276, 104
        %v1507 = vpop.permute.xlu0 %1506
        %v1509 = vcombine.low %v1276, %v1504
        %v1510 = vcombine.high %v1276, %v1504
        %v1512 = vunpack.c.l.s4 1983009808
        %v1513 = vunpack.c.0.s8 %v1512
        %v1514 = vlaneseq
        %v1515 = vshrl.u32 %v1514, 7
        %v1516 = vsub.s32 %v1513, %v1515
        %v1517 = vrot.slane %v1509, %v1516
        %v1519 = vunpack.c.l.s4 1983009808
        %v1520 = vunpack.c.0.s8 %v1519
        %v1521 = vlaneseq
        %v1522 = vshrl.u32 %v1521, 7
        %v1523 = vsub.s32 %v1520, %v1522
        %v1524 = vrot.slane %v1510, %v1523
        %v1525 = vcombine.low %v1501, %v1507
        %v1526 = vcombine.high %v1501, %v1507
        %v1528 = vunpack.c.l.s4 1983009808
        %v1529 = vunpack.c.0.s8 %v1528
        %v1530 = vlaneseq
        %v1531 = vshrl.u32 %v1530, 7
        %v1532 = vsub.s32 %v1529, %v1531
        %v1533 = vrot.slane %v1525, %v1532
        %v1535 = vunpack.c.l.s4 1983009808
        %v1536 = vunpack.c.0.s8 %v1535
        %v1537 = vlaneseq
        %v1538 = vshrl.u32 %v1537, 7
        %v1539 = vsub.s32 %v1536, %v1538
        %v1540 = vrot.slane %v1526, %v1539
        %v1541 = vcombine.low %v1517, %v1533
        %v1542 = vcombine.high %v1517, %v1533
        %v1544 = vunpack.c.l.s4 1934713408
        %v1545 = vunpack.c.0.s8 %v1544
        %v1546 = vlaneseq
        %v1547 = vshrl.u32 %v1546, 7
        %v1548 = vsub.s32 %v1545, %v1547
        %v1549 = vrot.slane %v1541, %v1548
        %v1551 = vunpack.c.l.s4 1934713408
        %v1552 = vunpack.c.0.s8 %v1551
        %v1553 = vlaneseq
        %v1554 = vshrl.u32 %v1553, 7
        %v1555 = vsub.s32 %v1552, %v1554
        %v1556 = vrot.slane %v1542, %v1555
        %v1557 = vcombine.low %v1524, %v1540
        %v1558 = vcombine.high %v1524, %v1540
        %v1560 = vunpack.c.l.s4 1934713408
        %v1561 = vunpack.c.0.s8 %v1560
        %v1562 = vlaneseq
        %v1563 = vshrl.u32 %v1562, 7
        %v1564 = vsub.s32 %v1561, %v1563
        %v1565 = vrot.slane %v1557, %v1564
        %v1567 = vunpack.c.l.s4 1934713408
        %v1568 = vunpack.c.0.s8 %v1567
        %v1569 = vlaneseq
        %v1570 = vshrl.u32 %v1569, 7
        %v1571 = vsub.s32 %v1568, %v1570
        %v1572 = vrot.slane %v1558, %v1571
        %v1573 = vcombine.high %v1549, 0.0
        %v1574 = vcombine.high %v1556, 0.0
        %v1575 = vcombine.high %v1565, 0.0
        %v1576 = vcombine.high %v1572, 0.0
        %v1577 = vcombine.low %v1549, %v1556
        %v1579 = vunpack.c.l.s4 1983009808
        %v1580 = vunpack.c.0.s8 %v1579
        %v1581 = vlaneseq
        %v1582 = vshrl.u32 %v1581, 7
        %v1583 = vsub.s32 %v1580, %v1582
        %v1584 = vrot.slane %v1577, %v1583
        %v1585 = vcombine.low %v1573, %v1574
        %v1587 = vunpack.c.l.s4 1983009808
        %v1588 = vunpack.c.0.s8 %v1587
        %v1589 = vlaneseq
        %v1590 = vshrl.u32 %v1589, 7
        %v1591 = vsub.s32 %v1588, %v1590
        %v1592 = vrot.slane %v1585, %v1591
        %v1593 = vcombine.low %v1565, %v1572
        %v1595 = vunpack.c.l.s4 1983009808
        %v1596 = vunpack.c.0.s8 %v1595
        %v1597 = vlaneseq
        %v1598 = vshrl.u32 %v1597, 7
        %v1599 = vsub.s32 %v1596, %v1598
        %v1600 = vrot.slane %v1593, %v1599
        %v1601 = vcombine.low %v1575, %v1576
        %v1603 = vunpack.c.l.s4 1983009808
        %v1604 = vunpack.c.0.s8 %v1603
        %v1605 = vlaneseq
        %v1606 = vshrl.u32 %v1605, 7
        %v1607 = vsub.s32 %v1604, %v1606
        %v1608 = vrot.slane %v1601, %v1607
        %v1609 = vcombine.low %v1584, %v1592
        %v1610 = vcombine.high %v1584, %v1592
        %v1612 = vunpack.c.l.s4 1934713408
        %v1613 = vunpack.c.0.s8 %v1612
        %v1614 = vlaneseq
        %v1615 = vshrl.u32 %v1614, 7
        %v1616 = vsub.s32 %v1613, %v1615
        %v1617 = vrot.slane %v1609, %v1616
        %v1619 = vunpack.c.l.s4 1934713408
        %v1620 = vunpack.c.0.s8 %v1619
        %v1621 = vlaneseq
        %v1622 = vshrl.u32 %v1621, 7
        %v1623 = vsub.s32 %v1620, %v1622
        %v1624 = vrot.slane %v1610, %v1623
        %v1625 = vcombine.low %v1600, %v1608
        %v1626 = vcombine.high %v1600, %v1608
        %v1628 = vunpack.c.l.s4 1934713408
        %v1629 = vunpack.c.0.s8 %v1628
        %v1630 = vlaneseq
        %v1631 = vshrl.u32 %v1630, 7
        %v1632 = vsub.s32 %v1629, %v1631
        %v1633 = vrot.slane %v1625, %v1632
        %v1635 = vunpack.c.l.s4 1934713408
        %v1636 = vunpack.c.0.s8 %v1635
        %v1637 = vlaneseq
        %v1638 = vshrl.u32 %v1637, 7
        %v1639 = vsub.s32 %v1636, %v1638
        %v1640 = vrot.slane %v1626, %v1639
        %v1641 = vcombine.low %v1617, %v1633
        %v1642 = vcombine.high %v1617, %v1633
        %v1643 = vcombine.low %v1624, %v1640
        %v1644 = vcombine.high %v1624, %v1640
        %v1645 = vpack.c.bf16 %v1641, %v1641
        %v1646 = vpack.c.bf16 %v1642, %v1642
        %v1647 = vpack.c.bf16 %v1643, %v1643
        %v1648 = vpack.c.bf16 %v1644, %v1644
        %1650 = vrot.lane.b32.xlu0 %v1339, 120
        %v1651 = vpop.permute.xlu0 %1650
        %1653 = vrot.lane.b32.xlu0 %v1339, 112
        %v1654 = vpop.permute.xlu0 %1653
        %1656 = vrot.lane.b32.xlu0 %v1339, 104
        %v1657 = vpop.permute.xlu0 %1656
        %v1659 = vcombine.low %v1339, %v1654
        %v1660 = vcombine.high %v1339, %v1654
        %v1662 = vunpack.c.l.s4 1983009808
        %v1663 = vunpack.c.0.s8 %v1662
        %v1664 = vlaneseq
        %v1665 = vshrl.u32 %v1664, 7
        %v1666 = vsub.s32 %v1663, %v1665
        %v1667 = vrot.slane %v1659, %v1666
        %v1669 = vunpack.c.l.s4 1983009808
        %v1670 = vunpack.c.0.s8 %v1669
        %v1671 = vlaneseq
        %v1672 = vshrl.u32 %v1671, 7
        %v1673 = vsub.s32 %v1670, %v1672
        %v1674 = vrot.slane %v1660, %v1673
        %v1675 = vcombine.low %v1651, %v1657
        %v1676 = vcombine.high %v1651, %v1657
        %v1678 = vunpack.c.l.s4 1983009808
        %v1679 = vunpack.c.0.s8 %v1678
        %v1680 = vlaneseq
        %v1681 = vshrl.u32 %v1680, 7
        %v1682 = vsub.s32 %v1679, %v1681
        %v1683 = vrot.slane %v1675, %v1682
        %v1685 = vunpack.c.l.s4 1983009808
        %v1686 = vunpack.c.0.s8 %v1685
        %v1687 = vlaneseq
        %v1688 = vshrl.u32 %v1687, 7
        %v1689 = vsub.s32 %v1686, %v1688
        %v1690 = vrot.slane %v1676, %v1689
        %v1691 = vcombine.low %v1667, %v1683
        %v1692 = vcombine.high %v1667, %v1683
        %v1694 = vunpack.c.l.s4 1934713408
        %v1695 = vunpack.c.0.s8 %v1694
        %v1696 = vlaneseq
        %v1697 = vshrl.u32 %v1696, 7
        %v1698 = vsub.s32 %v1695, %v1697
        %v1699 = vrot.slane %v1691, %v1698
        %v1701 = vunpack.c.l.s4 1934713408
        %v1702 = vunpack.c.0.s8 %v1701
        %v1703 = vlaneseq
        %v1704 = vshrl.u32 %v1703, 7
        %v1705 = vsub.s32 %v1702, %v1704
        %v1706 = vrot.slane %v1692, %v1705
        %v1707 = vcombine.low %v1674, %v1690
        %v1708 = vcombine.high %v1674, %v1690
        %v1710 = vunpack.c.l.s4 1934713408
        %v1711 = vunpack.c.0.s8 %v1710
        %v1712 = vlaneseq
        %v1713 = vshrl.u32 %v1712, 7
        %v1714 = vsub.s32 %v1711, %v1713
        %v1715 = vrot.slane %v1707, %v1714
        %v1717 = vunpack.c.l.s4 1934713408
        %v1718 = vunpack.c.0.s8 %v1717
        %v1719 = vlaneseq
        %v1720 = vshrl.u32 %v1719, 7
        %v1721 = vsub.s32 %v1718, %v1720
        %v1722 = vrot.slane %v1708, %v1721
        %v1723 = vcombine.high %v1699, 0.0
        %v1724 = vcombine.high %v1706, 0.0
        %v1725 = vcombine.high %v1715, 0.0
        %v1726 = vcombine.high %v1722, 0.0
        %v1727 = vcombine.low %v1699, %v1706
        %v1729 = vunpack.c.l.s4 1983009808
        %v1730 = vunpack.c.0.s8 %v1729
        %v1731 = vlaneseq
        %v1732 = vshrl.u32 %v1731, 7
        %v1733 = vsub.s32 %v1730, %v1732
        %v1734 = vrot.slane %v1727, %v1733
        %v1735 = vcombine.low %v1723, %v1724
        %v1737 = vunpack.c.l.s4 1983009808
        %v1738 = vunpack.c.0.s8 %v1737
        %v1739 = vlaneseq
        %v1740 = vshrl.u32 %v1739, 7
        %v1741 = vsub.s32 %v1738, %v1740
        %v1742 = vrot.slane %v1735, %v1741
        %v1743 = vcombine.low %v1715, %v1722
        %v1745 = vunpack.c.l.s4 1983009808
        %v1746 = vunpack.c.0.s8 %v1745
        %v1747 = vlaneseq
        %v1748 = vshrl.u32 %v1747, 7
        %v1749 = vsub.s32 %v1746, %v1748
        %v1750 = vrot.slane %v1743, %v1749
        %v1751 = vcombine.low %v1725, %v1726
        %v1753 = vunpack.c.l.s4 1983009808
        %v1754 = vunpack.c.0.s8 %v1753
        %v1755 = vlaneseq
        %v1756 = vshrl.u32 %v1755, 7
        %v1757 = vsub.s32 %v1754, %v1756
        %v1758 = vrot.slane %v1751, %v1757
        %v1759 = vcombine.low %v1734, %v1742
        %v1760 = vcombine.high %v1734, %v1742
        %v1762 = vunpack.c.l.s4 1934713408
        %v1763 = vunpack.c.0.s8 %v1762
        %v1764 = vlaneseq
        %v1765 = vshrl.u32 %v1764, 7
        %v1766 = vsub.s32 %v1763, %v1765
        %v1767 = vrot.slane %v1759, %v1766
        %v1769 = vunpack.c.l.s4 1934713408
        %v1770 = vunpack.c.0.s8 %v1769
        %v1771 = vlaneseq
        %v1772 = vshrl.u32 %v1771, 7
        %v1773 = vsub.s32 %v1770, %v1772
        %v1774 = vrot.slane %v1760, %v1773
        %v1775 = vcombine.low %v1750, %v1758
        %v1776 = vcombine.high %v1750, %v1758
        %v1778 = vunpack.c.l.s4 1934713408
        %v1779 = vunpack.c.0.s8 %v1778
        %v1780 = vlaneseq
        %v1781 = vshrl.u32 %v1780, 7
        %v1782 = vsub.s32 %v1779, %v1781
        %v1783 = vrot.slane %v1775, %v1782
        %v1785 = vunpack.c.l.s4 1934713408
        %v1786 = vunpack.c.0.s8 %v1785
        %v1787 = vlaneseq
        %v1788 = vshrl.u32 %v1787, 7
        %v1789 = vsub.s32 %v1786, %v1788
        %v1790 = vrot.slane %v1776, %v1789
        %v1791 = vcombine.low %v1767, %v1783
        %v1792 = vcombine.high %v1767, %v1783
        %v1793 = vcombine.low %v1774, %v1790
        %v1794 = vcombine.high %v1774, %v1790
        %v1795 = vpack.c.bf16 %v1791, %v1791
        %v1796 = vpack.c.bf16 %v1792, %v1792
        %v1797 = vpack.c.bf16 %v1793, %v1793
        %v1798 = vpack.c.bf16 %v1794, %v1794
        %vm1799 = vcmask 64512
        %v1801 = vsel %vm1799, %v1495, 0
        %v1804 = vsel %vm1799, %v1645, 0
        %1806 = vmatprep.subr.bf16.mxu0 0
        %1807 = vmatpush1.bf16.xpose.msra.mxu0 %v1804
        %1808 = vmatprep.subr.bf16.mxu0 0
        %1809 = vmatpush1.bf16.xpose.msra.mxu0 0
        %1810 = vmatprep.subr.bf16.mxu0 0
        %1811 = vmatpush1.bf16.xpose.msra.mxu0 0
        %1812 = vmatprep.subr.bf16.mxu0 0
        %1813 = vmatpush1.bf16.xpose.msra.mxu0 0
        %1814 = vmatprep.subr.bf16.mxu0 0
        %1815 = vmatpush1.bf16.xpose.msra.mxu0 0
        %1816 = vmatprep.subr.bf16.mxu0 0
        %1817 = vmatpush1.bf16.xpose.msra.mxu0 0
        %1818 = vmatprep.subr.bf16.mxu0 0
        %1819 = vmatpush1.bf16.xpose.msra.mxu0 0
        %1820 = vmatprep.subr.bf16.mxu0 0
        %1821 = vmatpush1.bf16.xpose.msra.mxu0 0
        %1822 = vmatprep.subr.bf16.mxu0 0
        %1823 = vmatpush1.bf16.xpose.msra.mxu0 0
        %1824 = vmatprep.subr.bf16.mxu0 0
        %1825 = vmatpush1.bf16.xpose.msra.mxu0 0
        %1826 = vmatprep.subr.bf16.mxu0 0
        %1827 = vmatpush1.bf16.xpose.msra.mxu0 0
        %1828 = vmatprep.subr.bf16.mxu0 0
        %1829 = vmatpush1.bf16.xpose.msra.mxu0 0
        %1830 = vmatprep.subr.bf16.mxu0 0
        %1831 = vmatpush1.bf16.xpose.msra.mxu0 0
        %1832 = vmatprep.subr.bf16.mxu0 0
        %1833 = vmatpush1.bf16.xpose.msra.mxu0 0
        %1834 = vmatprep.subr.bf16.mxu0 0
        %1835 = vmatpush1.bf16.xpose.msra.mxu0 0
        %1836 = vmatprep.subr.bf16.mxu0 0
        %1837 = vmatpush1.bf16.xpose.msra.mxu0 0
        %1838 = vmatprep.mubr.bf16.mxu0 0
        %1839 = vmatmul.mubr.bf16.gmra.mrb[0].mxu0 %v1801
        %v1840 = vpop.f32.mrb[0].mxu0
        %v1841 = vadd.f32 0.0, %v1840
        %v1842 = vpop.f32.mrb[0].mxu0
        %v1843 = vpop.f32.mrb[0].mxu0
        %v1844 = vpop.f32.mrb[0].mxu0
        %1845 = vdwg.mxu0
        %v1847 = vsel %vm1799, %v1496, 0
        %v1850 = vsel %vm1799, %v1646, 0
        %1852 = vmatprep.subr.bf16.mxu0 0
        %1853 = vmatpush1.bf16.xpose.msra.mxu0 %v1850
        %1854 = vmatprep.subr.bf16.mxu0 0
        %1855 = vmatpush1.bf16.xpose.msra.mxu0 0
        %1856 = vmatprep.subr.bf16.mxu0 0
        %1857 = vmatpush1.bf16.xpose.msra.mxu0 0
        %1858 = vmatprep.subr.bf16.mxu0 0
        %1859 = vmatpush1.bf16.xpose.msra.mxu0 0
        %1860 = vmatprep.subr.bf16.mxu0 0
        %1861 = vmatpush1.bf16.xpose.msra.mxu0 0
        %1862 = vmatprep.subr.bf16.mxu0 0
        %1863 = vmatpush1.bf16.xpose.msra.mxu0 0
        %1864 = vmatprep.subr.bf16.mxu0 0
        %1865 = vmatpush1.bf16.xpose.msra.mxu0 0
        %1866 = vmatprep.subr.bf16.mxu0 0
        %1867 = vmatpush1.bf16.xpose.msra.mxu0 0
        %1868 = vmatprep.subr.bf16.mxu0 0
        %1869 = vmatpush1.bf16.xpose.msra.mxu0 0
        %1870 = vmatprep.subr.bf16.mxu0 0
        %1871 = vmatpush1.bf16.xpose.msra.mxu0 0
        %1872 = vmatprep.subr.bf16.mxu0 0
        %1873 = vmatpush1.bf16.xpose.msra.mxu0 0
        %1874 = vmatprep.subr.bf16.mxu0 0
        %1875 = vmatpush1.bf16.xpose.msra.mxu0 0
        %1876 = vmatprep.subr.bf16.mxu0 0
        %1877 = vmatpush1.bf16.xpose.msra.mxu0 0
        %1878 = vmatprep.subr.bf16.mxu0 0
        %1879 = vmatpush1.bf16.xpose.msra.mxu0 0
        %1880 = vmatprep.subr.bf16.mxu0 0
        %1881 = vmatpush1.bf16.xpose.msra.mxu0 0
        %1882 = vmatprep.subr.bf16.mxu0 0
        %1883 = vmatpush1.bf16.xpose.msra.mxu0 0
        %1884 = vmatprep.mubr.bf16.mxu0 0
        %1885 = vmatmul.mubr.bf16.gmra.mrb[0].mxu0 %v1847
        %v1886 = vpop.f32.mrb[0].mxu0
        %v1887 = vadd.f32 0.0, %v1886
        %v1888 = vpop.f32.mrb[0].mxu0
        %v1889 = vpop.f32.mrb[0].mxu0
        %v1890 = vpop.f32.mrb[0].mxu0
        %1891 = vdwg.mxu0
        %v1893 = vsel %vm1799, %v1497, 0
        %v1896 = vsel %vm1799, %v1647, 0
        %1898 = vmatprep.subr.bf16.mxu0 0
        %1899 = vmatpush1.bf16.xpose.msra.mxu0 %v1896
        %1900 = vmatprep.subr.bf16.mxu0 0
        %1901 = vmatpush1.bf16.xpose.msra.mxu0 0
        %1902 = vmatprep.subr.bf16.mxu0 0
        %1903 = vmatpush1.bf16.xpose.msra.mxu0 0
        %1904 = vmatprep.subr.bf16.mxu0 0
        %1905 = vmatpush1.bf16.xpose.msra.mxu0 0
        %1906 = vmatprep.subr.bf16.mxu0 0
        %1907 = vmatpush1.bf16.xpose.msra.mxu0 0
        %1908 = vmatprep.subr.bf16.mxu0 0
        %1909 = vmatpush1.bf16.xpose.msra.mxu0 0
        %1910 = vmatprep.subr.bf16.mxu0 0
        %1911 = vmatpush1.bf16.xpose.msra.mxu0 0
        %1912 = vmatprep.subr.bf16.mxu0 0
        %1913 = vmatpush1.bf16.xpose.msra.mxu0 0
        %1914 = vmatprep.subr.bf16.mxu0 0
        %1915 = vmatpush1.bf16.xpose.msra.mxu0 0
        %1916 = vmatprep.subr.bf16.mxu0 0
        %1917 = vmatpush1.bf16.xpose.msra.mxu0 0
        %1918 = vmatprep.subr.bf16.mxu0 0
        %1919 = vmatpush1.bf16.xpose.msra.mxu0 0
        %1920 = vmatprep.subr.bf16.mxu0 0
        %1921 = vmatpush1.bf16.xpose.msra.mxu0 0
        %1922 = vmatprep.subr.bf16.mxu0 0
        %1923 = vmatpush1.bf16.xpose.msra.mxu0 0
        %1924 = vmatprep.subr.bf16.mxu0 0
        %1925 = vmatpush1.bf16.xpose.msra.mxu0 0
        %1926 = vmatprep.subr.bf16.mxu0 0
        %1927 = vmatpush1.bf16.xpose.msra.mxu0 0
        %1928 = vmatprep.subr.bf16.mxu0 0
        %1929 = vmatpush1.bf16.xpose.msra.mxu0 0
        %1930 = vmatprep.mubr.bf16.mxu0 0
        %1931 = vmatmul.mubr.bf16.gmra.mrb[0].mxu0 %v1893
        %v1932 = vpop.f32.mrb[0].mxu0
        %v1933 = vadd.f32 0.0, %v1932
        %v1934 = vpop.f32.mrb[0].mxu0
        %v1935 = vpop.f32.mrb[0].mxu0
        %v1936 = vpop.f32.mrb[0].mxu0
        %1937 = vdwg.mxu0
        %v1939 = vsel %vm1799, %v1498, 0
        %v1942 = vsel %vm1799, %v1648, 0
        %1944 = vmatprep.subr.bf16.mxu0 0
        %1945 = vmatpush1.bf16.xpose.msra.mxu0 %v1942
        %1946 = vmatprep.subr.bf16.mxu0 0
        %1947 = vmatpush1.bf16.xpose.msra.mxu0 0
        %1948 = vmatprep.subr.bf16.mxu0 0
        %1949 = vmatpush1.bf16.xpose.msra.mxu0 0
        %1950 = vmatprep.subr.bf16.mxu0 0
        %1951 = vmatpush1.bf16.xpose.msra.mxu0 0
        %1952 = vmatprep.subr.bf16.mxu0 0
        %1953 = vmatpush1.bf16.xpose.msra.mxu0 0
        %1954 = vmatprep.subr.bf16.mxu0 0
        %1955 = vmatpush1.bf16.xpose.msra.mxu0 0
        %1956 = vmatprep.subr.bf16.mxu0 0
        %1957 = vmatpush1.bf16.xpose.msra.mxu0 0
        %1958 = vmatprep.subr.bf16.mxu0 0
        %1959 = vmatpush1.bf16.xpose.msra.mxu0 0
        %1960 = vmatprep.subr.bf16.mxu0 0
        %1961 = vmatpush1.bf16.xpose.msra.mxu0 0
        %1962 = vmatprep.subr.bf16.mxu0 0
        %1963 = vmatpush1.bf16.xpose.msra.mxu0 0
        %1964 = vmatprep.subr.bf16.mxu0 0
        %1965 = vmatpush1.bf16.xpose.msra.mxu0 0
        %1966 = vmatprep.subr.bf16.mxu0 0
        %1967 = vmatpush1.bf16.xpose.msra.mxu0 0
        %1968 = vmatprep.subr.bf16.mxu0 0
        %1969 = vmatpush1.bf16.xpose.msra.mxu0 0
        %1970 = vmatprep.subr.bf16.mxu0 0
        %1971 = vmatpush1.bf16.xpose.msra.mxu0 0
        %1972 = vmatprep.subr.bf16.mxu0 0
        %1973 = vmatpush1.bf16.xpose.msra.mxu0 0
        %1974 = vmatprep.subr.bf16.mxu0 0
        %1975 = vmatpush1.bf16.xpose.msra.mxu0 0
        %1976 = vmatprep.mubr.bf16.mxu0 0
        %1977 = vmatmul.mubr.bf16.gmra.mrb[0].mxu0 %v1939
        %v1978 = vpop.f32.mrb[0].mxu0
        %v1979 = vadd.f32 0.0, %v1978
        %v1980 = vpop.f32.mrb[0].mxu0
        %v1981 = vpop.f32.mrb[0].mxu0
        %v1982 = vpop.f32.mrb[0].mxu0
        %1983 = vdwg.mxu0
        %v1984 = vmul.f32 %v1841, 0.35355338
        %v1985 = vmul.f32 %v1887, 0.35355338
        %v1986 = vmul.f32 %v1933, 0.35355338
        %v1987 = vmul.f32 %v1979, 0.35355338
        %v1988 = vadd.f32 %v1984, %v1116
        %v1989 = vadd.f32 %v1985, %v1116
        %v1990 = vadd.f32 %v1986, %v1116
        %v1991 = vadd.f32 %v1987, %v1116
        %v1992 = vsel %vm1799, %v1988, -inf
        %1993 = vmax.xlane.f32.xlu0 %v1992
        %v1994 = vpop.xlane.xlu0 %1993
        %v1995 = vsel %vm1799, %v1989, -inf
        %1996 = vmax.xlane.f32.xlu0 %v1995
        %v1997 = vpop.xlane.xlu0 %1996
        %v1998 = vsel %vm1799, %v1990, -inf
        %1999 = vmax.xlane.f32.xlu0 %v1998
        %v2000 = vpop.xlane.xlu0 %1999
        %v2001 = vsel %vm1799, %v1991, -inf
        %2002 = vmax.xlane.f32.xlu0 %v2001
        %v2003 = vpop.xlane.xlu0 %2002
        %v2004 = vsub.f32 %v1988, %v1994
        %v2005 = vsub.f32 %v1989, %v1997
        %v2006 = vsub.f32 %v1990, %v2000
        %v2007 = vsub.f32 %v1991, %v2003
        %v2008 = vmul.f32 %v2004, 1.442695
        %v2009 = vpow.pop %v2008
        %v2010 = vmul.f32 %v2005, 1.442695
        %v2011 = vpow.pop %v2010
        %v2012 = vmul.f32 %v2006, 1.442695
        %v2013 = vpow.pop %v2012
        %v2014 = vmul.f32 %v2007, 1.442695
        %v2015 = vpow.pop %v2014
        %v2016 = vsel %vm1799, %v2009, 0.0
        %2017 = vadd.xlane.f32.xlu0 %v2016
        %v2018 = vpop.xlane.xlu0 %2017
        %v2019 = vsel %vm1799, %v2011, 0.0
        %2020 = vadd.xlane.f32.xlu0 %v2019
        %v2021 = vpop.xlane.xlu0 %2020
        %v2022 = vsel %vm1799, %v2013, 0.0
        %2023 = vadd.xlane.f32.xlu0 %v2022
        %v2024 = vpop.xlane.xlu0 %2023
        %v2025 = vsel %vm1799, %v2015, 0.0
        %2026 = vadd.xlane.f32.xlu0 %v2025
        %v2027 = vpop.xlane.xlu0 %2026
        %v2028 = vrcp.pop %v2018
        %v2029 = vrcp.pop %v2021
        %v2030 = vrcp.pop %v2024
        %v2031 = vrcp.pop %v2027
        %v2032 = vmul.f32 %v2009, %v2028
        %v2033 = vmul.f32 %v2011, %v2029
        %v2034 = vmul.f32 %v2013, %v2030
        %v2035 = vmul.f32 %v2015, %v2031
        %v2036 = vpack.c.bf16 %v2032, %v2032
        %v2037 = vpack.c.bf16 %v2033, %v2033
        %v2038 = vpack.c.bf16 %v2034, %v2034
        %v2039 = vpack.c.bf16 %v2035, %v2035
        %v2041 = vsel %vm1799, %v2036, 0
        %vm2043 = vcmask 1043456
        %v2045 = vsel %vm2043, %v1795, 0
        %2047 = vmatprep.subr.bf16.mxu0 0
        %2048 = vmatpush1.bf16.msra.mxu0 %v2045
        %2049 = vmatprep.subr.bf16.mxu0 0
        %2050 = vmatpush1.bf16.msra.mxu0 0
        %2051 = vmatprep.subr.bf16.mxu0 0
        %2052 = vmatpush1.bf16.msra.mxu0 0
        %2053 = vmatprep.subr.bf16.mxu0 0
        %2054 = vmatpush1.bf16.msra.mxu0 0
        %2055 = vmatprep.subr.bf16.mxu0 0
        %2056 = vmatpush1.bf16.msra.mxu0 0
        %2057 = vmatprep.subr.bf16.mxu0 0
        %2058 = vmatpush1.bf16.msra.mxu0 0
        %2059 = vmatprep.subr.bf16.mxu0 0
        %2060 = vmatpush1.bf16.msra.mxu0 0
        %2061 = vmatprep.subr.bf16.mxu0 0
        %2062 = vmatpush1.bf16.msra.mxu0 0
        %2063 = vmatprep.subr.bf16.mxu0 0
        %2064 = vmatpush1.bf16.msra.mxu0 0
        %2065 = vmatprep.subr.bf16.mxu0 0
        %2066 = vmatpush1.bf16.msra.mxu0 0
        %2067 = vmatprep.subr.bf16.mxu0 0
        %2068 = vmatpush1.bf16.msra.mxu0 0
        %2069 = vmatprep.subr.bf16.mxu0 0
        %2070 = vmatpush1.bf16.msra.mxu0 0
        %2071 = vmatprep.subr.bf16.mxu0 0
        %2072 = vmatpush1.bf16.msra.mxu0 0
        %2073 = vmatprep.subr.bf16.mxu0 0
        %2074 = vmatpush1.bf16.msra.mxu0 0
        %2075 = vmatprep.subr.bf16.mxu0 0
        %2076 = vmatpush1.bf16.msra.mxu0 0
        %2077 = vmatprep.subr.bf16.mxu0 0
        %2078 = vmatpush1.bf16.msra.mxu0 0
        %2079 = vmatprep.mubr.bf16.mxu0 0
        %2080 = vmatmul.mubr.bf16.gmra.mrb[0].mxu0 %v2041
        %v2081 = vpop.f32.mrb[0].mxu0
        %v2082 = vadd.f32 0.0, %v2081
        %v2083 = vpop.f32.mrb[0].mxu0
        %v2084 = vpop.f32.mrb[0].mxu0
        %v2085 = vpop.f32.mrb[0].mxu0
        %2086 = vdwg.mxu0
        %v2088 = vsel %vm1799, %v2037, 0
        %v2091 = vsel %vm2043, %v1796, 0
        %2093 = vmatprep.subr.bf16.mxu0 0
        %2094 = vmatpush1.bf16.msra.mxu0 %v2091
        %2095 = vmatprep.subr.bf16.mxu0 0
        %2096 = vmatpush1.bf16.msra.mxu0 0
        %2097 = vmatprep.subr.bf16.mxu0 0
        %2098 = vmatpush1.bf16.msra.mxu0 0
        %2099 = vmatprep.subr.bf16.mxu0 0
        %2100 = vmatpush1.bf16.msra.mxu0 0
        %2101 = vmatprep.subr.bf16.mxu0 0
        %2102 = vmatpush1.bf16.msra.mxu0 0
        %2103 = vmatprep.subr.bf16.mxu0 0
        %2104 = vmatpush1.bf16.msra.mxu0 0
        %2105 = vmatprep.subr.bf16.mxu0 0
        %2106 = vmatpush1.bf16.msra.mxu0 0
        %2107 = vmatprep.subr.bf16.mxu0 0
        %2108 = vmatpush1.bf16.msra.mxu0 0
        %2109 = vmatprep.subr.bf16.mxu0 0
        %2110 = vmatpush1.bf16.msra.mxu0 0
        %2111 = vmatprep.subr.bf16.mxu0 0
        %2112 = vmatpush1.bf16.msra.mxu0 0
        %2113 = vmatprep.subr.bf16.mxu0 0
        %2114 = vmatpush1.bf16.msra.mxu0 0
        %2115 = vmatprep.subr.bf16.mxu0 0
        %2116 = vmatpush1.bf16.msra.mxu0 0
        %2117 = vmatprep.subr.bf16.mxu0 0
        %2118 = vmatpush1.bf16.msra.mxu0 0
        %2119 = vmatprep.subr.bf16.mxu0 0
        %2120 = vmatpush1.bf16.msra.mxu0 0
        %2121 = vmatprep.subr.bf16.mxu0 0
        %2122 = vmatpush1.bf16.msra.mxu0 0
        %2123 = vmatprep.subr.bf16.mxu0 0
        %2124 = vmatpush1.bf16.msra.mxu0 0
        %2125 = vmatprep.mubr.bf16.mxu0 0
        %2126 = vmatmul.mubr.bf16.gmra.mrb[0].mxu0 %v2088
        %v2127 = vpop.f32.mrb[0].mxu0
        %v2128 = vadd.f32 0.0, %v2127
        %v2129 = vpop.f32.mrb[0].mxu0
        %v2130 = vpop.f32.mrb[0].mxu0
        %v2131 = vpop.f32.mrb[0].mxu0
        %2132 = vdwg.mxu0
        %v2134 = vsel %vm1799, %v2038, 0
        %v2137 = vsel %vm2043, %v1797, 0
        %2139 = vmatprep.subr.bf16.mxu0 0
        %2140 = vmatpush1.bf16.msra.mxu0 %v2137
        %2141 = vmatprep.subr.bf16.mxu0 0
        %2142 = vmatpush1.bf16.msra.mxu0 0
        %2143 = vmatprep.subr.bf16.mxu0 0
        %2144 = vmatpush1.bf16.msra.mxu0 0
        %2145 = vmatprep.subr.bf16.mxu0 0
        %2146 = vmatpush1.bf16.msra.mxu0 0
        %2147 = vmatprep.subr.bf16.mxu0 0
        %2148 = vmatpush1.bf16.msra.mxu0 0
        %2149 = vmatprep.subr.bf16.mxu0 0
        %2150 = vmatpush1.bf16.msra.mxu0 0
        %2151 = vmatprep.subr.bf16.mxu0 0
        %2152 = vmatpush1.bf16.msra.mxu0 0
        %2153 = vmatprep.subr.bf16.mxu0 0
        %2154 = vmatpush1.bf16.msra.mxu0 0
        %2155 = vmatprep.subr.bf16.mxu0 0
        %2156 = vmatpush1.bf16.msra.mxu0 0
        %2157 = vmatprep.subr.bf16.mxu0 0
        %2158 = vmatpush1.bf16.msra.mxu0 0
        %2159 = vmatprep.subr.bf16.mxu0 0
        %2160 = vmatpush1.bf16.msra.mxu0 0
        %2161 = vmatprep.subr.bf16.mxu0 0
        %2162 = vmatpush1.bf16.msra.mxu0 0
        %2163 = vmatprep.subr.bf16.mxu0 0
        %2164 = vmatpush1.bf16.msra.mxu0 0
        %2165 = vmatprep.subr.bf16.mxu0 0
        %2166 = vmatpush1.bf16.msra.mxu0 0
        %2167 = vmatprep.subr.bf16.mxu0 0
        %2168 = vmatpush1.bf16.msra.mxu0 0
        %2169 = vmatprep.subr.bf16.mxu0 0
        %2170 = vmatpush1.bf16.msra.mxu0 0
        %2171 = vmatprep.mubr.bf16.mxu0 0
        %2172 = vmatmul.mubr.bf16.gmra.mrb[0].mxu0 %v2134
        %v2173 = vpop.f32.mrb[0].mxu0
        %v2174 = vadd.f32 0.0, %v2173
        %v2175 = vpop.f32.mrb[0].mxu0
        %v2176 = vpop.f32.mrb[0].mxu0
        %v2177 = vpop.f32.mrb[0].mxu0
        %2178 = vdwg.mxu0
        %v2180 = vsel %vm1799, %v2039, 0
        %v2183 = vsel %vm2043, %v1798, 0
        %2185 = vmatprep.subr.bf16.mxu0 0
        %2186 = vmatpush1.bf16.msra.mxu0 %v2183
        %2187 = vmatprep.subr.bf16.mxu0 0
        %2188 = vmatpush1.bf16.msra.mxu0 0
        %2189 = vmatprep.subr.bf16.mxu0 0
        %2190 = vmatpush1.bf16.msra.mxu0 0
        %2191 = vmatprep.subr.bf16.mxu0 0
        %2192 = vmatpush1.bf16.msra.mxu0 0
        %2193 = vmatprep.subr.bf16.mxu0 0
        %2194 = vmatpush1.bf16.msra.mxu0 0
        %2195 = vmatprep.subr.bf16.mxu0 0
        %2196 = vmatpush1.bf16.msra.mxu0 0
        %2197 = vmatprep.subr.bf16.mxu0 0
        %2198 = vmatpush1.bf16.msra.mxu0 0
        %2199 = vmatprep.subr.bf16.mxu0 0
        %2200 = vmatpush1.bf16.msra.mxu0 0
        %2201 = vmatprep.subr.bf16.mxu0 0
        %2202 = vmatpush1.bf16.msra.mxu0 0
        %2203 = vmatprep.subr.bf16.mxu0 0
        %2204 = vmatpush1.bf16.msra.mxu0 0
        %2205 = vmatprep.subr.bf16.mxu0 0
        %2206 = vmatpush1.bf16.msra.mxu0 0
        %2207 = vmatprep.subr.bf16.mxu0 0
        %2208 = vmatpush1.bf16.msra.mxu0 0
        %2209 = vmatprep.subr.bf16.mxu0 0
        %2210 = vmatpush1.bf16.msra.mxu0 0
        %2211 = vmatprep.subr.bf16.mxu0 0
        %2212 = vmatpush1.bf16.msra.mxu0 0
        %2213 = vmatprep.subr.bf16.mxu0 0
        %2214 = vmatpush1.bf16.msra.mxu0 0
        %2215 = vmatprep.subr.bf16.mxu0 0
        %2216 = vmatpush1.bf16.msra.mxu0 0
        %2217 = vmatprep.mubr.bf16.mxu0 0
        %2218 = vmatmul.mubr.bf16.gmra.mrb[0].mxu0 %v2180
        %v2219 = vpop.f32.mrb[0].mxu0
        %v2220 = vadd.f32 0.0, %v2219
        %v2221 = vpop.f32.mrb[0].mxu0
        %v2222 = vpop.f32.mrb[0].mxu0
        %v2223 = vpop.f32.mrb[0].mxu0
        %2224 = vdwg.mxu0
        %v2225 = vcombine.low %v2082, %v2174
        %v2226 = vcombine.high %v2082, %v2174
        %v2228 = vunpack.c.l.s4 1983009808
        %v2229 = vunpack.c.0.s8 %v2228
        %v2230 = vlaneseq
        %v2231 = vshrl.u32 %v2230, 7
        %v2232 = vsub.s32 %v2229, %v2231
        %v2233 = vrot.slane %v2225, %v2232
        %v2235 = vunpack.c.l.s4 1983009808
        %v2236 = vunpack.c.0.s8 %v2235
        %v2237 = vlaneseq
        %v2238 = vshrl.u32 %v2237, 7
        %v2239 = vsub.s32 %v2236, %v2238
        %v2240 = vrot.slane %v2226, %v2239
        %v2241 = vcombine.low %v2128, %v2220
        %v2242 = vcombine.high %v2128, %v2220
        %v2244 = vunpack.c.l.s4 1983009808
        %v2245 = vunpack.c.0.s8 %v2244
        %v2246 = vlaneseq
        %v2247 = vshrl.u32 %v2246, 7
        %v2248 = vsub.s32 %v2245, %v2247
        %v2249 = vrot.slane %v2241, %v2248
        %v2251 = vunpack.c.l.s4 1983009808
        %v2252 = vunpack.c.0.s8 %v2251
        %v2253 = vlaneseq
        %v2254 = vshrl.u32 %v2253, 7
        %v2255 = vsub.s32 %v2252, %v2254
        %v2256 = vrot.slane %v2242, %v2255
        %v2257 = vcombine.low %v2233, %v2249
        %v2258 = vcombine.high %v2233, %v2249
        %v2260 = vunpack.c.l.s4 1934713408
        %v2261 = vunpack.c.0.s8 %v2260
        %v2262 = vlaneseq
        %v2263 = vshrl.u32 %v2262, 7
        %v2264 = vsub.s32 %v2261, %v2263
        %v2265 = vrot.slane %v2257, %v2264
        %v2267 = vunpack.c.l.s4 1934713408
        %v2268 = vunpack.c.0.s8 %v2267
        %v2269 = vlaneseq
        %v2270 = vshrl.u32 %v2269, 7
        %v2271 = vsub.s32 %v2268, %v2270
        %v2272 = vrot.slane %v2258, %v2271
        %v2273 = vcombine.low %v2240, %v2256
        %v2274 = vcombine.high %v2240, %v2256
        %v2276 = vunpack.c.l.s4 1934713408
        %v2277 = vunpack.c.0.s8 %v2276
        %v2278 = vlaneseq
        %v2279 = vshrl.u32 %v2278, 7
        %v2280 = vsub.s32 %v2277, %v2279
        %v2281 = vrot.slane %v2273, %v2280
        %v2283 = vunpack.c.l.s4 1934713408
        %v2284 = vunpack.c.0.s8 %v2283
        %v2285 = vlaneseq
        %v2286 = vshrl.u32 %v2285, 7
        %v2287 = vsub.s32 %v2284, %v2286
        %v2288 = vrot.slane %v2274, %v2287
        %v2289 = vcombine.high %v2265, 0.0
        %v2290 = vcombine.high %v2272, 0.0
        %v2291 = vcombine.high %v2281, 0.0
        %v2292 = vcombine.high %v2288, 0.0
        %v2293 = vcombine.low %v2265, %v2272
        %v2295 = vunpack.c.l.s4 1983009808
        %v2296 = vunpack.c.0.s8 %v2295
        %v2297 = vlaneseq
        %v2298 = vshrl.u32 %v2297, 7
        %v2299 = vsub.s32 %v2296, %v2298
        %v2300 = vrot.slane %v2293, %v2299
        %v2301 = vcombine.low %v2289, %v2290
        %v2303 = vunpack.c.l.s4 1983009808
        %v2304 = vunpack.c.0.s8 %v2303
        %v2305 = vlaneseq
        %v2306 = vshrl.u32 %v2305, 7
        %v2307 = vsub.s32 %v2304, %v2306
        %v2308 = vrot.slane %v2301, %v2307
        %v2309 = vcombine.low %v2281, %v2288
        %v2311 = vunpack.c.l.s4 1983009808
        %v2312 = vunpack.c.0.s8 %v2311
        %v2313 = vlaneseq
        %v2314 = vshrl.u32 %v2313, 7
        %v2315 = vsub.s32 %v2312, %v2314
        %v2316 = vrot.slane %v2309, %v2315
        %v2317 = vcombine.low %v2291, %v2292
        %v2319 = vunpack.c.l.s4 1983009808
        %v2320 = vunpack.c.0.s8 %v2319
        %v2321 = vlaneseq
        %v2322 = vshrl.u32 %v2321, 7
        %v2323 = vsub.s32 %v2320, %v2322
        %v2324 = vrot.slane %v2317, %v2323
        %v2325 = vcombine.low %v2300, %v2308
        %v2326 = vcombine.high %v2300, %v2308
        %v2328 = vunpack.c.l.s4 1934713408
        %v2329 = vunpack.c.0.s8 %v2328
        %v2330 = vlaneseq
        %v2331 = vshrl.u32 %v2330, 7
        %v2332 = vsub.s32 %v2329, %v2331
        %v2333 = vrot.slane %v2325, %v2332
        %v2335 = vunpack.c.l.s4 1934713408
        %v2336 = vunpack.c.0.s8 %v2335
        %v2337 = vlaneseq
        %v2338 = vshrl.u32 %v2337, 7
        %v2339 = vsub.s32 %v2336, %v2338
        %v2340 = vrot.slane %v2326, %v2339
        %v2341 = vcombine.low %v2316, %v2324
        %v2342 = vcombine.high %v2316, %v2324
        %v2344 = vunpack.c.l.s4 1934713408
        %v2345 = vunpack.c.0.s8 %v2344
        %v2346 = vlaneseq
        %v2347 = vshrl.u32 %v2346, 7
        %v2348 = vsub.s32 %v2345, %v2347
        %v2349 = vrot.slane %v2341, %v2348
        %v2351 = vunpack.c.l.s4 1934713408
        %v2352 = vunpack.c.0.s8 %v2351
        %v2353 = vlaneseq
        %v2354 = vshrl.u32 %v2353, 7
        %v2355 = vsub.s32 %v2352, %v2354
        %v2356 = vrot.slane %v2342, %v2355
        %v2357 = vcombine.low %v2333, %v2349
        %v2358 = vcombine.high %v2333, %v2349
        %v2359 = vcombine.low %v2340, %v2356
        %v2360 = vcombine.high %v2340, %v2356
        %2362 = vrot.lane.b32.xlu0 %v2358, 8
        %v2363 = vpop.permute.xlu0 %2362
        %2366 = vrot.lane.b32.xlu0 %v2359, 16
        %v2367 = vpop.permute.xlu0 %2366
        %2370 = vrot.lane.b32.xlu0 %v2360, 24
        %v2371 = vpop.permute.xlu0 %2370
        %v2373 = vsel %vm1799, %v2357, %v2363
        %vm2374 = vcmask 130048
        %v2375 = vsel %vm2374, %v2373, %v2367
        %vm2376 = vcmask 195584
        %v2377 = vsel %vm2376, %v2375, %v2371
        %v2378 = vpack.c.bf16 %v2377, %v2377
        %v2380 = vlaneseq
        %v2381 = vshrl.u32 %v2380, 7
        %v2382 = vsub.s32 0, %v2381
        %v2383 = vrot.slane %v1348, %v2382
        %v2389 = vunpack.c.l.b16 %v1344
        %v2390 = vunpack.c.l.b16 %v1345
        %v2391 = vunpack.c.l.b16 %v1346
        %v2392 = vunpack.c.l.b16 %v1347
        %v2393 = vpack.c.b16 %v2390, %v2389
        %v2394 = vpack.c.b16 %v2392, %v2391
        %v2398 = vsel %vm1122, %v2378, 0
        %2400 = vmatprep.subr.bf16.mxu0 0
        %2401 = vmatpush1.bf16.msra.mxu0 %v2393
        %2402 = vmatprep.subr.bf16.mxu0 0
        %2403 = vmatpush1.bf16.msra.mxu0 %v2394
        %2404 = vmatprep.subr.bf16.mxu0 0
        %2405 = vmatpush1.bf16.msra.mxu0 0
        %2406 = vmatprep.subr.bf16.mxu0 0
        %2407 = vmatpush1.bf16.msra.mxu0 0
        %2408 = vmatprep.subr.bf16.mxu0 0
        %2409 = vmatpush1.bf16.msra.mxu0 0
        %2410 = vmatprep.subr.bf16.mxu0 0
        %2411 = vmatpush1.bf16.msra.mxu0 0
        %2412 = vmatprep.subr.bf16.mxu0 0
        %2413 = vmatpush1.bf16.msra.mxu0 0
        %2414 = vmatprep.subr.bf16.mxu0 0
        %2415 = vmatpush1.bf16.msra.mxu0 0
        %2416 = vmatprep.subr.bf16.mxu0 0
        %2417 = vmatpush1.bf16.msra.mxu0 0
        %2418 = vmatprep.subr.bf16.mxu0 0
        %2419 = vmatpush1.bf16.msra.mxu0 0
        %2420 = vmatprep.subr.bf16.mxu0 0
        %2421 = vmatpush1.bf16.msra.mxu0 0
        %2422 = vmatprep.subr.bf16.mxu0 0
        %2423 = vmatpush1.bf16.msra.mxu0 0
        %2424 = vmatprep.subr.bf16.mxu0 0
        %2425 = vmatpush1.bf16.msra.mxu0 0
        %2426 = vmatprep.subr.bf16.mxu0 0
        %2427 = vmatpush1.bf16.msra.mxu0 0
        %2428 = vmatprep.subr.bf16.mxu0 0
        %2429 = vmatpush1.bf16.msra.mxu0 0
        %2430 = vmatprep.subr.bf16.mxu0 0
        %2431 = vmatpush1.bf16.msra.mxu0 0
        %2432 = vmatprep.mubr.bf16.mxu0 0
        %2433 = vmatmul.mubr.bf16.gmra.mrb[0].mxu0 %v2398
        %v2434 = vpop.f32.mrb[0].mxu0
        %v2435 = vadd.f32 %v2383, %v2434
        %v2436 = vpop.f32.mrb[0].mxu0
        %v2437 = vpop.f32.mrb[0].mxu0
        %v2438 = vpop.f32.mrb[0].mxu0
        %2439 = vdwg.mxu0
        %v2440 = vadd.f32 %v1115, %v2435
        %v2441 = vld [vmem:[%s45] sm:$0x1]
        %v2442 = vld [vmem:[%s47] sm:$0x1]
        %v2443 = vsel %vm1122, %v2440, 0.0
        %2444 = vadd.xlane.f32.xlu0 %v2443
        %v2445 = vpop.xlane.xlu0 %2444
        %v2446 = vmul.f32 %v2445, %v1126
        %v2447 = vsub.f32 %v2440, %v2446
        %v2448 = vmul.f32 %v2447, %v2447
        %v2449 = vsel %vm1122, %v2448, 0.0
        %2450 = vadd.xlane.f32.xlu0 %v2449
        %v2451 = vpop.xlane.xlu0 %2450
        %v2452 = vmul.f32 %v2451, %v1126
        %v2453 = vadd.f32 %v2452, 1e-05
        %v2454 = vrsqrt.pop %v2453
        %v2455 = vmul.f32 %v2447, %v2454
        %v2457 = vlaneseq
        %v2458 = vshrl.u32 %v2457, 7
        %v2459 = vsub.s32 0, %v2458
        %v2460 = vrot.slane %v2441, %v2459
        %v2462 = vmul.f32 %v2455, %v2460
        %v2464 = vlaneseq
        %v2465 = vshrl.u32 %v2464, 7
        %v2466 = vsub.s32 0, %v2465
        %v2467 = vrot.slane %v2442, %v2466
        %v2469 = vadd.f32 %v2462, %v2467
        %v2470 = vpack.c.bf16 %v2469, %v2469
        %v2471 = vpack.c.bf16 %v1118, %v1117
        %v2472 = vld [vmem:[%s29] sm:$0xf]
        %v2473 = vld [vmem:[%s29 + $0x4] sm:$0xf]
        %v2474 = vld [vmem:[%s29 + $0x8] sm:$0xf]
        %v2475 = vld [vmem:[%s29 + $0xc] sm:$0xf]
        %v2476 = vld [vmem:[#allocation14] sm:$0x1]
        %v2478 = vlaneseq
        %v2479 = vshrl.u32 %v2478, 7
        %v2480 = vsub.s32 0, %v2479
        %v2481 = vrot.slane %v2476, %v2480
        %v2487 = vunpack.c.l.b16 %v2472
        %v2488 = vunpack.c.l.b16 %v2473
        %v2489 = vunpack.c.l.b16 %v2474
        %v2490 = vunpack.c.l.b16 %v2475
        %v2491 = vpack.c.b16 %v2488, %v2487
        %v2492 = vpack.c.b16 %v2490, %v2489
        %v2496 = vsel %vm1122, %v2470, 0
        %2498 = vmatprep.subr.bf16.mxu0 0
        %2499 = vmatpush1.bf16.msra.mxu0 %v2491
        %2500 = vmatprep.subr.bf16.mxu0 0
        %2501 = vmatpush1.bf16.msra.mxu0 %v2492
        %2502 = vmatprep.subr.bf16.mxu0 0
        %2503 = vmatpush1.bf16.msra.mxu0 0
        %2504 = vmatprep.subr.bf16.mxu0 0
        %2505 = vmatpush1.bf16.msra.mxu0 0
        %2506 = vmatprep.subr.bf16.mxu0 0
        %2507 = vmatpush1.bf16.msra.mxu0 0
        %2508 = vmatprep.subr.bf16.mxu0 0
        %2509 = vmatpush1.bf16.msra.mxu0 0
        %2510 = vmatprep.subr.bf16.mxu0 0
        %2511 = vmatpush1.bf16.msra.mxu0 0
        %2512 = vmatprep.subr.bf16.mxu0 0
        %2513 = vmatpush1.bf16.msra.mxu0 0
        %2514 = vmatprep.subr.bf16.mxu0 0
        %2515 = vmatpush1.bf16.msra.mxu0 0
        %2516 = vmatprep.subr.bf16.mxu0 0
        %2517 = vmatpush1.bf16.msra.mxu0 0
        %2518 = vmatprep.subr.bf16.mxu0 0
        %2519 = vmatpush1.bf16.msra.mxu0 0
        %2520 = vmatprep.subr.bf16.mxu0 0
        %2521 = vmatpush1.bf16.msra.mxu0 0
        %2522 = vmatprep.subr.bf16.mxu0 0
        %2523 = vmatpush1.bf16.msra.mxu0 0
        %2524 = vmatprep.subr.bf16.mxu0 0
        %2525 = vmatpush1.bf16.msra.mxu0 0
        %2526 = vmatprep.subr.bf16.mxu0 0
        %2527 = vmatpush1.bf16.msra.mxu0 0
        %2528 = vmatprep.subr.bf16.mxu0 0
        %2529 = vmatpush1.bf16.msra.mxu0 0
        %2530 = vmatprep.mubr.bf16.mxu0 0
        %2531 = vmatmul.mubr.bf16.gmra.mrb[0].mxu0 %v2496
        %v2532 = vpop.f32.mrb[0].mxu0
        %v2533 = vadd.f32 %v2481, %v2532
        %v2534 = vpop.f32.mrb[0].mxu0
        %v2535 = vpop.f32.mrb[0].mxu0
        %v2536 = vpop.f32.mrb[0].mxu0
        %2537 = vdwg.mxu0
        %v2538 = vld [vmem:[#allocation16] sm:$0xf]
        %v2539 = vld [vmem:[#allocation16 + $0x4] sm:$0xf]
        %v2540 = vld [vmem:[#allocation16 + $0x8] sm:$0xf]
        %v2541 = vld [vmem:[%s35] sm:$0x1]
        %v2543 = vlaneseq
        %v2544 = vshrl.u32 %v2543, 7
        %v2545 = vsub.s32 0, %v2544
        %v2546 = vrot.slane %v2541, %v2545
        %v2551 = vunpack.c.l.b16 %v2538
        %v2552 = vunpack.c.l.b16 %v2539
        %v2553 = vunpack.c.l.b16 %v2540
        %v2554 = vpack.c.b16 %v2552, %v2551
        %v2555 = vpack.c.b16 %v2553, %v2553
        %v2558 = vsel %vm2376, %v2471, 0
        %v2561 = vsel %vm2043, %v2555, 0
        %2563 = vmatprep.subr.bf16.mxu0 0
        %2564 = vmatpush1.bf16.msra.mxu0 %v2554
        %2565 = vmatprep.subr.bf16.mxu0 0
        %2566 = vmatpush1.bf16.msra.mxu0 %v2561
        %2567 = vmatprep.subr.bf16.mxu0 0
        %2568 = vmatpush1.bf16.msra.mxu0 0
        %2569 = vmatprep.subr.bf16.mxu0 0
        %2570 = vmatpush1.bf16.msra.mxu0 0
        %2571 = vmatprep.subr.bf16.mxu0 0
        %2572 = vmatpush1.bf16.msra.mxu0 0
        %2573 = vmatprep.subr.bf16.mxu0 0
        %2574 = vmatpush1.bf16.msra.mxu0 0
        %2575 = vmatprep.subr.bf16.mxu0 0
        %2576 = vmatpush1.bf16.msra.mxu0 0
        %2577 = vmatprep.subr.bf16.mxu0 0
        %2578 = vmatpush1.bf16.msra.mxu0 0
        %2579 = vmatprep.subr.bf16.mxu0 0
        %2580 = vmatpush1.bf16.msra.mxu0 0
        %2581 = vmatprep.subr.bf16.mxu0 0
        %2582 = vmatpush1.bf16.msra.mxu0 0
        %2583 = vmatprep.subr.bf16.mxu0 0
        %2584 = vmatpush1.bf16.msra.mxu0 0
        %2585 = vmatprep.subr.bf16.mxu0 0
        %2586 = vmatpush1.bf16.msra.mxu0 0
        %2587 = vmatprep.subr.bf16.mxu0 0
        %2588 = vmatpush1.bf16.msra.mxu0 0
        %2589 = vmatprep.subr.bf16.mxu0 0
        %2590 = vmatpush1.bf16.msra.mxu0 0
        %2591 = vmatprep.subr.bf16.mxu0 0
        %2592 = vmatpush1.bf16.msra.mxu0 0
        %2593 = vmatprep.subr.bf16.mxu0 0
        %2594 = vmatpush1.bf16.msra.mxu0 0
        %2595 = vmatprep.mubr.bf16.mxu0 0
        %2596 = vmatmul.mubr.bf16.gmra.mrb[0].mxu0 %v2558
        %v2597 = vpop.f32.mrb[0].mxu0
        %v2598 = vadd.f32 %v2546, %v2597
        %v2599 = vpop.f32.mrb[0].mxu0
        %v2600 = vpop.f32.mrb[0].mxu0
        %v2601 = vadd.f32 %v2546, %v2600
        %v2602 = vpop.f32.mrb[0].mxu0
        %2603 = vdwg.mxu0
        %v2604 = vld [vmem:[#allocation17] sm:$0xf]
        %v2605 = vld [vmem:[#allocation17 + $0x4] sm:$0xf]
        %v2606 = vld [vmem:[#allocation17 + $0x8] sm:$0xf]
        %v2607 = vld [vmem:[%s39] sm:$0x1]
        %v2609 = vlaneseq
        %v2610 = vshrl.u32 %v2609, 7
        %v2611 = vsub.s32 0, %v2610
        %v2612 = vrot.slane %v2607, %v2611
        %v2617 = vunpack.c.l.b16 %v2604
        %v2618 = vunpack.c.l.b16 %v2605
        %v2619 = vunpack.c.l.b16 %v2606
        %v2620 = vpack.c.b16 %v2618, %v2617
        %v2621 = vpack.c.b16 %v2619, %v2619
        %v2624 = vsel %vm2043, %v2621, 0
        %2626 = vmatprep.subr.bf16.mxu0 0
        %2627 = vmatpush1.bf16.msra.mxu0 %v2620
        %2628 = vmatprep.subr.bf16.mxu0 0
        %2629 = vmatpush1.bf16.msra.mxu0 %v2624
        %2630 = vmatprep.subr.bf16.mxu0 0
        %2631 = vmatpush1.bf16.msra.mxu0 0
        %2632 = vmatprep.subr.bf16.mxu0 0
        %2633 = vmatpush1.bf16.msra.mxu0 0
        %2634 = vmatprep.subr.bf16.mxu0 0
        %2635 = vmatpush1.bf16.msra.mxu0 0
        %2636 = vmatprep.subr.bf16.mxu0 0
        %2637 = vmatpush1.bf16.msra.mxu0 0
        %2638 = vmatprep.subr.bf16.mxu0 0
        %2639 = vmatpush1.bf16.msra.mxu0 0
        %2640 = vmatprep.subr.bf16.mxu0 0
        %2641 = vmatpush1.bf16.msra.mxu0 0
        %2642 = vmatprep.subr.bf16.mxu0 0
        %2643 = vmatpush1.bf16.msra.mxu0 0
        %2644 = vmatprep.subr.bf16.mxu0 0
        %2645 = vmatpush1.bf16.msra.mxu0 0
        %2646 = vmatprep.subr.bf16.mxu0 0
        %2647 = vmatpush1.bf16.msra.mxu0 0
        %2648 = vmatprep.subr.bf16.mxu0 0
        %2649 = vmatpush1.bf16.msra.mxu0 0
        %2650 = vmatprep.subr.bf16.mxu0 0
        %2651 = vmatpush1.bf16.msra.mxu0 0
        %2652 = vmatprep.subr.bf16.mxu0 0
        %2653 = vmatpush1.bf16.msra.mxu0 0
        %2654 = vmatprep.subr.bf16.mxu0 0
        %2655 = vmatpush1.bf16.msra.mxu0 0
        %2656 = vmatprep.subr.bf16.mxu0 0
        %2657 = vmatpush1.bf16.msra.mxu0 0
        %2658 = vmatprep.mubr.bf16.mxu0 0
        %2659 = vmatmul.mubr.bf16.gmra.mrb[0].mxu0 %v2558
        %v2660 = vpop.f32.mrb[0].mxu0
        %v2661 = vadd.f32 %v2612, %v2660
        %v2662 = vpop.f32.mrb[0].mxu0
        %v2663 = vpop.f32.mrb[0].mxu0
        %v2664 = vadd.f32 %v2612, %v2663
        %v2665 = vpop.f32.mrb[0].mxu0
        %2666 = vdwg.mxu0
        %v2667 = vld [vmem:[%s41] sm:$0xf]
        %v2668 = vld [vmem:[%s41 + $0x4] sm:$0xf]
        %v2669 = vld [vmem:[%s41 + $0x8] sm:$0xf]
        %v2670 = vld [vmem:[%s41 + $0xc] sm:$0xf]
        %v2671 = vld [vmem:[%s43] sm:$0x1]
        %2673 = vrot.lane.b32.xlu0 %v2533, 120
        %v2674 = vpop.permute.xlu0 %2673
        %2676 = vrot.lane.b32.xlu0 %v2533, 112
        %v2677 = vpop.permute.xlu0 %2676
        %2679 = vrot.lane.b32.xlu0 %v2533, 104
        %v2680 = vpop.permute.xlu0 %2679
        %v2682 = vcombine.low %v2533, %v2677
        %v2683 = vcombine.high %v2533, %v2677
        %v2685 = vunpack.c.l.s4 1983009808
        %v2686 = vunpack.c.0.s8 %v2685
        %v2687 = vlaneseq
        %v2688 = vshrl.u32 %v2687, 7
        %v2689 = vsub.s32 %v2686, %v2688
        %v2690 = vrot.slane %v2682, %v2689
        %v2692 = vunpack.c.l.s4 1983009808
        %v2693 = vunpack.c.0.s8 %v2692
        %v2694 = vlaneseq
        %v2695 = vshrl.u32 %v2694, 7
        %v2696 = vsub.s32 %v2693, %v2695
        %v2697 = vrot.slane %v2683, %v2696
        %v2698 = vcombine.low %v2674, %v2680
        %v2699 = vcombine.high %v2674, %v2680
        %v2701 = vunpack.c.l.s4 1983009808
        %v2702 = vunpack.c.0.s8 %v2701
        %v2703 = vlaneseq
        %v2704 = vshrl.u32 %v2703, 7
        %v2705 = vsub.s32 %v2702, %v2704
        %v2706 = vrot.slane %v2698, %v2705
        %v2708 = vunpack.c.l.s4 1983009808
        %v2709 = vunpack.c.0.s8 %v2708
        %v2710 = vlaneseq
        %v2711 = vshrl.u32 %v2710, 7
        %v2712 = vsub.s32 %v2709, %v2711
        %v2713 = vrot.slane %v2699, %v2712
        %v2714 = vcombine.low %v2690, %v2706
        %v2715 = vcombine.high %v2690, %v2706
        %v2717 = vunpack.c.l.s4 1934713408
        %v2718 = vunpack.c.0.s8 %v2717
        %v2719 = vlaneseq
        %v2720 = vshrl.u32 %v2719, 7
        %v2721 = vsub.s32 %v2718, %v2720
        %v2722 = vrot.slane %v2714, %v2721
        %v2724 = vunpack.c.l.s4 1934713408
        %v2725 = vunpack.c.0.s8 %v2724
        %v2726 = vlaneseq
        %v2727 = vshrl.u32 %v2726, 7
        %v2728 = vsub.s32 %v2725, %v2727
        %v2729 = vrot.slane %v2715, %v2728
        %v2730 = vcombine.low %v2697, %v2713
        %v2731 = vcombine.high %v2697, %v2713
        %v2733 = vunpack.c.l.s4 1934713408
        %v2734 = vunpack.c.0.s8 %v2733
        %v2735 = vlaneseq
        %v2736 = vshrl.u32 %v2735, 7
        %v2737 = vsub.s32 %v2734, %v2736
        %v2738 = vrot.slane %v2730, %v2737
        %v2740 = vunpack.c.l.s4 1934713408
        %v2741 = vunpack.c.0.s8 %v2740
        %v2742 = vlaneseq
        %v2743 = vshrl.u32 %v2742, 7
        %v2744 = vsub.s32 %v2741, %v2743
        %v2745 = vrot.slane %v2731, %v2744
        %v2746 = vcombine.high %v2722, 0.0
        %v2747 = vcombine.high %v2729, 0.0
        %v2748 = vcombine.high %v2738, 0.0
        %v2749 = vcombine.high %v2745, 0.0
        %v2750 = vcombine.low %v2722, %v2729
        %v2752 = vunpack.c.l.s4 1983009808
        %v2753 = vunpack.c.0.s8 %v2752
        %v2754 = vlaneseq
        %v2755 = vshrl.u32 %v2754, 7
        %v2756 = vsub.s32 %v2753, %v2755
        %v2757 = vrot.slane %v2750, %v2756
        %v2758 = vcombine.low %v2746, %v2747
        %v2760 = vunpack.c.l.s4 1983009808
        %v2761 = vunpack.c.0.s8 %v2760
        %v2762 = vlaneseq
        %v2763 = vshrl.u32 %v2762, 7
        %v2764 = vsub.s32 %v2761, %v2763
        %v2765 = vrot.slane %v2758, %v2764
        %v2766 = vcombine.low %v2738, %v2745
        %v2768 = vunpack.c.l.s4 1983009808
        %v2769 = vunpack.c.0.s8 %v2768
        %v2770 = vlaneseq
        %v2771 = vshrl.u32 %v2770, 7
        %v2772 = vsub.s32 %v2769, %v2771
        %v2773 = vrot.slane %v2766, %v2772
        %v2774 = vcombine.low %v2748, %v2749
        %v2776 = vunpack.c.l.s4 1983009808
        %v2777 = vunpack.c.0.s8 %v2776
        %v2778 = vlaneseq
        %v2779 = vshrl.u32 %v2778, 7
        %v2780 = vsub.s32 %v2777, %v2779
        %v2781 = vrot.slane %v2774, %v2780
        %v2782 = vcombine.low %v2757, %v2765
        %v2783 = vcombine.high %v2757, %v2765
        %v2785 = vunpack.c.l.s4 1934713408
        %v2786 = vunpack.c.0.s8 %v2785
        %v2787 = vlaneseq
        %v2788 = vshrl.u32 %v2787, 7
        %v2789 = vsub.s32 %v2786, %v2788
        %v2790 = vrot.slane %v2782, %v2789
        %v2792 = vunpack.c.l.s4 1934713408
        %v2793 = vunpack.c.0.s8 %v2792
        %v2794 = vlaneseq
        %v2795 = vshrl.u32 %v2794, 7
        %v2796 = vsub.s32 %v2793, %v2795
        %v2797 = vrot.slane %v2783, %v2796
        %v2798 = vcombine.low %v2773, %v2781
        %v2799 = vcombine.high %v2773, %v2781
        %v2801 = vunpack.c.l.s4 1934713408
        %v2802 = vunpack.c.0.s8 %v2801
        %v2803 = vlaneseq
        %v2804 = vshrl.u32 %v2803, 7
        %v2805 = vsub.s32 %v2802, %v2804
        %v2806 = vrot.slane %v2798, %v2805
        %v2808 = vunpack.c.l.s4 1934713408
        %v2809 = vunpack.c.0.s8 %v2808
        %v2810 = vlaneseq
        %v2811 = vshrl.u32 %v2810, 7
        %v2812 = vsub.s32 %v2809, %v2811
        %v2813 = vrot.slane %v2799, %v2812
        %v2814 = vcombine.low %v2790, %v2806
        %v2815 = vcombine.high %v2790, %v2806
        %v2816 = vcombine.low %v2797, %v2813
        %v2817 = vcombine.high %v2797, %v2813
        %v2818 = vpack.c.bf16 %v2814, %v2814
        %v2819 = vpack.c.bf16 %v2815, %v2815
        %v2820 = vpack.c.bf16 %v2816, %v2816
        %v2821 = vpack.c.bf16 %v2817, %v2817
        %2824 = vrot.lane.b32.xlu0 %v2598, 120
        %v2825 = vpop.permute.xlu0 %2824
        %2826 = vrot.lane.b32.xlu0 %v2601, 120
        %v2827 = vpop.permute.xlu0 %2826
        %2830 = vrot.lane.b32.xlu0 %v2598, 112
        %v2831 = vpop.permute.xlu0 %2830
        %2832 = vrot.lane.b32.xlu0 %v2601, 112
        %v2833 = vpop.permute.xlu0 %2832
        %2836 = vrot.lane.b32.xlu0 %v2598, 104
        %v2837 = vpop.permute.xlu0 %2836
        %2838 = vrot.lane.b32.xlu0 %v2601, 104
        %v2839 = vpop.permute.xlu0 %2838
        %v2842 = vcombine.low %v2598, %v2831
        %v2843 = vcombine.high %v2598, %v2831
        %v2845 = vunpack.c.l.s4 1983009808
        %v2846 = vunpack.c.0.s8 %v2845
        %v2847 = vlaneseq
        %v2848 = vshrl.u32 %v2847, 7
        %v2849 = vsub.s32 %v2846, %v2848
        %v2850 = vrot.slane %v2842, %v2849
        %v2852 = vunpack.c.l.s4 1983009808
        %v2853 = vunpack.c.0.s8 %v2852
        %v2854 = vlaneseq
        %v2855 = vshrl.u32 %v2854, 7
        %v2856 = vsub.s32 %v2853, %v2855
        %v2857 = vrot.slane %v2843, %v2856
        %v2858 = vcombine.low %v2825, %v2837
        %v2859 = vcombine.high %v2825, %v2837
        %v2861 = vunpack.c.l.s4 1983009808
        %v2862 = vunpack.c.0.s8 %v2861
        %v2863 = vlaneseq
        %v2864 = vshrl.u32 %v2863, 7
        %v2865 = vsub.s32 %v2862, %v2864
        %v2866 = vrot.slane %v2858, %v2865
        %v2868 = vunpack.c.l.s4 1983009808
        %v2869 = vunpack.c.0.s8 %v2868
        %v2870 = vlaneseq
        %v2871 = vshrl.u32 %v2870, 7
        %v2872 = vsub.s32 %v2869, %v2871
        %v2873 = vrot.slane %v2859, %v2872
        %v2874 = vcombine.low %v2850, %v2866
        %v2875 = vcombine.high %v2850, %v2866
        %v2877 = vunpack.c.l.s4 1934713408
        %v2878 = vunpack.c.0.s8 %v2877
        %v2879 = vlaneseq
        %v2880 = vshrl.u32 %v2879, 7
        %v2881 = vsub.s32 %v2878, %v2880
        %v2882 = vrot.slane %v2874, %v2881
        %v2884 = vunpack.c.l.s4 1934713408
        %v2885 = vunpack.c.0.s8 %v2884
        %v2886 = vlaneseq
        %v2887 = vshrl.u32 %v2886, 7
        %v2888 = vsub.s32 %v2885, %v2887
        %v2889 = vrot.slane %v2875, %v2888
        %v2890 = vcombine.low %v2857, %v2873
        %v2891 = vcombine.high %v2857, %v2873
        %v2893 = vunpack.c.l.s4 1934713408
        %v2894 = vunpack.c.0.s8 %v2893
        %v2895 = vlaneseq
        %v2896 = vshrl.u32 %v2895, 7
        %v2897 = vsub.s32 %v2894, %v2896
        %v2898 = vrot.slane %v2890, %v2897
        %v2900 = vunpack.c.l.s4 1934713408
        %v2901 = vunpack.c.0.s8 %v2900
        %v2902 = vlaneseq
        %v2903 = vshrl.u32 %v2902, 7
        %v2904 = vsub.s32 %v2901, %v2903
        %v2905 = vrot.slane %v2891, %v2904
        %v2906 = vcombine.high %v2882, 0.0
        %v2907 = vcombine.high %v2889, 0.0
        %v2908 = vcombine.high %v2898, 0.0
        %v2909 = vcombine.high %v2905, 0.0
        %v2910 = vcombine.low %v2601, %v2833
        %v2912 = vunpack.c.l.s4 1983009808
        %v2913 = vunpack.c.0.s8 %v2912
        %v2914 = vlaneseq
        %v2915 = vshrl.u32 %v2914, 7
        %v2916 = vsub.s32 %v2913, %v2915
        %v2917 = vrot.slane %v2910, %v2916
        %v2918 = vcombine.low %v2827, %v2839
        %v2920 = vunpack.c.l.s4 1983009808
        %v2921 = vunpack.c.0.s8 %v2920
        %v2922 = vlaneseq
        %v2923 = vshrl.u32 %v2922, 7
        %v2924 = vsub.s32 %v2921, %v2923
        %v2925 = vrot.slane %v2918, %v2924
        %v2926 = vcombine.low %v2917, %v2925
        %v2928 = vunpack.c.l.s4 1934713408
        %v2929 = vunpack.c.0.s8 %v2928
        %v2930 = vlaneseq
        %v2931 = vshrl.u32 %v2930, 7
        %v2932 = vsub.s32 %v2929, %v2931
        %v2933 = vrot.slane %v2926, %v2932
        %v2934 = vcombine.low %v2882, %v2889
        %v2936 = vunpack.c.l.s4 1983009808
        %v2937 = vunpack.c.0.s8 %v2936
        %v2938 = vlaneseq
        %v2939 = vshrl.u32 %v2938, 7
        %v2940 = vsub.s32 %v2937, %v2939
        %v2941 = vrot.slane %v2934, %v2940
        %v2942 = vcombine.low %v2906, %v2907
        %v2944 = vunpack.c.l.s4 1983009808
        %v2945 = vunpack.c.0.s8 %v2944
        %v2946 = vlaneseq
        %v2947 = vshrl.u32 %v2946, 7
        %v2948 = vsub.s32 %v2945, %v2947
        %v2949 = vrot.slane %v2942, %v2948
        %v2950 = vcombine.low %v2898, %v2905
        %v2952 = vunpack.c.l.s4 1983009808
        %v2953 = vunpack.c.0.s8 %v2952
        %v2954 = vlaneseq
        %v2955 = vshrl.u32 %v2954, 7
        %v2956 = vsub.s32 %v2953, %v2955
        %v2957 = vrot.slane %v2950, %v2956
        %v2958 = vcombine.low %v2908, %v2909
        %v2960 = vunpack.c.l.s4 1983009808
        %v2961 = vunpack.c.0.s8 %v2960
        %v2962 = vlaneseq
        %v2963 = vshrl.u32 %v2962, 7
        %v2964 = vsub.s32 %v2961, %v2963
        %v2965 = vrot.slane %v2958, %v2964
        %v2966 = vcombine.low %v2941, %v2949
        %v2967 = vcombine.high %v2941, %v2949
        %v2969 = vunpack.c.l.s4 1934713408
        %v2970 = vunpack.c.0.s8 %v2969
        %v2971 = vlaneseq
        %v2972 = vshrl.u32 %v2971, 7
        %v2973 = vsub.s32 %v2970, %v2972
        %v2974 = vrot.slane %v2966, %v2973
        %v2976 = vunpack.c.l.s4 1934713408
        %v2977 = vunpack.c.0.s8 %v2976
        %v2978 = vlaneseq
        %v2979 = vshrl.u32 %v2978, 7
        %v2980 = vsub.s32 %v2977, %v2979
        %v2981 = vrot.slane %v2967, %v2980
        %v2982 = vcombine.low %v2957, %v2965
        %v2983 = vcombine.high %v2957, %v2965
        %v2985 = vunpack.c.l.s4 1934713408
        %v2986 = vunpack.c.0.s8 %v2985
        %v2987 = vlaneseq
        %v2988 = vshrl.u32 %v2987, 7
        %v2989 = vsub.s32 %v2986, %v2988
        %v2990 = vrot.slane %v2982, %v2989
        %v2992 = vunpack.c.l.s4 1934713408
        %v2993 = vunpack.c.0.s8 %v2992
        %v2994 = vlaneseq
        %v2995 = vshrl.u32 %v2994, 7
        %v2996 = vsub.s32 %v2993, %v2995
        %v2997 = vrot.slane %v2983, %v2996
        %v2998 = vcombine.low %v2974, %v2990
        %v2999 = vcombine.high %v2974, %v2990
        %v3000 = vcombine.low %v2981, %v2997
        %v3001 = vcombine.high %v2981, %v2997
        %v3003 = vunpack.c.l.s4 1983009808
        %v3004 = vunpack.c.0.s8 %v3003
        %v3005 = vlaneseq
        %v3006 = vshrl.u32 %v3005, 7
        %v3007 = vsub.s32 %v3004, %v3006
        %v3008 = vrot.slane %v2933, %v3007
        %v3009 = vcombine.high %v2933, 0.0
        %v3011 = vunpack.c.l.s4 1983009808
        %v3012 = vunpack.c.0.s8 %v3011
        %v3013 = vlaneseq
        %v3014 = vshrl.u32 %v3013, 7
        %v3015 = vsub.s32 %v3012, %v3014
        %v3016 = vrot.slane %v3009, %v3015
        %v3017 = vcombine.low %v3008, %v3016
        %v3018 = vcombine.high %v3008, %v3016
        %v3020 = vunpack.c.l.s4 1934713408
        %v3021 = vunpack.c.0.s8 %v3020
        %v3022 = vlaneseq
        %v3023 = vshrl.u32 %v3022, 7
        %v3024 = vsub.s32 %v3021, %v3023
        %v3025 = vrot.slane %v3017, %v3024
        %v3027 = vunpack.c.l.s4 1934713408
        %v3028 = vunpack.c.0.s8 %v3027
        %v3029 = vlaneseq
        %v3030 = vshrl.u32 %v3029, 7
        %v3031 = vsub.s32 %v3028, %v3030
        %v3032 = vrot.slane %v3018, %v3031
        %v3033 = vcombine.high %v3025, 0.0
        %v3034 = vcombine.high %v3032, 0.0
        %v3035 = vpack.c.bf16 %v3025, %v2998
        %v3036 = vpack.c.bf16 %v3033, %v2999
        %v3037 = vpack.c.bf16 %v3032, %v3000
        %v3038 = vpack.c.bf16 %v3034, %v3001
        %3041 = vrot.lane.b32.xlu0 %v2661, 120
        %v3042 = vpop.permute.xlu0 %3041
        %3043 = vrot.lane.b32.xlu0 %v2664, 120
        %v3044 = vpop.permute.xlu0 %3043
        %3047 = vrot.lane.b32.xlu0 %v2661, 112
        %v3048 = vpop.permute.xlu0 %3047
        %3049 = vrot.lane.b32.xlu0 %v2664, 112
        %v3050 = vpop.permute.xlu0 %3049
        %3053 = vrot.lane.b32.xlu0 %v2661, 104
        %v3054 = vpop.permute.xlu0 %3053
        %3055 = vrot.lane.b32.xlu0 %v2664, 104
        %v3056 = vpop.permute.xlu0 %3055
        %v3059 = vcombine.low %v2661, %v3048
        %v3060 = vcombine.high %v2661, %v3048
        %v3062 = vunpack.c.l.s4 1983009808
        %v3063 = vunpack.c.0.s8 %v3062
        %v3064 = vlaneseq
        %v3065 = vshrl.u32 %v3064, 7
        %v3066 = vsub.s32 %v3063, %v3065
        %v3067 = vrot.slane %v3059, %v3066
        %v3069 = vunpack.c.l.s4 1983009808
        %v3070 = vunpack.c.0.s8 %v3069
        %v3071 = vlaneseq
        %v3072 = vshrl.u32 %v3071, 7
        %v3073 = vsub.s32 %v3070, %v3072
        %v3074 = vrot.slane %v3060, %v3073
        %v3075 = vcombine.low %v3042, %v3054
        %v3076 = vcombine.high %v3042, %v3054
        %v3078 = vunpack.c.l.s4 1983009808
        %v3079 = vunpack.c.0.s8 %v3078
        %v3080 = vlaneseq
        %v3081 = vshrl.u32 %v3080, 7
        %v3082 = vsub.s32 %v3079, %v3081
        %v3083 = vrot.slane %v3075, %v3082
        %v3085 = vunpack.c.l.s4 1983009808
        %v3086 = vunpack.c.0.s8 %v3085
        %v3087 = vlaneseq
        %v3088 = vshrl.u32 %v3087, 7
        %v3089 = vsub.s32 %v3086, %v3088
        %v3090 = vrot.slane %v3076, %v3089
        %v3091 = vcombine.low %v3067, %v3083
        %v3092 = vcombine.high %v3067, %v3083
        %v3094 = vunpack.c.l.s4 1934713408
        %v3095 = vunpack.c.0.s8 %v3094
        %v3096 = vlaneseq
        %v3097 = vshrl.u32 %v3096, 7
        %v3098 = vsub.s32 %v3095, %v3097
        %v3099 = vrot.slane %v3091, %v3098
        %v3101 = vunpack.c.l.s4 1934713408
        %v3102 = vunpack.c.0.s8 %v3101
        %v3103 = vlaneseq
        %v3104 = vshrl.u32 %v3103, 7
        %v3105 = vsub.s32 %v3102, %v3104
        %v3106 = vrot.slane %v3092, %v3105
        %v3107 = vcombine.low %v3074, %v3090
        %v3108 = vcombine.high %v3074, %v3090
        %v3110 = vunpack.c.l.s4 1934713408
        %v3111 = vunpack.c.0.s8 %v3110
        %v3112 = vlaneseq
        %v3113 = vshrl.u32 %v3112, 7
        %v3114 = vsub.s32 %v3111, %v3113
        %v3115 = vrot.slane %v3107, %v3114
        %v3117 = vunpack.c.l.s4 1934713408
        %v3118 = vunpack.c.0.s8 %v3117
        %v3119 = vlaneseq
        %v3120 = vshrl.u32 %v3119, 7
        %v3121 = vsub.s32 %v3118, %v3120
        %v3122 = vrot.slane %v3108, %v3121
        %v3123 = vcombine.high %v3099, 0.0
        %v3124 = vcombine.high %v3106, 0.0
        %v3125 = vcombine.high %v3115, 0.0
        %v3126 = vcombine.high %v3122, 0.0
        %v3127 = vcombine.low %v2664, %v3050
        %v3129 = vunpack.c.l.s4 1983009808
        %v3130 = vunpack.c.0.s8 %v3129
        %v3131 = vlaneseq
        %v3132 = vshrl.u32 %v3131, 7
        %v3133 = vsub.s32 %v3130, %v3132
        %v3134 = vrot.slane %v3127, %v3133
        %v3135 = vcombine.low %v3044, %v3056
        %v3137 = vunpack.c.l.s4 1983009808
        %v3138 = vunpack.c.0.s8 %v3137
        %v3139 = vlaneseq
        %v3140 = vshrl.u32 %v3139, 7
        %v3141 = vsub.s32 %v3138, %v3140
        %v3142 = vrot.slane %v3135, %v3141
        %v3143 = vcombine.low %v3134, %v3142
        %v3145 = vunpack.c.l.s4 1934713408
        %v3146 = vunpack.c.0.s8 %v3145
        %v3147 = vlaneseq
        %v3148 = vshrl.u32 %v3147, 7
        %v3149 = vsub.s32 %v3146, %v3148
        %v3150 = vrot.slane %v3143, %v3149
        %v3151 = vcombine.low %v3099, %v3106
        %v3153 = vunpack.c.l.s4 1983009808
        %v3154 = vunpack.c.0.s8 %v3153
        %v3155 = vlaneseq
        %v3156 = vshrl.u32 %v3155, 7
        %v3157 = vsub.s32 %v3154, %v3156
        %v3158 = vrot.slane %v3151, %v3157
        %v3159 = vcombine.low %v3123, %v3124
        %v3161 = vunpack.c.l.s4 1983009808
        %v3162 = vunpack.c.0.s8 %v3161
        %v3163 = vlaneseq
        %v3164 = vshrl.u32 %v3163, 7
        %v3165 = vsub.s32 %v3162, %v3164
        %v3166 = vrot.slane %v3159, %v3165
        %v3167 = vcombine.low %v3115, %v3122
        %v3169 = vunpack.c.l.s4 1983009808
        %v3170 = vunpack.c.0.s8 %v3169
        %v3171 = vlaneseq
        %v3172 = vshrl.u32 %v3171, 7
        %v3173 = vsub.s32 %v3170, %v3172
        %v3174 = vrot.slane %v3167, %v3173
        %v3175 = vcombine.low %v3125, %v3126
        %v3177 = vunpack.c.l.s4 1983009808
        %v3178 = vunpack.c.0.s8 %v3177
        %v3179 = vlaneseq
        %v3180 = vshrl.u32 %v3179, 7
        %v3181 = vsub.s32 %v3178, %v3180
        %v3182 = vrot.slane %v3175, %v3181
        %v3183 = vcombine.low %v3158, %v3166
        %v3184 = vcombine.high %v3158, %v3166
        %v3186 = vunpack.c.l.s4 1934713408
        %v3187 = vunpack.c.0.s8 %v3186
        %v3188 = vlaneseq
        %v3189 = vshrl.u32 %v3188, 7
        %v3190 = vsub.s32 %v3187, %v3189
        %v3191 = vrot.slane %v3183, %v3190
        %v3193 = vunpack.c.l.s4 1934713408
        %v3194 = vunpack.c.0.s8 %v3193
        %v3195 = vlaneseq
        %v3196 = vshrl.u32 %v3195, 7
        %v3197 = vsub.s32 %v3194, %v3196
        %v3198 = vrot.slane %v3184, %v3197
        %v3199 = vcombine.low %v3174, %v3182
        %v3200 = vcombine.high %v3174, %v3182
        %v3202 = vunpack.c.l.s4 1934713408
        %v3203 = vunpack.c.0.s8 %v3202
        %v3204 = vlaneseq
        %v3205 = vshrl.u32 %v3204, 7
        %v3206 = vsub.s32 %v3203, %v3205
        %v3207 = vrot.slane %v3199, %v3206
        %v3209 = vunpack.c.l.s4 1934713408
        %v3210 = vunpack.c.0.s8 %v3209
        %v3211 = vlaneseq
        %v3212 = vshrl.u32 %v3211, 7
        %v3213 = vsub.s32 %v3210, %v3212
        %v3214 = vrot.slane %v3200, %v3213
        %v3215 = vcombine.low %v3191, %v3207
        %v3216 = vcombine.high %v3191, %v3207
        %v3217 = vcombine.low %v3198, %v3214
        %v3218 = vcombine.high %v3198, %v3214
        %v3220 = vunpack.c.l.s4 1983009808
        %v3221 = vunpack.c.0.s8 %v3220
        %v3222 = vlaneseq
        %v3223 = vshrl.u32 %v3222, 7
        %v3224 = vsub.s32 %v3221, %v3223
        %v3225 = vrot.slane %v3150, %v3224
        %v3226 = vcombine.high %v3150, 0.0
        %v3228 = vunpack.c.l.s4 1983009808
        %v3229 = vunpack.c.0.s8 %v3228
        %v3230 = vlaneseq
        %v3231 = vshrl.u32 %v3230, 7
        %v3232 = vsub.s32 %v3229, %v3231
        %v3233 = vrot.slane %v3226, %v3232
        %v3234 = vcombine.low %v3225, %v3233
        %v3235 = vcombine.high %v3225, %v3233
        %v3237 = vunpack.c.l.s4 1934713408
        %v3238 = vunpack.c.0.s8 %v3237
        %v3239 = vlaneseq
        %v3240 = vshrl.u32 %v3239, 7
        %v3241 = vsub.s32 %v3238, %v3240
        %v3242 = vrot.slane %v3234, %v3241
        %v3244 = vunpack.c.l.s4 1934713408
        %v3245 = vunpack.c.0.s8 %v3244
        %v3246 = vlaneseq
        %v3247 = vshrl.u32 %v3246, 7
        %v3248 = vsub.s32 %v3245, %v3247
        %v3249 = vrot.slane %v3235, %v3248
        %v3250 = vcombine.high %v3242, 0.0
        %v3251 = vcombine.high %v3249, 0.0
        %v3252 = vpack.c.bf16 %v3242, %v3215
        %v3253 = vpack.c.bf16 %v3250, %v3216
        %v3254 = vpack.c.bf16 %v3249, %v3217
        %v3255 = vpack.c.bf16 %v3251, %v3218
        %v3257 = vsel %vm1799, %v2818, 0
        %v3260 = vsel %vm1799, %v3035, 0
        %3262 = vmatprep.subr.bf16.mxu0 0
        %3263 = vmatpush1.bf16.xpose.msra.mxu0 %v3260
        %3264 = vmatprep.subr.bf16.mxu0 0
        %3265 = vmatpush1.bf16.xpose.msra.mxu0 0
        %3266 = vmatprep.subr.bf16.mxu0 0
        %3267 = vmatpush1.bf16.xpose.msra.mxu0 0
        %3268 = vmatprep.subr.bf16.mxu0 0
        %3269 = vmatpush1.bf16.xpose.msra.mxu0 0
        %3270 = vmatprep.subr.bf16.mxu0 0
        %3271 = vmatpush1.bf16.xpose.msra.mxu0 0
        %3272 = vmatprep.subr.bf16.mxu0 0
        %3273 = vmatpush1.bf16.xpose.msra.mxu0 0
        %3274 = vmatprep.subr.bf16.mxu0 0
        %3275 = vmatpush1.bf16.xpose.msra.mxu0 0
        %3276 = vmatprep.subr.bf16.mxu0 0
        %3277 = vmatpush1.bf16.xpose.msra.mxu0 0
        %3278 = vmatprep.subr.bf16.mxu0 0
        %3279 = vmatpush1.bf16.xpose.msra.mxu0 0
        %3280 = vmatprep.subr.bf16.mxu0 0
        %3281 = vmatpush1.bf16.xpose.msra.mxu0 0
        %3282 = vmatprep.subr.bf16.mxu0 0
        %3283 = vmatpush1.bf16.xpose.msra.mxu0 0
        %3284 = vmatprep.subr.bf16.mxu0 0
        %3285 = vmatpush1.bf16.xpose.msra.mxu0 0
        %3286 = vmatprep.subr.bf16.mxu0 0
        %3287 = vmatpush1.bf16.xpose.msra.mxu0 0
        %3288 = vmatprep.subr.bf16.mxu0 0
        %3289 = vmatpush1.bf16.xpose.msra.mxu0 0
        %3290 = vmatprep.subr.bf16.mxu0 0
        %3291 = vmatpush1.bf16.xpose.msra.mxu0 0
        %3292 = vmatprep.subr.bf16.mxu0 0
        %3293 = vmatpush1.bf16.xpose.msra.mxu0 0
        %3294 = vmatprep.mubr.bf16.mxu0 0
        %3295 = vmatmul.mubr.bf16.gmra.mrb[0].mxu0 %v3257
        %v3296 = vpop.f32.mrb[0].mxu0
        %v3297 = vadd.f32 0.0, %v3296
        %v3298 = vpop.f32.mrb[0].mxu0
        %v3299 = vpop.f32.mrb[0].mxu0
        %v3300 = vpop.f32.mrb[0].mxu0
        %3301 = vdwg.mxu0
        %v3303 = vsel %vm1799, %v2819, 0
        %v3306 = vsel %vm1799, %v3036, 0
        %3308 = vmatprep.subr.bf16.mxu0 0
        %3309 = vmatpush1.bf16.xpose.msra.mxu0 %v3306
        %3310 = vmatprep.subr.bf16.mxu0 0
        %3311 = vmatpush1.bf16.xpose.msra.mxu0 0
        %3312 = vmatprep.subr.bf16.mxu0 0
        %3313 = vmatpush1.bf16.xpose.msra.mxu0 0
        %3314 = vmatprep.subr.bf16.mxu0 0
        %3315 = vmatpush1.bf16.xpose.msra.mxu0 0
        %3316 = vmatprep.subr.bf16.mxu0 0
        %3317 = vmatpush1.bf16.xpose.msra.mxu0 0
        %3318 = vmatprep.subr.bf16.mxu0 0
        %3319 = vmatpush1.bf16.xpose.msra.mxu0 0
        %3320 = vmatprep.subr.bf16.mxu0 0
        %3321 = vmatpush1.bf16.xpose.msra.mxu0 0
        %3322 = vmatprep.subr.bf16.mxu0 0
        %3323 = vmatpush1.bf16.xpose.msra.mxu0 0
        %3324 = vmatprep.subr.bf16.mxu0 0
        %3325 = vmatpush1.bf16.xpose.msra.mxu0 0
        %3326 = vmatprep.subr.bf16.mxu0 0
        %3327 = vmatpush1.bf16.xpose.msra.mxu0 0
        %3328 = vmatprep.subr.bf16.mxu0 0
        %3329 = vmatpush1.bf16.xpose.msra.mxu0 0
        %3330 = vmatprep.subr.bf16.mxu0 0
        %3331 = vmatpush1.bf16.xpose.msra.mxu0 0
        %3332 = vmatprep.subr.bf16.mxu0 0
        %3333 = vmatpush1.bf16.xpose.msra.mxu0 0
        %3334 = vmatprep.subr.bf16.mxu0 0
        %3335 = vmatpush1.bf16.xpose.msra.mxu0 0
        %3336 = vmatprep.subr.bf16.mxu0 0
        %3337 = vmatpush1.bf16.xpose.msra.mxu0 0
        %3338 = vmatprep.subr.bf16.mxu0 0
        %3339 = vmatpush1.bf16.xpose.msra.mxu0 0
        %3340 = vmatprep.mubr.bf16.mxu0 0
        %3341 = vmatmul.mubr.bf16.gmra.mrb[0].mxu0 %v3303
        %v3342 = vpop.f32.mrb[0].mxu0
        %v3343 = vadd.f32 0.0, %v3342
        %v3344 = vpop.f32.mrb[0].mxu0
        %v3345 = vpop.f32.mrb[0].mxu0
        %v3346 = vpop.f32.mrb[0].mxu0
        %3347 = vdwg.mxu0
        %v3349 = vsel %vm1799, %v2820, 0
        %v3352 = vsel %vm1799, %v3037, 0
        %3354 = vmatprep.subr.bf16.mxu0 0
        %3355 = vmatpush1.bf16.xpose.msra.mxu0 %v3352
        %3356 = vmatprep.subr.bf16.mxu0 0
        %3357 = vmatpush1.bf16.xpose.msra.mxu0 0
        %3358 = vmatprep.subr.bf16.mxu0 0
        %3359 = vmatpush1.bf16.xpose.msra.mxu0 0
        %3360 = vmatprep.subr.bf16.mxu0 0
        %3361 = vmatpush1.bf16.xpose.msra.mxu0 0
        %3362 = vmatprep.subr.bf16.mxu0 0
        %3363 = vmatpush1.bf16.xpose.msra.mxu0 0
        %3364 = vmatprep.subr.bf16.mxu0 0
        %3365 = vmatpush1.bf16.xpose.msra.mxu0 0
        %3366 = vmatprep.subr.bf16.mxu0 0
        %3367 = vmatpush1.bf16.xpose.msra.mxu0 0
        %3368 = vmatprep.subr.bf16.mxu0 0
        %3369 = vmatpush1.bf16.xpose.msra.mxu0 0
        %3370 = vmatprep.subr.bf16.mxu0 0
        %3371 = vmatpush1.bf16.xpose.msra.mxu0 0
        %3372 = vmatprep.subr.bf16.mxu0 0
        %3373 = vmatpush1.bf16.xpose.msra.mxu0 0
        %3374 = vmatprep.subr.bf16.mxu0 0
        %3375 = vmatpush1.bf16.xpose.msra.mxu0 0
        %3376 = vmatprep.subr.bf16.mxu0 0
        %3377 = vmatpush1.bf16.xpose.msra.mxu0 0
        %3378 = vmatprep.subr.bf16.mxu0 0
        %3379 = vmatpush1.bf16.xpose.msra.mxu0 0
        %3380 = vmatprep.subr.bf16.mxu0 0
        %3381 = vmatpush1.bf16.xpose.msra.mxu0 0
        %3382 = vmatprep.subr.bf16.mxu0 0
        %3383 = vmatpush1.bf16.xpose.msra.mxu0 0
        %3384 = vmatprep.subr.bf16.mxu0 0
        %3385 = vmatpush1.bf16.xpose.msra.mxu0 0
        %3386 = vmatprep.mubr.bf16.mxu0 0
        %3387 = vmatmul.mubr.bf16.gmra.mrb[0].mxu0 %v3349
        %v3388 = vpop.f32.mrb[0].mxu0
        %v3389 = vadd.f32 0.0, %v3388
        %v3390 = vpop.f32.mrb[0].mxu0
        %v3391 = vpop.f32.mrb[0].mxu0
        %v3392 = vpop.f32.mrb[0].mxu0
        %3393 = vdwg.mxu0
        %v3395 = vsel %vm1799, %v2821, 0
        %v3398 = vsel %vm1799, %v3038, 0
        %3400 = vmatprep.subr.bf16.mxu0 0
        %3401 = vmatpush1.bf16.xpose.msra.mxu0 %v3398
        %3402 = vmatprep.subr.bf16.mxu0 0
        %3403 = vmatpush1.bf16.xpose.msra.mxu0 0
        %3404 = vmatprep.subr.bf16.mxu0 0
        %3405 = vmatpush1.bf16.xpose.msra.mxu0 0
        %3406 = vmatprep.subr.bf16.mxu0 0
        %3407 = vmatpush1.bf16.xpose.msra.mxu0 0
        %3408 = vmatprep.subr.bf16.mxu0 0
        %3409 = vmatpush1.bf16.xpose.msra.mxu0 0
        %3410 = vmatprep.subr.bf16.mxu0 0
        %3411 = vmatpush1.bf16.xpose.msra.mxu0 0
        %3412 = vmatprep.subr.bf16.mxu0 0
        %3413 = vmatpush1.bf16.xpose.msra.mxu0 0
        %3414 = vmatprep.subr.bf16.mxu0 0
        %3415 = vmatpush1.bf16.xpose.msra.mxu0 0
        %3416 = vmatprep.subr.bf16.mxu0 0
        %3417 = vmatpush1.bf16.xpose.msra.mxu0 0
        %3418 = vmatprep.subr.bf16.mxu0 0
        %3419 = vmatpush1.bf16.xpose.msra.mxu0 0
        %3420 = vmatprep.subr.bf16.mxu0 0
        %3421 = vmatpush1.bf16.xpose.msra.mxu0 0
        %3422 = vmatprep.subr.bf16.mxu0 0
        %3423 = vmatpush1.bf16.xpose.msra.mxu0 0
        %3424 = vmatprep.subr.bf16.mxu0 0
        %3425 = vmatpush1.bf16.xpose.msra.mxu0 0
        %3426 = vmatprep.subr.bf16.mxu0 0
        %3427 = vmatpush1.bf16.xpose.msra.mxu0 0
        %3428 = vmatprep.subr.bf16.mxu0 0
        %3429 = vmatpush1.bf16.xpose.msra.mxu0 0
        %3430 = vmatprep.subr.bf16.mxu0 0
        %3431 = vmatpush1.bf16.xpose.msra.mxu0 0
        %3432 = vmatprep.mubr.bf16.mxu0 0
        %3433 = vmatmul.mubr.bf16.gmra.mrb[0].mxu0 %v3395
        %v3434 = vpop.f32.mrb[0].mxu0
        %v3435 = vadd.f32 0.0, %v3434
        %v3436 = vpop.f32.mrb[0].mxu0
        %v3437 = vpop.f32.mrb[0].mxu0
        %v3438 = vpop.f32.mrb[0].mxu0
        %3439 = vdwg.mxu0
        %v3440 = vmul.f32 %v3297, 0.35355338
        %v3441 = vmul.f32 %v3343, 0.35355338
        %v3442 = vmul.f32 %v3389, 0.35355338
        %v3443 = vmul.f32 %v3435, 0.35355338
        %v3445 = vlaneseq
        %v3446 = vshrl.u32 %v3445, 7
        %v3447 = vsub.s32 0, %v3446
        %v3448 = vrot.slane %v1119, %v3447
        %v3450 = vadd.f32 %v3440, %v3448
        %v3451 = vadd.f32 %v3441, %v3448
        %v3452 = vadd.f32 %v3442, %v3448
        %v3453 = vadd.f32 %v3443, %v3448
        %vm3454 = vcmask 80896
        %v3455 = vsel %vm3454, %v3450, -inf
        %3456 = vmax.xlane.f32.xlu0 %v3455
        %v3457 = vpop.xlane.xlu0 %3456
        %v3458 = vsel %vm3454, %v3451, -inf
        %3459 = vmax.xlane.f32.xlu0 %v3458
        %v3460 = vpop.xlane.xlu0 %3459
        %v3461 = vsel %vm3454, %v3452, -inf
        %3462 = vmax.xlane.f32.xlu0 %v3461
        %v3463 = vpop.xlane.xlu0 %3462
        %v3464 = vsel %vm3454, %v3453, -inf
        %3465 = vmax.xlane.f32.xlu0 %v3464
        %v3466 = vpop.xlane.xlu0 %3465
        %v3467 = vsub.f32 %v3450, %v3457
        %v3468 = vsub.f32 %v3451, %v3460
        %v3469 = vsub.f32 %v3452, %v3463
        %v3470 = vsub.f32 %v3453, %v3466
        %v3471 = vmul.f32 %v3467, 1.442695
        %v3472 = vpow.pop %v3471
        %v3473 = vmul.f32 %v3468, 1.442695
        %v3474 = vpow.pop %v3473
        %v3475 = vmul.f32 %v3469, 1.442695
        %v3476 = vpow.pop %v3475
        %v3477 = vmul.f32 %v3470, 1.442695
        %v3478 = vpow.pop %v3477
        %v3479 = vsel %vm3454, %v3472, 0.0
        %3480 = vadd.xlane.f32.xlu0 %v3479
        %v3481 = vpop.xlane.xlu0 %3480
        %v3482 = vsel %vm3454, %v3474, 0.0
        %3483 = vadd.xlane.f32.xlu0 %v3482
        %v3484 = vpop.xlane.xlu0 %3483
        %v3485 = vsel %vm3454, %v3476, 0.0
        %3486 = vadd.xlane.f32.xlu0 %v3485
        %v3487 = vpop.xlane.xlu0 %3486
        %v3488 = vsel %vm3454, %v3478, 0.0
        %3489 = vadd.xlane.f32.xlu0 %v3488
        %v3490 = vpop.xlane.xlu0 %3489
        %v3491 = vrcp.pop %v3481
        %v3492 = vrcp.pop %v3484
        %v3493 = vrcp.pop %v3487
        %v3494 = vrcp.pop %v3490
        %v3495 = vmul.f32 %v3472, %v3491
        %v3496 = vmul.f32 %v3474, %v3492
        %v3497 = vmul.f32 %v3476, %v3493
        %v3498 = vmul.f32 %v3478, %v3494
        %v3499 = vpack.c.bf16 %v3495, %v3495
        %v3500 = vpack.c.bf16 %v3496, %v3496
        %v3501 = vpack.c.bf16 %v3497, %v3497
        %v3502 = vpack.c.bf16 %v3498, %v3498
        %v3504 = vsel %vm3454, %v3499, 0
        %vm3506 = vcmask 1044480
        %v3508 = vsel %vm3506, %v3252, 0
        %3510 = vmatprep.subr.bf16.mxu0 0
        %3511 = vmatpush1.bf16.msra.mxu0 %v3508
        %3512 = vmatprep.subr.bf16.mxu0 0
        %3513 = vmatpush1.bf16.msra.mxu0 0
        %3514 = vmatprep.subr.bf16.mxu0 0
        %3515 = vmatpush1.bf16.msra.mxu0 0
        %3516 = vmatprep.subr.bf16.mxu0 0
        %3517 = vmatpush1.bf16.msra.mxu0 0
        %3518 = vmatprep.subr.bf16.mxu0 0
        %3519 = vmatpush1.bf16.msra.mxu0 0
        %3520 = vmatprep.subr.bf16.mxu0 0
        %3521 = vmatpush1.bf16.msra.mxu0 0
        %3522 = vmatprep.subr.bf16.mxu0 0
        %3523 = vmatpush1.bf16.msra.mxu0 0
        %3524 = vmatprep.subr.bf16.mxu0 0
        %3525 = vmatpush1.bf16.msra.mxu0 0
        %3526 = vmatprep.subr.bf16.mxu0 0
        %3527 = vmatpush1.bf16.msra.mxu0 0
        %3528 = vmatprep.subr.bf16.mxu0 0
        %3529 = vmatpush1.bf16.msra.mxu0 0
        %3530 = vmatprep.subr.bf16.mxu0 0
        %3531 = vmatpush1.bf16.msra.mxu0 0
        %3532 = vmatprep.subr.bf16.mxu0 0
        %3533 = vmatpush1.bf16.msra.mxu0 0
        %3534 = vmatprep.subr.bf16.mxu0 0
        %3535 = vmatpush1.bf16.msra.mxu0 0
        %3536 = vmatprep.subr.bf16.mxu0 0
        %3537 = vmatpush1.bf16.msra.mxu0 0
        %3538 = vmatprep.subr.bf16.mxu0 0
        %3539 = vmatpush1.bf16.msra.mxu0 0
        %3540 = vmatprep.subr.bf16.mxu0 0
        %3541 = vmatpush1.bf16.msra.mxu0 0
        %3542 = vmatprep.mubr.bf16.mxu0 0
        %3543 = vmatmul.mubr.bf16.gmra.mrb[0].mxu0 %v3504
        %v3544 = vpop.f32.mrb[0].mxu0
        %v3545 = vadd.f32 0.0, %v3544
        %v3546 = vpop.f32.mrb[0].mxu0
        %v3547 = vpop.f32.mrb[0].mxu0
        %v3548 = vpop.f32.mrb[0].mxu0
        %3549 = vdwg.mxu0
        %v3551 = vsel %vm3454, %v3500, 0
        %v3554 = vsel %vm3506, %v3253, 0
        %3556 = vmatprep.subr.bf16.mxu0 0
        %3557 = vmatpush1.bf16.msra.mxu0 %v3554
        %3558 = vmatprep.subr.bf16.mxu0 0
        %3559 = vmatpush1.bf16.msra.mxu0 0
        %3560 = vmatprep.subr.bf16.mxu0 0
        %3561 = vmatpush1.bf16.msra.mxu0 0
        %3562 = vmatprep.subr.bf16.mxu0 0
        %3563 = vmatpush1.bf16.msra.mxu0 0
        %3564 = vmatprep.subr.bf16.mxu0 0
        %3565 = vmatpush1.bf16.msra.mxu0 0
        %3566 = vmatprep.subr.bf16.mxu0 0
        %3567 = vmatpush1.bf16.msra.mxu0 0
        %3568 = vmatprep.subr.bf16.mxu0 0
        %3569 = vmatpush1.bf16.msra.mxu0 0
        %3570 = vmatprep.subr.bf16.mxu0 0
        %3571 = vmatpush1.bf16.msra.mxu0 0
        %3572 = vmatprep.subr.bf16.mxu0 0
        %3573 = vmatpush1.bf16.msra.mxu0 0
        %3574 = vmatprep.subr.bf16.mxu0 0
        %3575 = vmatpush1.bf16.msra.mxu0 0
        %3576 = vmatprep.subr.bf16.mxu0 0
        %3577 = vmatpush1.bf16.msra.mxu0 0
        %3578 = vmatprep.subr.bf16.mxu0 0
        %3579 = vmatpush1.bf16.msra.mxu0 0
        %3580 = vmatprep.subr.bf16.mxu0 0
        %3581 = vmatpush1.bf16.msra.mxu0 0
        %3582 = vmatprep.subr.bf16.mxu0 0
        %3583 = vmatpush1.bf16.msra.mxu0 0
        %3584 = vmatprep.subr.bf16.mxu0 0
        %3585 = vmatpush1.bf16.msra.mxu0 0
        %3586 = vmatprep.subr.bf16.mxu0 0
        %3587 = vmatpush1.bf16.msra.mxu0 0
        %3588 = vmatprep.mubr.bf16.mxu0 0
        %3589 = vmatmul.mubr.bf16.gmra.mrb[0].mxu0 %v3551
        %v3590 = vpop.f32.mrb[0].mxu0
        %v3591 = vadd.f32 0.0, %v3590
        %v3592 = vpop.f32.mrb[0].mxu0
        %v3593 = vpop.f32.mrb[0].mxu0
        %v3594 = vpop.f32.mrb[0].mxu0
        %3595 = vdwg.mxu0
        %v3597 = vsel %vm3454, %v3501, 0
        %v3600 = vsel %vm3506, %v3254, 0
        %3602 = vmatprep.subr.bf16.mxu0 0
        %3603 = vmatpush1.bf16.msra.mxu0 %v3600
        %3604 = vmatprep.subr.bf16.mxu0 0
        %3605 = vmatpush1.bf16.msra.mxu0 0
        %3606 = vmatprep.subr.bf16.mxu0 0
        %3607 = vmatpush1.bf16.msra.mxu0 0
        %3608 = vmatprep.subr.bf16.mxu0 0
        %3609 = vmatpush1.bf16.msra.mxu0 0
        %3610 = vmatprep.subr.bf16.mxu0 0
        %3611 = vmatpush1.bf16.msra.mxu0 0
        %3612 = vmatprep.subr.bf16.mxu0 0
        %3613 = vmatpush1.bf16.msra.mxu0 0
        %3614 = vmatprep.subr.bf16.mxu0 0
        %3615 = vmatpush1.bf16.msra.mxu0 0
        %3616 = vmatprep.subr.bf16.mxu0 0
        %3617 = vmatpush1.bf16.msra.mxu0 0
        %3618 = vmatprep.subr.bf16.mxu0 0
        %3619 = vmatpush1.bf16.msra.mxu0 0
        %3620 = vmatprep.subr.bf16.mxu0 0
        %3621 = vmatpush1.bf16.msra.mxu0 0
        %3622 = vmatprep.subr.bf16.mxu0 0
        %3623 = vmatpush1.bf16.msra.mxu0 0
        %3624 = vmatprep.subr.bf16.mxu0 0
        %3625 = vmatpush1.bf16.msra.mxu0 0
        %3626 = vmatprep.subr.bf16.mxu0 0
        %3627 = vmatpush1.bf16.msra.mxu0 0
        %3628 = vmatprep.subr.bf16.mxu0 0
        %3629 = vmatpush1.bf16.msra.mxu0 0
        %3630 = vmatprep.subr.bf16.mxu0 0
        %3631 = vmatpush1.bf16.msra.mxu0 0
        %3632 = vmatprep.subr.bf16.mxu0 0
        %3633 = vmatpush1.bf16.msra.mxu0 0
        %3634 = vmatprep.mubr.bf16.mxu0 0
        %3635 = vmatmul.mubr.bf16.gmra.mrb[0].mxu0 %v3597
        %v3636 = vpop.f32.mrb[0].mxu0
        %v3637 = vadd.f32 0.0, %v3636
        %v3638 = vpop.f32.mrb[0].mxu0
        %v3639 = vpop.f32.mrb[0].mxu0
        %v3640 = vpop.f32.mrb[0].mxu0
        %3641 = vdwg.mxu0
        %v3643 = vsel %vm3454, %v3502, 0
        %v3646 = vsel %vm3506, %v3255, 0
        %3648 = vmatprep.subr.bf16.mxu0 0
        %3649 = vmatpush1.bf16.msra.mxu0 %v3646
        %3650 = vmatprep.subr.bf16.mxu0 0
        %3651 = vmatpush1.bf16.msra.mxu0 0
        %3652 = vmatprep.subr.bf16.mxu0 0
        %3653 = vmatpush1.bf16.msra.mxu0 0
        %3654 = vmatprep.subr.bf16.mxu0 0
        %3655 = vmatpush1.bf16.msra.mxu0 0
        %3656 = vmatprep.subr.bf16.mxu0 0
        %3657 = vmatpush1.bf16.msra.mxu0 0
        %3658 = vmatprep.subr.bf16.mxu0 0
        %3659 = vmatpush1.bf16.msra.mxu0 0
        %3660 = vmatprep.subr.bf16.mxu0 0
        %3661 = vmatpush1.bf16.msra.mxu0 0
        %3662 = vmatprep.subr.bf16.mxu0 0
        %3663 = vmatpush1.bf16.msra.mxu0 0
        %3664 = vmatprep.subr.bf16.mxu0 0
        %3665 = vmatpush1.bf16.msra.mxu0 0
        %3666 = vmatprep.subr.bf16.mxu0 0
        %3667 = vmatpush1.bf16.msra.mxu0 0
        %3668 = vmatprep.subr.bf16.mxu0 0
        %3669 = vmatpush1.bf16.msra.mxu0 0
        %3670 = vmatprep.subr.bf16.mxu0 0
        %3671 = vmatpush1.bf16.msra.mxu0 0
        %3672 = vmatprep.subr.bf16.mxu0 0
        %3673 = vmatpush1.bf16.msra.mxu0 0
        %3674 = vmatprep.subr.bf16.mxu0 0
        %3675 = vmatpush1.bf16.msra.mxu0 0
        %3676 = vmatprep.subr.bf16.mxu0 0
        %3677 = vmatpush1.bf16.msra.mxu0 0
        %3678 = vmatprep.subr.bf16.mxu0 0
        %3679 = vmatpush1.bf16.msra.mxu0 0
        %3680 = vmatprep.mubr.bf16.mxu0 0
        %3681 = vmatmul.mubr.bf16.gmra.mrb[0].mxu0 %v3643
        %v3682 = vpop.f32.mrb[0].mxu0
        %v3683 = vadd.f32 0.0, %v3682
        %v3684 = vpop.f32.mrb[0].mxu0
        %v3685 = vpop.f32.mrb[0].mxu0
        %v3686 = vpop.f32.mrb[0].mxu0
        %3687 = vdwg.mxu0
        %v3688 = vcombine.low %v3545, %v3637
        %v3689 = vcombine.high %v3545, %v3637
        %v3691 = vunpack.c.l.s4 1983009808
        %v3692 = vunpack.c.0.s8 %v3691
        %v3693 = vlaneseq
        %v3694 = vshrl.u32 %v3693, 7
        %v3695 = vsub.s32 %v3692, %v3694
        %v3696 = vrot.slane %v3688, %v3695
        %v3698 = vunpack.c.l.s4 1983009808
        %v3699 = vunpack.c.0.s8 %v3698
        %v3700 = vlaneseq
        %v3701 = vshrl.u32 %v3700, 7
        %v3702 = vsub.s32 %v3699, %v3701
        %v3703 = vrot.slane %v3689, %v3702
        %v3704 = vcombine.low %v3591, %v3683
        %v3705 = vcombine.high %v3591, %v3683
        %v3707 = vunpack.c.l.s4 1983009808
        %v3708 = vunpack.c.0.s8 %v3707
        %v3709 = vlaneseq
        %v3710 = vshrl.u32 %v3709, 7
        %v3711 = vsub.s32 %v3708, %v3710
        %v3712 = vrot.slane %v3704, %v3711
        %v3714 = vunpack.c.l.s4 1983009808
        %v3715 = vunpack.c.0.s8 %v3714
        %v3716 = vlaneseq
        %v3717 = vshrl.u32 %v3716, 7
        %v3718 = vsub.s32 %v3715, %v3717
        %v3719 = vrot.slane %v3705, %v3718
        %v3720 = vcombine.low %v3696, %v3712
        %v3721 = vcombine.high %v3696, %v3712
        %v3723 = vunpack.c.l.s4 1934713408
        %v3724 = vunpack.c.0.s8 %v3723
        %v3725 = vlaneseq
        %v3726 = vshrl.u32 %v3725, 7
        %v3727 = vsub.s32 %v3724, %v3726
        %v3728 = vrot.slane %v3720, %v3727
        %v3730 = vunpack.c.l.s4 1934713408
        %v3731 = vunpack.c.0.s8 %v3730
        %v3732 = vlaneseq
        %v3733 = vshrl.u32 %v3732, 7
        %v3734 = vsub.s32 %v3731, %v3733
        %v3735 = vrot.slane %v3721, %v3734
        %v3736 = vcombine.low %v3703, %v3719
        %v3737 = vcombine.high %v3703, %v3719
        %v3739 = vunpack.c.l.s4 1934713408
        %v3740 = vunpack.c.0.s8 %v3739
        %v3741 = vlaneseq
        %v3742 = vshrl.u32 %v3741, 7
        %v3743 = vsub.s32 %v3740, %v3742
        %v3744 = vrot.slane %v3736, %v3743
        %v3746 = vunpack.c.l.s4 1934713408
        %v3747 = vunpack.c.0.s8 %v3746
        %v3748 = vlaneseq
        %v3749 = vshrl.u32 %v3748, 7
        %v3750 = vsub.s32 %v3747, %v3749
        %v3751 = vrot.slane %v3737, %v3750
        %v3752 = vcombine.high %v3728, 0.0
        %v3753 = vcombine.high %v3735, 0.0
        %v3754 = vcombine.high %v3744, 0.0
        %v3755 = vcombine.high %v3751, 0.0
        %v3756 = vcombine.low %v3728, %v3735
        %v3758 = vunpack.c.l.s4 1983009808
        %v3759 = vunpack.c.0.s8 %v3758
        %v3760 = vlaneseq
        %v3761 = vshrl.u32 %v3760, 7
        %v3762 = vsub.s32 %v3759, %v3761
        %v3763 = vrot.slane %v3756, %v3762
        %v3764 = vcombine.low %v3752, %v3753
        %v3766 = vunpack.c.l.s4 1983009808
        %v3767 = vunpack.c.0.s8 %v3766
        %v3768 = vlaneseq
        %v3769 = vshrl.u32 %v3768, 7
        %v3770 = vsub.s32 %v3767, %v3769
        %v3771 = vrot.slane %v3764, %v3770
        %v3772 = vcombine.low %v3744, %v3751
        %v3774 = vunpack.c.l.s4 1983009808
        %v3775 = vunpack.c.0.s8 %v3774
        %v3776 = vlaneseq
        %v3777 = vshrl.u32 %v3776, 7
        %v3778 = vsub.s32 %v3775, %v3777
        %v3779 = vrot.slane %v3772, %v3778
        %v3780 = vcombine.low %v3754, %v3755
        %v3782 = vunpack.c.l.s4 1983009808
        %v3783 = vunpack.c.0.s8 %v3782
        %v3784 = vlaneseq
        %v3785 = vshrl.u32 %v3784, 7
        %v3786 = vsub.s32 %v3783, %v3785
        %v3787 = vrot.slane %v3780, %v3786
        %v3788 = vcombine.low %v3763, %v3771
        %v3789 = vcombine.high %v3763, %v3771
        %v3791 = vunpack.c.l.s4 1934713408
        %v3792 = vunpack.c.0.s8 %v3791
        %v3793 = vlaneseq
        %v3794 = vshrl.u32 %v3793, 7
        %v3795 = vsub.s32 %v3792, %v3794
        %v3796 = vrot.slane %v3788, %v3795
        %v3798 = vunpack.c.l.s4 1934713408
        %v3799 = vunpack.c.0.s8 %v3798
        %v3800 = vlaneseq
        %v3801 = vshrl.u32 %v3800, 7
        %v3802 = vsub.s32 %v3799, %v3801
        %v3803 = vrot.slane %v3789, %v3802
        %v3804 = vcombine.low %v3779, %v3787
        %v3805 = vcombine.high %v3779, %v3787
        %v3807 = vunpack.c.l.s4 1934713408
        %v3808 = vunpack.c.0.s8 %v3807
        %v3809 = vlaneseq
        %v3810 = vshrl.u32 %v3809, 7
        %v3811 = vsub.s32 %v3808, %v3810
        %v3812 = vrot.slane %v3804, %v3811
        %v3814 = vunpack.c.l.s4 1934713408
        %v3815 = vunpack.c.0.s8 %v3814
        %v3816 = vlaneseq
        %v3817 = vshrl.u32 %v3816, 7
        %v3818 = vsub.s32 %v3815, %v3817
        %v3819 = vrot.slane %v3805, %v3818
        %v3820 = vcombine.low %v3796, %v3812
        %v3821 = vcombine.high %v3796, %v3812
        %v3822 = vcombine.low %v3803, %v3819
        %v3823 = vcombine.high %v3803, %v3819
        %3825 = vrot.lane.b32.xlu0 %v3821, 8
        %v3826 = vpop.permute.xlu0 %3825
        %3829 = vrot.lane.b32.xlu0 %v3822, 16
        %v3830 = vpop.permute.xlu0 %3829
        %3833 = vrot.lane.b32.xlu0 %v3823, 24
        %v3834 = vpop.permute.xlu0 %3833
        %v3836 = vsel %vm1799, %v3820, %v3826
        %v3837 = vsel %vm2374, %v3836, %v3830
        %v3838 = vsel %vm2376, %v3837, %v3834
        %v3839 = vpack.c.bf16 %v3838, %v3838
        %v3841 = vlaneseq
        %v3842 = vshrl.u32 %v3841, 7
        %v3843 = vsub.s32 0, %v3842
        %v3844 = vrot.slane %v2671, %v3843
        %v3850 = vunpack.c.l.b16 %v2667
        %v3851 = vunpack.c.l.b16 %v2668
        %v3852 = vunpack.c.l.b16 %v2669
        %v3853 = vunpack.c.l.b16 %v2670
        %v3854 = vpack.c.b16 %v3851, %v3850
        %v3855 = vpack.c.b16 %v3853, %v3852
        %v3859 = vsel %vm1122, %v3839, 0
        %3861 = vmatprep.subr.bf16.mxu0 0
        %3862 = vmatpush1.bf16.msra.mxu0 %v3854
        %3863 = vmatprep.subr.bf16.mxu0 0
        %3864 = vmatpush1.bf16.msra.mxu0 %v3855
        %3865 = vmatprep.subr.bf16.mxu0 0
        %3866 = vmatpush1.bf16.msra.mxu0 0
        %3867 = vmatprep.subr.bf16.mxu0 0
        %3868 = vmatpush1.bf16.msra.mxu0 0
        %3869 = vmatprep.subr.bf16.mxu0 0
        %3870 = vmatpush1.bf16.msra.mxu0 0
        %3871 = vmatprep.subr.bf16.mxu0 0
        %3872 = vmatpush1.bf16.msra.mxu0 0
        %3873 = vmatprep.subr.bf16.mxu0 0
        %3874 = vmatpush1.bf16.msra.mxu0 0
        %3875 = vmatprep.subr.bf16.mxu0 0
        %3876 = vmatpush1.bf16.msra.mxu0 0
        %3877 = vmatprep.subr.bf16.mxu0 0
        %3878 = vmatpush1.bf16.msra.mxu0 0
        %3879 = vmatprep.subr.bf16.mxu0 0
        %3880 = vmatpush1.bf16.msra.mxu0 0
        %3881 = vmatprep.subr.bf16.mxu0 0
        %3882 = vmatpush1.bf16.msra.mxu0 0
        %3883 = vmatprep.subr.bf16.mxu0 0
        %3884 = vmatpush1.bf16.msra.mxu0 0
        %3885 = vmatprep.subr.bf16.mxu0 0
        %3886 = vmatpush1.bf16.msra.mxu0 0
        %3887 = vmatprep.subr.bf16.mxu0 0
        %3888 = vmatpush1.bf16.msra.mxu0 0
        %3889 = vmatprep.subr.bf16.mxu0 0
        %3890 = vmatpush1.bf16.msra.mxu0 0
        %3891 = vmatprep.subr.bf16.mxu0 0
        %3892 = vmatpush1.bf16.msra.mxu0 0
        %3893 = vmatprep.mubr.bf16.mxu0 0
        %3894 = vmatmul.mubr.bf16.gmra.mrb[0].mxu0 %v3859
        %v3895 = vpop.f32.mrb[0].mxu0
        %v3896 = vadd.f32 %v3844, %v3895
        %v3897 = vpop.f32.mrb[0].mxu0
        %v3898 = vpop.f32.mrb[0].mxu0
        %v3899 = vpop.f32.mrb[0].mxu0
        %3900 = vdwg.mxu0
        %v3901 = vadd.f32 %v2440, %v3896
        %v3902 = vld [vmem:[%s57] sm:$0x1]
        %v3903 = vld [vmem:[%s59] sm:$0x1]
        %v3904 = vsel %vm1122, %v3901, 0.0
        %3905 = vadd.xlane.f32.xlu0 %v3904
        %v3906 = vpop.xlane.xlu0 %3905
        %v3907 = vmul.f32 %v3906, %v1126
        %v3908 = vsub.f32 %v3901, %v3907
        %v3909 = vmul.f32 %v3908, %v3908
        %v3910 = vsel %vm1122, %v3909, 0.0
        %3911 = vadd.xlane.f32.xlu0 %v3910
        %v3912 = vpop.xlane.xlu0 %3911
        %v3913 = vmul.f32 %v3912, %v1126
        %v3914 = vadd.f32 %v3913, 1e-05
        %v3915 = vrsqrt.pop %v3914
        %v3916 = vmul.f32 %v3908, %v3915
        %v3918 = vlaneseq
        %v3919 = vshrl.u32 %v3918, 7
        %v3920 = vsub.s32 0, %v3919
        %v3921 = vrot.slane %v3902, %v3920
        %v3923 = vmul.f32 %v3916, %v3921
        %v3925 = vlaneseq
        %v3926 = vshrl.u32 %v3925, 7
        %v3927 = vsub.s32 0, %v3926
        %v3928 = vrot.slane %v3903, %v3927
        %v3930 = vadd.f32 %v3923, %v3928
        %v3931 = vpack.c.bf16 %v3930, %v3930
        %v3932 = vld [vmem:[%s49] sm:$0xf]
        %v3933 = vld [vmem:[%s49 + $0x4] sm:$0xf]
        %v3934 = vld [vmem:[%s49 + $0x8] sm:$0xf]
        %v3935 = vld [vmem:[%s49 + $0xc] sm:$0xf]
        %v3936 = vld [vmem:[%s51] sm:$0x1]
        %v3938 = vlaneseq
        %v3939 = vshrl.u32 %v3938, 7
        %v3940 = vsub.s32 0, %v3939
        %v3941 = vrot.slane %v3936, %v3940
        %v3947 = vunpack.c.l.b16 %v3932
        %v3948 = vunpack.c.l.b16 %v3933
        %v3949 = vunpack.c.l.b16 %v3934
        %v3950 = vunpack.c.l.b16 %v3935
        %v3951 = vpack.c.b16 %v3948, %v3947
        %v3952 = vpack.c.b16 %v3950, %v3949
        %v3956 = vsel %vm1122, %v3931, 0
        %3958 = vmatprep.subr.bf16.mxu0 0
        %3959 = vmatpush1.bf16.msra.mxu0 %v3951
        %3960 = vmatprep.subr.bf16.mxu0 0
        %3961 = vmatpush1.bf16.msra.mxu0 %v3952
        %3962 = vmatprep.subr.bf16.mxu0 0
        %3963 = vmatpush1.bf16.msra.mxu0 0
        %3964 = vmatprep.subr.bf16.mxu0 0
        %3965 = vmatpush1.bf16.msra.mxu0 0
        %3966 = vmatprep.subr.bf16.mxu0 0
        %3967 = vmatpush1.bf16.msra.mxu0 0
        %3968 = vmatprep.subr.bf16.mxu0 0
        %3969 = vmatpush1.bf16.msra.mxu0 0
        %3970 = vmatprep.subr.bf16.mxu0 0
        %3971 = vmatpush1.bf16.msra.mxu0 0
        %3972 = vmatprep.subr.bf16.mxu0 0
        %3973 = vmatpush1.bf16.msra.mxu0 0
        %3974 = vmatprep.subr.bf16.mxu0 0
        %3975 = vmatpush1.bf16.msra.mxu0 0
        %3976 = vmatprep.subr.bf16.mxu0 0
        %3977 = vmatpush1.bf16.msra.mxu0 0
        %3978 = vmatprep.subr.bf16.mxu0 0
        %3979 = vmatpush1.bf16.msra.mxu0 0
        %3980 = vmatprep.subr.bf16.mxu0 0
        %3981 = vmatpush1.bf16.msra.mxu0 0
        %3982 = vmatprep.subr.bf16.mxu0 0
        %3983 = vmatpush1.bf16.msra.mxu0 0
        %3984 = vmatprep.subr.bf16.mxu0 0
        %3985 = vmatpush1.bf16.msra.mxu0 0
        %3986 = vmatprep.subr.bf16.mxu0 0
        %3987 = vmatpush1.bf16.msra.mxu0 0
        %3988 = vmatprep.subr.bf16.mxu0 0
        %3989 = vmatpush1.bf16.msra.mxu0 0
        %3990 = vmatprep.mubr.bf16.mxu0 0
        %3991 = vmatmul.mubr.bf16.gmra.mrb[0].mxu0 %v3956
        %v3992 = vpop.f32.mrb[0].mxu0
        %v3993 = vadd.f32 %v3941, %v3992
        %v3994 = vpop.f32.mrb[0].mxu0
        %v3995 = vpop.f32.mrb[0].mxu0
        %v3996 = vpop.f32.mrb[0].mxu0
        %3997 = vdwg.mxu0
        %v3998 = vmax.f32 %v3993, 0.0
        %v3999 = vpack.c.bf16 %v3998, %v3998
        %v4000 = vld [vmem:[%s53] sm:$0xf]
        %v4001 = vld [vmem:[%s53 + $0x4] sm:$0xf]
        %v4002 = vld [vmem:[%s53 + $0x8] sm:$0xf]
        %v4003 = vld [vmem:[%s53 + $0xc] sm:$0xf]
        %v4004 = vld [vmem:[%s53 + $0x10] sm:$0xf]
        %v4005 = vld [vmem:[%s53 + $0x14] sm:$0xf]
        %v4006 = vld [vmem:[%s53 + $0x18] sm:$0xf]
        %v4007 = vld [vmem:[%s53 + $0x1c] sm:$0xf]
        %v4008 = vld [vmem:[%s55] sm:$0x1]
        %v4010 = vlaneseq
        %v4011 = vshrl.u32 %v4010, 7
        %v4012 = vsub.s32 0, %v4011
        %v4013 = vrot.slane %v4008, %v4012
        %v4023 = vunpack.c.l.b16 %v4000
        %v4024 = vunpack.c.l.b16 %v4001
        %v4025 = vunpack.c.l.b16 %v4002
        %v4026 = vunpack.c.l.b16 %v4003
        %v4027 = vunpack.c.l.b16 %v4004
        %v4028 = vunpack.c.l.b16 %v4005
        %v4029 = vunpack.c.l.b16 %v4006
        %v4030 = vunpack.c.l.b16 %v4007
        %v4031 = vpack.c.b16 %v4024, %v4023
        %v4032 = vpack.c.b16 %v4026, %v4025
        %v4033 = vpack.c.b16 %v4028, %v4027
        %v4034 = vpack.c.b16 %v4030, %v4029
        %vm4039 = vcmask 523264
        %v4041 = vsel %vm4039, %v3999, 0
        %4043 = vmatprep.subr.bf16.mxu0 0
        %4044 = vmatpush1.bf16.msra.mxu0 %v4031
        %4045 = vmatprep.subr.bf16.mxu0 0
        %4046 = vmatpush1.bf16.msra.mxu0 %v4032
        %4047 = vmatprep.subr.bf16.mxu0 0
        %4048 = vmatpush1.bf16.msra.mxu0 %v4033
        %4049 = vmatprep.subr.bf16.mxu0 0
        %4050 = vmatpush1.bf16.msra.mxu0 %v4034
        %4051 = vmatprep.subr.bf16.mxu0 0
        %4052 = vmatpush1.bf16.msra.mxu0 0
        %4053 = vmatprep.subr.bf16.mxu0 0
        %4054 = vmatpush1.bf16.msra.mxu0 0
        %4055 = vmatprep.subr.bf16.mxu0 0
        %4056 = vmatpush1.bf16.msra.mxu0 0
        %4057 = vmatprep.subr.bf16.mxu0 0
        %4058 = vmatpush1.bf16.msra.mxu0 0
        %4059 = vmatprep.subr.bf16.mxu0 0
        %4060 = vmatpush1.bf16.msra.mxu0 0
        %4061 = vmatprep.subr.bf16.mxu0 0
        %4062 = vmatpush1.bf16.msra.mxu0 0
        %4063 = vmatprep.subr.bf16.mxu0 0
        %4064 = vmatpush1.bf16.msra.mxu0 0
        %4065 = vmatprep.subr.bf16.mxu0 0
        %4066 = vmatpush1.bf16.msra.mxu0 0
        %4067 = vmatprep.subr.bf16.mxu0 0
        %4068 = vmatpush1.bf16.msra.mxu0 0
        %4069 = vmatprep.subr.bf16.mxu0 0
        %4070 = vmatpush1.bf16.msra.mxu0 0
        %4071 = vmatprep.subr.bf16.mxu0 0
        %4072 = vmatpush1.bf16.msra.mxu0 0
        %4073 = vmatprep.subr.bf16.mxu0 0
        %4074 = vmatpush1.bf16.msra.mxu0 0
        %4075 = vmatprep.mubr.bf16.mxu0 0
        %4076 = vmatmul.mubr.bf16.gmra.mrb[0].mxu0 %v4041
        %v4077 = vpop.f32.mrb[0].mxu0
        %v4078 = vadd.f32 %v4013, %v4077
        %v4079 = vpop.f32.mrb[0].mxu0
        %v4080 = vpop.f32.mrb[0].mxu0
        %v4081 = vpop.f32.mrb[0].mxu0
        %4082 = vdwg.mxu0
        %v4083 = vadd.f32 %v3901, %v4078
        %4084 = vst.msk [vmem:[%s1100] sm:$0xff] %vm1122, %v4083
        %s4085 = sand.u32 %s741, 1
        %s4086 = scalar_lea.sflag [#allocation4], %s4085
        %s4087 = sand.u32 %s741, 1
        %s4088 = smul.addr %s4087, 8
        %s4089 = scalar_lea.vmem [#allocation19], %s4088
        // Predicated region
        $region181: #{tpu_custom_call.1} parent=139 // pred_check
          %p4090 = pneg %p751
        $region182: #{tpu_custom_call.1} parent=139 // pred_check_branch
          %4092 = sbr.rel (%p4090) target = $region184
        $region183: #{tpu_custom_call.1} parent=139 // pred_region
          %s4094 = ssub.s32 128, 128
          %4095 = vsyncadd %s4086, %s4094
          %s4096 = smul.addr %s83, 128
          %s4097 = scalar_lea.hbm %s61, %s4096
          %s4099 = sshll.u32 %s4089, 4
          %s4100 = int_to_ptr.vmem [resolvable:$true] %s4099
          %4102 = dma.vmem_to_hbm [thread:$0]  %s4100, 128, %s4097, %s4086
        $region184: #{tpu_custom_call.1} parent=139 // pred_fallthru
          _
      $region140: #{tpu_custom_call.1} parent=5 // pred_fallthru
        _
      %p4103 = scmp.le.s32.totalorder 2, %s78
      // Predicated region
      $region185: #{tpu_custom_call.1} parent=5 // pred_check
        %p4104 = pneg %p4103
      $region186: #{tpu_custom_call.1} parent=5 // pred_check_branch
        %4106 = sbr.rel (%p4104) target = $region188
      $region187: #{tpu_custom_call.1} parent=5 // pred_region
        %s4107 = ssub.s32 %s78, 2
        // Predicated region
        $region189: #{tpu_custom_call.1} parent=187 // pred_check
          %p4108 = pneg %p757
        $region190: #{tpu_custom_call.1} parent=187 // pred_check_branch
          %4110 = sbr.rel (%p4108) target = $region192
        $region191: #{tpu_custom_call.1} parent=187 // pred_region
          %s4111 = sand.u32 %s742, 1
          %s4112 = scalar_lea.sflag [#allocation4], %s4111
          %s4113 = sand.u32 %s742, 1
          %s4114 = smul.addr %s4113, 8
          %s4115 = scalar_lea.vmem [#allocation19], %s4114
          %4116 = dma.done %s4112, 128
        $region192: #{tpu_custom_call.1} parent=187 // pred_fallthru
          _
      $region188: #{tpu_custom_call.1} parent=5 // pred_fallthru
        _
    $region6: #{tpu_custom_call.1} parent=1 // loop_footer
      %s82 = sadd.s32 1, %s78
    $region7: #{tpu_custom_call.1} parent=1 // loop_footer_branch
      %77 = sbr.rel target = $region3
    $region8: #{tpu_custom_call.1} parent=1 // loop_exit
      _
    %4117 = vsyncpa [#allocation3], 1
    %s4118 = scalar_lea.sflag [#allocation3], 1
    %4119 = vsyncpa %s4118, 1
    %4120 = vsyncpa [#allocation6], 1
    %4121 = vsyncpa [#allocation9], 1
    %4122 = vsyncpa [#allocation12], 1
    %4123 = vsyncpa [#allocation15], 1
    %4124 = vsyncpa [#allocation18], 1
    %4125 = vsyncpa [#allocation4], 1
    %s4126 = scalar_lea.sflag [#allocation4], 1
    %4127 = vsyncpa %s4126, 1

</llo_original>
